<compile_context>
chip_gen: v5e
topology: v5e:2x2
jax: 0.10.0
libtpu: 0.0.40
codegen_flags: <defaults>
</compile_context>

<pallas_src>
import functools

import jax
import jax.numpy as jnp
from jax.experimental import pallas as pl
from jax.experimental.pallas import tpu as pltpu


def _round_up(x, m):
    return (x + m - 1) // m * m


_GROUP = 8  # batch rows gathered per grid step (one f32 sublane tile)


# ---------------------------------------------------------------------------
# Stage 1: manual double-buffered embedding row gather + mean over context.
# grid = (b_pad // 8,).  Each step DMAs 8*C embedding rows (selected via the
# SMEM-prefetched index table) concurrently into VMEM scratch, overlapped with
# the reduction of the previous group, then writes one (8, e_pad) mean block.
# ---------------------------------------------------------------------------
def _gather_mean_kernel(idx_ref, emb_hbm, out_ref, buf, sems, *, context, inv_c):
    g = pl.program_id(0)
    n_g = pl.num_programs(0)

    def issue(group_idx, slot):
        base = group_idx * (_GROUP * context)
        for r in range(_GROUP):
            for c in range(context):
                row = idx_ref[base + r * context + c]
                pltpu.make_async_copy(
                    emb_hbm.at[row], buf.at[slot, c, r], sems.at[slot]
                ).start()

    @pl.when(g == 0)
    def _prologue():
        issue(0, 0)

    @pl.when(g + 1 < n_g)
    def _prefetch_next():
        issue(g + 1, (g + 1) % 2)

    slot = g % 2
    # All copies of this slot signal the same semaphore with identical sizes,
    # so draining it with one wait per copy is exact.
    for _ in range(_GROUP * context):
        pltpu.make_async_copy(
            emb_hbm.at[0], buf.at[slot, 0, 0], sems.at[slot]
        ).wait()

    cur = buf.at[slot]                       # (context, _GROUP, e_pad) view
    acc = cur[0]
    for c in range(1, context):
        acc = acc + cur[c]
    out_ref[...] = acc * inv_c               # scale once per block


def _gather_mean(idx_flat, emb_pad, b_pad, context, e_pad):
    n_groups = b_pad // _GROUP
    kernel = functools.partial(
        _gather_mean_kernel, context=context, inv_c=1.0 / context)
    return pl.pallas_call(
        kernel,
        out_shape=jax.ShapeDtypeStruct((b_pad, e_pad), jnp.float32),
        grid_spec=pltpu.PrefetchScalarGridSpec(
            num_scalar_prefetch=1,           # idx_flat lands in SMEM
            grid=(n_groups,),
            in_specs=[pl.BlockSpec(memory_space=pl.ANY)],  # emb stays in HBM
            out_specs=pl.BlockSpec((_GROUP, e_pad), lambda g, idx: (g, 0)),
            scratch_shapes=[
                pltpu.VMEM((2, context, _GROUP, e_pad), jnp.float32),
                pltpu.SemaphoreType.DMA((2,)),
            ],
        ),
        compiler_params=pltpu.CompilerParams(
            # Manual cross-step prefetch requires sequential grid execution,
            # so this tiny latency-bound stage is "arbitrary" (stage 2 gets
            # the megacore parallelism where it matters).
            dimension_semantics=("arbitrary",),
            vmem_limit_bytes=32 * 1024 * 1024,
        ),
    )(idx_flat, emb_pad)


# ---------------------------------------------------------------------------
# Stage 2: linear layer over lane-dense vocab tiles (bf16 W stream, f32 acc).
# ---------------------------------------------------------------------------
def _linear_kernel(x_ref, wt_ref, b_ref, out_ref):
    out_ref[...] = (
        jnp.dot(x_ref[...], wt_ref[...], preferred_element_type=jnp.float32)
        + b_ref[...]
    )


def _linear(x, wt, bias, batch, e_pad, v_pad, tile_n):
    grid_n = v_pad // tile_n
    cost = pl.CostEstimate(
        flops=2 * batch * e_pad * v_pad,
        transcendentals=0,
        bytes_accessed=int(
            grid_n * x.size * x.dtype.itemsize         # resident x re-read
            + wt.size * wt.dtype.itemsize              # streamed W^T
            + bias.size * bias.dtype.itemsize
            + batch * v_pad * 4                        # f32 logits out
        ),
    )
    return pl.pallas_call(
        _linear_kernel,
        out_shape=jax.ShapeDtypeStruct((batch, v_pad), jnp.float32),
        grid_spec=pltpu.PrefetchScalarGridSpec(
            num_scalar_prefetch=0,
            grid=(grid_n,),
            in_specs=[
                pl.BlockSpec((batch, e_pad), lambda j: (0, 0)),   # resident
                pl.BlockSpec((e_pad, tile_n), lambda j: (0, j)),  # W^T stream
                pl.BlockSpec((1, tile_n), lambda j: (0, j)),
            ],
            out_specs=pl.BlockSpec((batch, tile_n), lambda j: (0, j)),
        ),
        compiler_params=pltpu.CompilerParams(
            # Independent vocab tiles shard across v7x's two TensorCores.
            dimension_semantics=("parallel",),
            vmem_limit_bytes=32 * 1024 * 1024,
        ),
        cost_estimate=cost,
    )(x, wt, bias)


def _pick_tile_n(vocab, e_pad, w_itemsize):
    """Large lane-dense vocab tile, VMEM-guarded so the double-buffered W tile
    leaves headroom inside v7x's 64 MiB physical VMEM."""
    tile = min(1024, _round_up(vocab, 128))
    tile = _round_up(tile, 128)
    while tile > 128 and 2 * e_pad * tile * w_itemsize > 12 * 1024 * 1024:
        tile = max(128, _round_up(tile // 2, 128))
    return tile


def prepare_cbow_params(emb, w, b, *, compute_dtype=jnp.bfloat16, tile_n=None):
    """One-time (hoisted) parameter prep: pad emb table, pad+transpose W.

    Doing this per forward call roughly doubles the HBM traffic of the
    mem-bound linear stage, so callers should prepare once and reuse.
    """
    V, E = emb.shape
    assert w.shape == (V, E) and b.shape == (V,)
    e_pad = _round_up(E, 128)
    w_itemsize = jnp.dtype(compute_dtype).itemsize
    if tile_n is None:
        tile_n = _pick_tile_n(V, e_pad, w_itemsize)
    tile_n = _round_up(tile_n, 128)
    v_pad = _round_up(V, tile_n)

    emb_pad = jnp.pad(emb.astype(jnp.float32), ((0, 0), (0, e_pad - E)))
    wt = jnp.pad(w.astype(jnp.float32),
                 ((0, v_pad - V), (0, e_pad - E))).T.astype(compute_dtype)
    bias = jnp.pad(b.astype(jnp.float32), (0, v_pad - V)).reshape(1, v_pad)
    return dict(emb=emb_pad, wt=wt, bias=bias, V=V, E=E,
                e_pad=e_pad, v_pad=v_pad, tile_n=tile_n,
                compute_dtype=compute_dtype)


def cbow_forward(idx, params):
    """logits[n, :] = mean_c(emb[idx[n, c]]) @ w.T + b"""
    B, C = idx.shape
    V = params["V"]
    e_pad, v_pad, tile_n = params["e_pad"], params["v_pad"], params["tile_n"]

    # Pad batch to a multiple of 16 (bf16 sublane-dense x, and a multiple of
    # the stage-1 gather group of 8).
    b_pad = _round_up(B, 16)

    # TODO(synk): PyTorch nn.Embedding raises on out-of-range indices; here we
    # clamp (jnp.take semantics) instead.
    idx = jnp.clip(idx.astype(jnp.int32), 0, V - 1)
    if b_pad != B:
        idx = jnp.pad(idx, ((0, b_pad - B), (0, 0)))
    idx_flat = idx.reshape(-1)

    # Stage 1: gather + mean (scales with B*C*E; manual concurrent DMA gather).
    mean_emb = _gather_mean(idx_flat, params["emb"], b_pad, C, e_pad)

    # Stage 2: linear over lane-dense vocab tiles, bf16 W stream / f32 acc.
    x = mean_emb.astype(params["compute_dtype"])
    logits = _linear(x, params["wt"], params["bias"], b_pad, e_pad, v_pad,
                     tile_n)
    return logits[:B, :V]


def cbow_reference(idx, emb, w, b):
    embeds = jnp.take(emb, idx, axis=0).mean(axis=1)     # (B, E)
    return embeds @ w.T + b                              # (B, V)


if __name__ == "__main__":
    # Small shapes consistent with the module's forward:
    #   inputs: (batch, context_len) word indices
    vocab_size = 32
    embedding_dim = 16
    batch = 8
    context_len = 4

    key = jax.random.PRNGKey(0)
    k_idx, k_emb, k_w, k_b = jax.random.split(key, 4)

    idx = jax.random.randint(k_idx, (batch, context_len), 0, vocab_size,
                             dtype=jnp.int32)
    emb = jax.random.normal(k_emb, (vocab_size, embedding_dim), jnp.float32)
    bound = 1.0 / (embedding_dim ** 0.5)
    w = jax.random.uniform(k_w, (vocab_size, embedding_dim), jnp.float32,
                           -bound, bound)
    b = jax.random.uniform(k_b, (vocab_size,), jnp.float32, -bound, bound)

    params = prepare_cbow_params(emb, w, b)   # prep once (hoisted pad+transpose)
    out = cbow_forward(idx, params)
    out = jax.block_until_ready(out)

    ref = cbow_reference(idx, emb, w, b)
    assert out.shape == (batch, vocab_size)
    # bf16 weight/x stream with f32 accumulation -> ~1e-2 relative tolerance.
    assert jnp.allclose(out, ref, atol=2e-2, rtol=2e-2), "mismatch vs reference"

    print("KERNEL_OK")
</pallas_src>

<mosaic_0001>
module attributes {stable_mosaic.version = 11 : i64} {
  func.func @_gather_mean_kernel(%arg0: i32, %arg1: memref<64xi32, #tpu.memory_space<smem>>, %arg2: memref<32x128xf32, #tpu.memory_space<any>>, %arg3: memref<8x128xf32, #tpu.memory_space<vmem>>, %arg4: memref<2x4x8x128xf32, #tpu.memory_space<vmem>>, %arg5: memref<2x!tpu.dma_semaphore, #tpu.memory_space<semaphore_mem>>) attributes {dimension_semantics = [#tpu.dimension_semantics<arbitrary>], iteration_bounds = array<i64: 2>, scalar_prefetch = 1 : i64, scratch_operands = 2 : i64, tpu.core_type = #tpu.core_type<tc>, window_params = [{}, {transform_indices = @transform_1, window_bounds = array<i64: 8, 128>}]} {
    %c0_i32 = arith.constant 0 : i32
    %0 = arith.cmpi eq, %arg0, %c0_i32 : i32
    %1 = arith.extui %0 : i1 to i32
    %c0_i32_0 = arith.constant 0 : i32
    %2 = arith.cmpi ne, %1, %c0_i32_0 : i32
    scf.if %2 {
      %c0_190 = arith.constant 0 : index
      %231 = memref.load %arg1[%c0_190] : memref<64xi32, #tpu.memory_space<smem>>
      %c0_i32_191 = arith.constant 0 : i32
      %c0_i32_192 = arith.constant 0 : i32
      %c0_i32_193 = arith.constant 0 : i32
      %c0_i32_194 = arith.constant 0 : i32
      %c0_i32_195 = arith.constant 0 : i32
      %232 = tpu.memref_slice %arg2[%231, %c0_i32_195] : memref<32x128xf32, #tpu.memory_space<any>> -> memref<1x128xf32, #tpu.memory_space<any>>
      %233 = tpu.memref_squeeze %232 : memref<1x128xf32, #tpu.memory_space<any>> -> memref<128xf32, #tpu.memory_space<any>>
      %c0_i32_196 = arith.constant 0 : i32
      %234 = tpu.memref_slice %arg4[%c0_i32_191, %c0_i32_192, %c0_i32_193, %c0_i32_196] : memref<2x4x8x128xf32, #tpu.memory_space<vmem>> -> memref<1x1x1x128xf32, #tpu.memory_space<vmem>>
      %235 = tpu.memref_squeeze %234 : memref<1x1x1x128xf32, #tpu.memory_space<vmem>> -> memref<128xf32, #tpu.memory_space<vmem>>
      %236 = tpu.memref_slice %arg5[%c0_i32_194] : memref<2x!tpu.dma_semaphore, #tpu.memory_space<semaphore_mem>> -> memref<1x!tpu.dma_semaphore, #tpu.memory_space<semaphore_mem>>
      %237 = tpu.memref_squeeze %236 : memref<1x!tpu.dma_semaphore, #tpu.memory_space<semaphore_mem>> -> memref<!tpu.dma_semaphore, #tpu.memory_space<semaphore_mem>>
      tpu.enqueue_dma source(%233 : memref<128xf32, #tpu.memory_space<any>>) target(%235 : memref<128xf32, #tpu.memory_space<vmem>>) target_semaphore(%237 : memref<!tpu.dma_semaphore, #tpu.memory_space<semaphore_mem>>)
      %c1_197 = arith.constant 1 : index
      %238 = memref.load %arg1[%c1_197] : memref<64xi32, #tpu.memory_space<smem>>
      %c0_i32_198 = arith.constant 0 : i32
      %c1_i32_199 = arith.constant 1 : i32
      %c0_i32_200 = arith.constant 0 : i32
      %c0_i32_201 = arith.constant 0 : i32
      %c0_i32_202 = arith.constant 0 : i32
      %239 = tpu.memref_slice %arg2[%238, %c0_i32_202] : memref<32x128xf32, #tpu.memory_space<any>> -> memref<1x128xf32, #tpu.memory_space<any>>
      %240 = tpu.memref_squeeze %239 : memref<1x128xf32, #tpu.memory_space<any>> -> memref<128xf32, #tpu.memory_space<any>>
      %c0_i32_203 = arith.constant 0 : i32
      %241 = tpu.memref_slice %arg4[%c0_i32_198, %c1_i32_199, %c0_i32_200, %c0_i32_203] : memref<2x4x8x128xf32, #tpu.memory_space<vmem>> -> memref<1x1x1x128xf32, #tpu.memory_space<vmem>>
      %242 = tpu.memref_squeeze %241 : memref<1x1x1x128xf32, #tpu.memory_space<vmem>> -> memref<128xf32, #tpu.memory_space<vmem>>
      %243 = tpu.memref_slice %arg5[%c0_i32_201] : memref<2x!tpu.dma_semaphore, #tpu.memory_space<semaphore_mem>> -> memref<1x!tpu.dma_semaphore, #tpu.memory_space<semaphore_mem>>
      %244 = tpu.memref_squeeze %243 : memref<1x!tpu.dma_semaphore, #tpu.memory_space<semaphore_mem>> -> memref<!tpu.dma_semaphore, #tpu.memory_space<semaphore_mem>>
      tpu.enqueue_dma source(%240 : memref<128xf32, #tpu.memory_space<any>>) target(%242 : memref<128xf32, #tpu.memory_space<vmem>>) target_semaphore(%244 : memref<!tpu.dma_semaphore, #tpu.memory_space<semaphore_mem>>)
      %c2_204 = arith.constant 2 : index
      %245 = memref.load %arg1[%c2_204] : memref<64xi32, #tpu.memory_space<smem>>
      %c0_i32_205 = arith.constant 0 : i32
      %c2_i32_206 = arith.constant 2 : i32
      %c0_i32_207 = arith.constant 0 : i32
      %c0_i32_208 = arith.constant 0 : i32
      %c0_i32_209 = arith.constant 0 : i32
      %246 = tpu.memref_slice %arg2[%245, %c0_i32_209] : memref<32x128xf32, #tpu.memory_space<any>> -> memref<1x128xf32, #tpu.memory_space<any>>
      %247 = tpu.memref_squeeze %246 : memref<1x128xf32, #tpu.memory_space<any>> -> memref<128xf32, #tpu.memory_space<any>>
      %c0_i32_210 = arith.constant 0 : i32
      %248 = tpu.memref_slice %arg4[%c0_i32_205, %c2_i32_206, %c0_i32_207, %c0_i32_210] : memref<2x4x8x128xf32, #tpu.memory_space<vmem>> -> memref<1x1x1x128xf32, #tpu.memory_space<vmem>>
      %249 = tpu.memref_squeeze %248 : memref<1x1x1x128xf32, #tpu.memory_space<vmem>> -> memref<128xf32, #tpu.memory_space<vmem>>
      %250 = tpu.memref_slice %arg5[%c0_i32_208] : memref<2x!tpu.dma_semaphore, #tpu.memory_space<semaphore_mem>> -> memref<1x!tpu.dma_semaphore, #tpu.memory_space<semaphore_mem>>
      %251 = tpu.memref_squeeze %250 : memref<1x!tpu.dma_semaphore, #tpu.memory_space<semaphore_mem>> -> memref<!tpu.dma_semaphore, #tpu.memory_space<semaphore_mem>>
      tpu.enqueue_dma source(%247 : memref<128xf32, #tpu.memory_space<any>>) target(%249 : memref<128xf32, #tpu.memory_space<vmem>>) target_semaphore(%251 : memref<!tpu.dma_semaphore, #tpu.memory_space<semaphore_mem>>)
      %c3_211 = arith.constant 3 : index
      %252 = memref.load %arg1[%c3_211] : memref<64xi32, #tpu.memory_space<smem>>
      %c0_i32_212 = arith.constant 0 : i32
      %c3_i32 = arith.constant 3 : i32
      %c0_i32_213 = arith.constant 0 : i32
      %c0_i32_214 = arith.constant 0 : i32
      %c0_i32_215 = arith.constant 0 : i32
      %253 = tpu.memref_slice %arg2[%252, %c0_i32_215] : memref<32x128xf32, #tpu.memory_space<any>> -> memref<1x128xf32, #tpu.memory_space<any>>
      %254 = tpu.memref_squeeze %253 : memref<1x128xf32, #tpu.memory_space<any>> -> memref<128xf32, #tpu.memory_space<any>>
      %c0_i32_216 = arith.constant 0 : i32
      %255 = tpu.memref_slice %arg4[%c0_i32_212, %c3_i32, %c0_i32_213, %c0_i32_216] : memref<2x4x8x128xf32, #tpu.memory_space<vmem>> -> memref<1x1x1x128xf32, #tpu.memory_space<vmem>>
      %256 = tpu.memref_squeeze %255 : memref<1x1x1x128xf32, #tpu.memory_space<vmem>> -> memref<128xf32, #tpu.memory_space<vmem>>
      %257 = tpu.memref_slice %arg5[%c0_i32_214] : memref<2x!tpu.dma_semaphore, #tpu.memory_space<semaphore_mem>> -> memref<1x!tpu.dma_semaphore, #tpu.memory_space<semaphore_mem>>
      %258 = tpu.memref_squeeze %257 : memref<1x!tpu.dma_semaphore, #tpu.memory_space<semaphore_mem>> -> memref<!tpu.dma_semaphore, #tpu.memory_space<semaphore_mem>>
      tpu.enqueue_dma source(%254 : memref<128xf32, #tpu.memory_space<any>>) target(%256 : memref<128xf32, #tpu.memory_space<vmem>>) target_semaphore(%258 : memref<!tpu.dma_semaphore, #tpu.memory_space<semaphore_mem>>)
      %c4 = arith.constant 4 : index
      %259 = memref.load %arg1[%c4] : memref<64xi32, #tpu.memory_space<smem>>
      %c0_i32_217 = arith.constant 0 : i32
      %c0_i32_218 = arith.constant 0 : i32
      %c1_i32_219 = arith.constant 1 : i32
      %c0_i32_220 = arith.constant 0 : i32
      %c0_i32_221 = arith.constant 0 : i32
      %260 = tpu.memref_slice %arg2[%259, %c0_i32_221] : memref<32x128xf32, #tpu.memory_space<any>> -> memref<1x128xf32, #tpu.memory_space<any>>
      %261 = tpu.memref_squeeze %260 : memref<1x128xf32, #tpu.memory_space<any>> -> memref<128xf32, #tpu.memory_space<any>>
      %c0_i32_222 = arith.constant 0 : i32
      %262 = tpu.memref_slice %arg4[%c0_i32_217, %c0_i32_218, %c1_i32_219, %c0_i32_222] : memref<2x4x8x128xf32, #tpu.memory_space<vmem>> -> memref<1x1x1x128xf32, #tpu.memory_space<vmem>>
      %263 = tpu.memref_squeeze %262 : memref<1x1x1x128xf32, #tpu.memory_space<vmem>> -> memref<128xf32, #tpu.memory_space<vmem>>
      %264 = tpu.memref_slice %arg5[%c0_i32_220] : memref<2x!tpu.dma_semaphore, #tpu.memory_space<semaphore_mem>> -> memref<1x!tpu.dma_semaphore, #tpu.memory_space<semaphore_mem>>
      %265 = tpu.memref_squeeze %264 : memref<1x!tpu.dma_semaphore, #tpu.memory_space<semaphore_mem>> -> memref<!tpu.dma_semaphore, #tpu.memory_space<semaphore_mem>>
      tpu.enqueue_dma source(%261 : memref<128xf32, #tpu.memory_space<any>>) target(%263 : memref<128xf32, #tpu.memory_space<vmem>>) target_semaphore(%265 : memref<!tpu.dma_semaphore, #tpu.memory_space<semaphore_mem>>)
      %c5 = arith.constant 5 : index
      %266 = memref.load %arg1[%c5] : memref<64xi32, #tpu.memory_space<smem>>
      %c0_i32_223 = arith.constant 0 : i32
      %c1_i32_224 = arith.constant 1 : i32
      %c1_i32_225 = arith.constant 1 : i32
      %c0_i32_226 = arith.constant 0 : i32
      %c0_i32_227 = arith.constant 0 : i32
      %267 = tpu.memref_slice %arg2[%266, %c0_i32_227] : memref<32x128xf32, #tpu.memory_space<any>> -> memref<1x128xf32, #tpu.memory_space<any>>
      %268 = tpu.memref_squeeze %267 : memref<1x128xf32, #tpu.memory_space<any>> -> memref<128xf32, #tpu.memory_space<any>>
      %c0_i32_228 = arith.constant 0 : i32
      %269 = tpu.memref_slice %arg4[%c0_i32_223, %c1_i32_224, %c1_i32_225, %c0_i32_228] : memref<2x4x8x128xf32, #tpu.memory_space<vmem>> -> memref<1x1x1x128xf32, #tpu.memory_space<vmem>>
      %270 = tpu.memref_squeeze %269 : memref<1x1x1x128xf32, #tpu.memory_space<vmem>> -> memref<128xf32, #tpu.memory_space<vmem>>
      %271 = tpu.memref_slice %arg5[%c0_i32_226] : memref<2x!tpu.dma_semaphore, #tpu.memory_space<semaphore_mem>> -> memref<1x!tpu.dma_semaphore, #tpu.memory_space<semaphore_mem>>
      %272 = tpu.memref_squeeze %271 : memref<1x!tpu.dma_semaphore, #tpu.memory_space<semaphore_mem>> -> memref<!tpu.dma_semaphore, #tpu.memory_space<semaphore_mem>>
      tpu.enqueue_dma source(%268 : memref<128xf32, #tpu.memory_space<any>>) target(%270 : memref<128xf32, #tpu.memory_space<vmem>>) target_semaphore(%272 : memref<!tpu.dma_semaphore, #tpu.memory_space<semaphore_mem>>)
      %c6 = arith.constant 6 : index
      %273 = memref.load %arg1[%c6] : memref<64xi32, #tpu.memory_space<smem>>
      %c0_i32_229 = arith.constant 0 : i32
      %c2_i32_230 = arith.constant 2 : i32
      %c1_i32_231 = arith.constant 1 : i32
      %c0_i32_232 = arith.constant 0 : i32
      %c0_i32_233 = arith.constant 0 : i32
      %274 = tpu.memref_slice %arg2[%273, %c0_i32_233] : memref<32x128xf32, #tpu.memory_space<any>> -> memref<1x128xf32, #tpu.memory_space<any>>
      %275 = tpu.memref_squeeze %274 : memref<1x128xf32, #tpu.memory_space<any>> -> memref<128xf32, #tpu.memory_space<any>>
      %c0_i32_234 = arith.constant 0 : i32
      %276 = tpu.memref_slice %arg4[%c0_i32_229, %c2_i32_230, %c1_i32_231, %c0_i32_234] : memref<2x4x8x128xf32, #tpu.memory_space<vmem>> -> memref<1x1x1x128xf32, #tpu.memory_space<vmem>>
      %277 = tpu.memref_squeeze %276 : memref<1x1x1x128xf32, #tpu.memory_space<vmem>> -> memref<128xf32, #tpu.memory_space<vmem>>
      %278 = tpu.memref_slice %arg5[%c0_i32_232] : memref<2x!tpu.dma_semaphore, #tpu.memory_space<semaphore_mem>> -> memref<1x!tpu.dma_semaphore, #tpu.memory_space<semaphore_mem>>
      %279 = tpu.memref_squeeze %278 : memref<1x!tpu.dma_semaphore, #tpu.memory_space<semaphore_mem>> -> memref<!tpu.dma_semaphore, #tpu.memory_space<semaphore_mem>>
      tpu.enqueue_dma source(%275 : memref<128xf32, #tpu.memory_space<any>>) target(%277 : memref<128xf32, #tpu.memory_space<vmem>>) target_semaphore(%279 : memref<!tpu.dma_semaphore, #tpu.memory_space<semaphore_mem>>)
      %c7 = arith.constant 7 : index
      %280 = memref.load %arg1[%c7] : memref<64xi32, #tpu.memory_space<smem>>
      %c0_i32_235 = arith.constant 0 : i32
      %c3_i32_236 = arith.constant 3 : i32
      %c1_i32_237 = arith.constant 1 : i32
      %c0_i32_238 = arith.constant 0 : i32
      %c0_i32_239 = arith.constant 0 : i32
      %281 = tpu.memref_slice %arg2[%280, %c0_i32_239] : memref<32x128xf32, #tpu.memory_space<any>> -> memref<1x128xf32, #tpu.memory_space<any>>
      %282 = tpu.memref_squeeze %281 : memref<1x128xf32, #tpu.memory_space<any>> -> memref<128xf32, #tpu.memory_space<any>>
      %c0_i32_240 = arith.constant 0 : i32
      %283 = tpu.memref_slice %arg4[%c0_i32_235, %c3_i32_236, %c1_i32_237, %c0_i32_240] : memref<2x4x8x128xf32, #tpu.memory_space<vmem>> -> memref<1x1x1x128xf32, #tpu.memory_space<vmem>>
      %284 = tpu.memref_squeeze %283 : memref<1x1x1x128xf32, #tpu.memory_space<vmem>> -> memref<128xf32, #tpu.memory_space<vmem>>
      %285 = tpu.memref_slice %arg5[%c0_i32_238] : memref<2x!tpu.dma_semaphore, #tpu.memory_space<semaphore_mem>> -> memref<1x!tpu.dma_semaphore, #tpu.memory_space<semaphore_mem>>
      %286 = tpu.memref_squeeze %285 : memref<1x!tpu.dma_semaphore, #tpu.memory_space<semaphore_mem>> -> memref<!tpu.dma_semaphore, #tpu.memory_space<semaphore_mem>>
      tpu.enqueue_dma source(%282 : memref<128xf32, #tpu.memory_space<any>>) target(%284 : memref<128xf32, #tpu.memory_space<vmem>>) target_semaphore(%286 : memref<!tpu.dma_semaphore, #tpu.memory_space<semaphore_mem>>)
      %c8 = arith.constant 8 : index
      %287 = memref.load %arg1[%c8] : memref<64xi32, #tpu.memory_space<smem>>
      %c0_i32_241 = arith.constant 0 : i32
      %c0_i32_242 = arith.constant 0 : i32
      %c2_i32_243 = arith.constant 2 : i32
      %c0_i32_244 = arith.constant 0 : i32
      %c0_i32_245 = arith.constant 0 : i32
      %288 = tpu.memref_slice %arg2[%287, %c0_i32_245] : memref<32x128xf32, #tpu.memory_space<any>> -> memref<1x128xf32, #tpu.memory_space<any>>
      %289 = tpu.memref_squeeze %288 : memref<1x128xf32, #tpu.memory_space<any>> -> memref<128xf32, #tpu.memory_space<any>>
      %c0_i32_246 = arith.constant 0 : i32
      %290 = tpu.memref_slice %arg4[%c0_i32_241, %c0_i32_242, %c2_i32_243, %c0_i32_246] : memref<2x4x8x128xf32, #tpu.memory_space<vmem>> -> memref<1x1x1x128xf32, #tpu.memory_space<vmem>>
      %291 = tpu.memref_squeeze %290 : memref<1x1x1x128xf32, #tpu.memory_space<vmem>> -> memref<128xf32, #tpu.memory_space<vmem>>
      %292 = tpu.memref_slice %arg5[%c0_i32_244] : memref<2x!tpu.dma_semaphore, #tpu.memory_space<semaphore_mem>> -> memref<1x!tpu.dma_semaphore, #tpu.memory_space<semaphore_mem>>
      %293 = tpu.memref_squeeze %292 : memref<1x!tpu.dma_semaphore, #tpu.memory_space<semaphore_mem>> -> memref<!tpu.dma_semaphore, #tpu.memory_space<semaphore_mem>>
      tpu.enqueue_dma source(%289 : memref<128xf32, #tpu.memory_space<any>>) target(%291 : memref<128xf32, #tpu.memory_space<vmem>>) target_semaphore(%293 : memref<!tpu.dma_semaphore, #tpu.memory_space<semaphore_mem>>)
      %c9 = arith.constant 9 : index
      %294 = memref.load %arg1[%c9] : memref<64xi32, #tpu.memory_space<smem>>
      %c0_i32_247 = arith.constant 0 : i32
      %c1_i32_248 = arith.constant 1 : i32
      %c2_i32_249 = arith.constant 2 : i32
      %c0_i32_250 = arith.constant 0 : i32
      %c0_i32_251 = arith.constant 0 : i32
      %295 = tpu.memref_slice %arg2[%294, %c0_i32_251] : memref<32x128xf32, #tpu.memory_space<any>> -> memref<1x128xf32, #tpu.memory_space<any>>
      %296 = tpu.memref_squeeze %295 : memref<1x128xf32, #tpu.memory_space<any>> -> memref<128xf32, #tpu.memory_space<any>>
      %c0_i32_252 = arith.constant 0 : i32
      %297 = tpu.memref_slice %arg4[%c0_i32_247, %c1_i32_248, %c2_i32_249, %c0_i32_252] : memref<2x4x8x128xf32, #tpu.memory_space<vmem>> -> memref<1x1x1x128xf32, #tpu.memory_space<vmem>>
      %298 = tpu.memref_squeeze %297 : memref<1x1x1x128xf32, #tpu.memory_space<vmem>> -> memref<128xf32, #tpu.memory_space<vmem>>
      %299 = tpu.memref_slice %arg5[%c0_i32_250] : memref<2x!tpu.dma_semaphore, #tpu.memory_space<semaphore_mem>> -> memref<1x!tpu.dma_semaphore, #tpu.memory_space<semaphore_mem>>
      %300 = tpu.memref_squeeze %299 : memref<1x!tpu.dma_semaphore, #tpu.memory_space<semaphore_mem>> -> memref<!tpu.dma_semaphore, #tpu.memory_space<semaphore_mem>>
      tpu.enqueue_dma source(%296 : memref<128xf32, #tpu.memory_space<any>>) target(%298 : memref<128xf32, #tpu.memory_space<vmem>>) target_semaphore(%300 : memref<!tpu.dma_semaphore, #tpu.memory_space<semaphore_mem>>)
      %c10 = arith.constant 10 : index
      %301 = memref.load %arg1[%c10] : memref<64xi32, #tpu.memory_space<smem>>
      %c0_i32_253 = arith.constant 0 : i32
      %c2_i32_254 = arith.constant 2 : i32
      %c2_i32_255 = arith.constant 2 : i32
      %c0_i32_256 = arith.constant 0 : i32
      %c0_i32_257 = arith.constant 0 : i32
      %302 = tpu.memref_slice %arg2[%301, %c0_i32_257] : memref<32x128xf32, #tpu.memory_space<any>> -> memref<1x128xf32, #tpu.memory_space<any>>
      %303 = tpu.memref_squeeze %302 : memref<1x128xf32, #tpu.memory_space<any>> -> memref<128xf32, #tpu.memory_space<any>>
      %c0_i32_258 = arith.constant 0 : i32
      %304 = tpu.memref_slice %arg4[%c0_i32_253, %c2_i32_254, %c2_i32_255, %c0_i32_258] : memref<2x4x8x128xf32, #tpu.memory_space<vmem>> -> memref<1x1x1x128xf32, #tpu.memory_space<vmem>>
      %305 = tpu.memref_squeeze %304 : memref<1x1x1x128xf32, #tpu.memory_space<vmem>> -> memref<128xf32, #tpu.memory_space<vmem>>
      %306 = tpu.memref_slice %arg5[%c0_i32_256] : memref<2x!tpu.dma_semaphore, #tpu.memory_space<semaphore_mem>> -> memref<1x!tpu.dma_semaphore, #tpu.memory_space<semaphore_mem>>
      %307 = tpu.memref_squeeze %306 : memref<1x!tpu.dma_semaphore, #tpu.memory_space<semaphore_mem>> -> memref<!tpu.dma_semaphore, #tpu.memory_space<semaphore_mem>>
      tpu.enqueue_dma source(%303 : memref<128xf32, #tpu.memory_space<any>>) target(%305 : memref<128xf32, #tpu.memory_space<vmem>>) target_semaphore(%307 : memref<!tpu.dma_semaphore, #tpu.memory_space<semaphore_mem>>)
      %c11 = arith.constant 11 : index
      %308 = memref.load %arg1[%c11] : memref<64xi32, #tpu.memory_space<smem>>
      %c0_i32_259 = arith.constant 0 : i32
      %c3_i32_260 = arith.constant 3 : i32
      %c2_i32_261 = arith.constant 2 : i32
      %c0_i32_262 = arith.constant 0 : i32
      %c0_i32_263 = arith.constant 0 : i32
      %309 = tpu.memref_slice %arg2[%308, %c0_i32_263] : memref<32x128xf32, #tpu.memory_space<any>> -> memref<1x128xf32, #tpu.memory_space<any>>
      %310 = tpu.memref_squeeze %309 : memref<1x128xf32, #tpu.memory_space<any>> -> memref<128xf32, #tpu.memory_space<any>>
      %c0_i32_264 = arith.constant 0 : i32
      %311 = tpu.memref_slice %arg4[%c0_i32_259, %c3_i32_260, %c2_i32_261, %c0_i32_264] : memref<2x4x8x128xf32, #tpu.memory_space<vmem>> -> memref<1x1x1x128xf32, #tpu.memory_space<vmem>>
      %312 = tpu.memref_squeeze %311 : memref<1x1x1x128xf32, #tpu.memory_space<vmem>> -> memref<128xf32, #tpu.memory_space<vmem>>
      %313 = tpu.memref_slice %arg5[%c0_i32_262] : memref<2x!tpu.dma_semaphore, #tpu.memory_space<semaphore_mem>> -> memref<1x!tpu.dma_semaphore, #tpu.memory_space<semaphore_mem>>
      %314 = tpu.memref_squeeze %313 : memref<1x!tpu.dma_semaphore, #tpu.memory_space<semaphore_mem>> -> memref<!tpu.dma_semaphore, #tpu.memory_space<semaphore_mem>>
      tpu.enqueue_dma source(%310 : memref<128xf32, #tpu.memory_space<any>>) target(%312 : memref<128xf32, #tpu.memory_space<vmem>>) target_semaphore(%314 : memref<!tpu.dma_semaphore, #tpu.memory_space<semaphore_mem>>)
      %c12 = arith.constant 12 : index
      %315 = memref.load %arg1[%c12] : memref<64xi32, #tpu.memory_space<smem>>
      %c0_i32_265 = arith.constant 0 : i32
      %c0_i32_266 = arith.constant 0 : i32
      %c3_i32_267 = arith.constant 3 : i32
      %c0_i32_268 = arith.constant 0 : i32
      %c0_i32_269 = arith.constant 0 : i32
      %316 = tpu.memref_slice %arg2[%315, %c0_i32_269] : memref<32x128xf32, #tpu.memory_space<any>> -> memref<1x128xf32, #tpu.memory_space<any>>
      %317 = tpu.memref_squeeze %316 : memref<1x128xf32, #tpu.memory_space<any>> -> memref<128xf32, #tpu.memory_space<any>>
      %c0_i32_270 = arith.constant 0 : i32
      %318 = tpu.memref_slice %arg4[%c0_i32_265, %c0_i32_266, %c3_i32_267, %c0_i32_270] : memref<2x4x8x128xf32, #tpu.memory_space<vmem>> -> memref<1x1x1x128xf32, #tpu.memory_space<vmem>>
      %319 = tpu.memref_squeeze %318 : memref<1x1x1x128xf32, #tpu.memory_space<vmem>> -> memref<128xf32, #tpu.memory_space<vmem>>
      %320 = tpu.memref_slice %arg5[%c0_i32_268] : memref<2x!tpu.dma_semaphore, #tpu.memory_space<semaphore_mem>> -> memref<1x!tpu.dma_semaphore, #tpu.memory_space<semaphore_mem>>
      %321 = tpu.memref_squeeze %320 : memref<1x!tpu.dma_semaphore, #tpu.memory_space<semaphore_mem>> -> memref<!tpu.dma_semaphore, #tpu.memory_space<semaphore_mem>>
      tpu.enqueue_dma source(%317 : memref<128xf32, #tpu.memory_space<any>>) target(%319 : memref<128xf32, #tpu.memory_space<vmem>>) target_semaphore(%321 : memref<!tpu.dma_semaphore, #tpu.memory_space<semaphore_mem>>)
      %c13 = arith.constant 13 : index
      %322 = memref.load %arg1[%c13] : memref<64xi32, #tpu.memory_space<smem>>
      %c0_i32_271 = arith.constant 0 : i32
      %c1_i32_272 = arith.constant 1 : i32
      %c3_i32_273 = arith.constant 3 : i32
      %c0_i32_274 = arith.constant 0 : i32
      %c0_i32_275 = arith.constant 0 : i32
      %323 = tpu.memref_slice %arg2[%322, %c0_i32_275] : memref<32x128xf32, #tpu.memory_space<any>> -> memref<1x128xf32, #tpu.memory_space<any>>
      %324 = tpu.memref_squeeze %323 : memref<1x128xf32, #tpu.memory_space<any>> -> memref<128xf32, #tpu.memory_space<any>>
      %c0_i32_276 = arith.constant 0 : i32
      %325 = tpu.memref_slice %arg4[%c0_i32_271, %c1_i32_272, %c3_i32_273, %c0_i32_276] : memref<2x4x8x128xf32, #tpu.memory_space<vmem>> -> memref<1x1x1x128xf32, #tpu.memory_space<vmem>>
      %326 = tpu.memref_squeeze %325 : memref<1x1x1x128xf32, #tpu.memory_space<vmem>> -> memref<128xf32, #tpu.memory_space<vmem>>
      %327 = tpu.memref_slice %arg5[%c0_i32_274] : memref<2x!tpu.dma_semaphore, #tpu.memory_space<semaphore_mem>> -> memref<1x!tpu.dma_semaphore, #tpu.memory_space<semaphore_mem>>
      %328 = tpu.memref_squeeze %327 : memref<1x!tpu.dma_semaphore, #tpu.memory_space<semaphore_mem>> -> memref<!tpu.dma_semaphore, #tpu.memory_space<semaphore_mem>>
      tpu.enqueue_dma source(%324 : memref<128xf32, #tpu.memory_space<any>>) target(%326 : memref<128xf32, #tpu.memory_space<vmem>>) target_semaphore(%328 : memref<!tpu.dma_semaphore, #tpu.memory_space<semaphore_mem>>)
      %c14 = arith.constant 14 : index
      %329 = memref.load %arg1[%c14] : memref<64xi32, #tpu.memory_space<smem>>
      %c0_i32_277 = arith.constant 0 : i32
      %c2_i32_278 = arith.constant 2 : i32
      %c3_i32_279 = arith.constant 3 : i32
      %c0_i32_280 = arith.constant 0 : i32
      %c0_i32_281 = arith.constant 0 : i32
      %330 = tpu.memref_slice %arg2[%329, %c0_i32_281] : memref<32x128xf32, #tpu.memory_space<any>> -> memref<1x128xf32, #tpu.memory_space<any>>
      %331 = tpu.memref_squeeze %330 : memref<1x128xf32, #tpu.memory_space<any>> -> memref<128xf32, #tpu.memory_space<any>>
      %c0_i32_282 = arith.constant 0 : i32
      %332 = tpu.memref_slice %arg4[%c0_i32_277, %c2_i32_278, %c3_i32_279, %c0_i32_282] : memref<2x4x8x128xf32, #tpu.memory_space<vmem>> -> memref<1x1x1x128xf32, #tpu.memory_space<vmem>>
      %333 = tpu.memref_squeeze %332 : memref<1x1x1x128xf32, #tpu.memory_space<vmem>> -> memref<128xf32, #tpu.memory_space<vmem>>
      %334 = tpu.memref_slice %arg5[%c0_i32_280] : memref<2x!tpu.dma_semaphore, #tpu.memory_space<semaphore_mem>> -> memref<1x!tpu.dma_semaphore, #tpu.memory_space<semaphore_mem>>
      %335 = tpu.memref_squeeze %334 : memref<1x!tpu.dma_semaphore, #tpu.memory_space<semaphore_mem>> -> memref<!tpu.dma_semaphore, #tpu.memory_space<semaphore_mem>>
      tpu.enqueue_dma source(%331 : memref<128xf32, #tpu.memory_space<any>>) target(%333 : memref<128xf32, #tpu.memory_space<vmem>>) target_semaphore(%335 : memref<!tpu.dma_semaphore, #tpu.memory_space<semaphore_mem>>)
      %c15 = arith.constant 15 : index
      %336 = memref.load %arg1[%c15] : memref<64xi32, #tpu.memory_space<smem>>
      %c0_i32_283 = arith.constant 0 : i32
      %c3_i32_284 = arith.constant 3 : i32
      %c3_i32_285 = arith.constant 3 : i32
      %c0_i32_286 = arith.constant 0 : i32
      %c0_i32_287 = arith.constant 0 : i32
      %337 = tpu.memref_slice %arg2[%336, %c0_i32_287] : memref<32x128xf32, #tpu.memory_space<any>> -> memref<1x128xf32, #tpu.memory_space<any>>
      %338 = tpu.memref_squeeze %337 : memref<1x128xf32, #tpu.memory_space<any>> -> memref<128xf32, #tpu.memory_space<any>>
      %c0_i32_288 = arith.constant 0 : i32
      %339 = tpu.memref_slice %arg4[%c0_i32_283, %c3_i32_284, %c3_i32_285, %c0_i32_288] : memref<2x4x8x128xf32, #tpu.memory_space<vmem>> -> memref<1x1x1x128xf32, #tpu.memory_space<vmem>>
      %340 = tpu.memref_squeeze %339 : memref<1x1x1x128xf32, #tpu.memory_space<vmem>> -> memref<128xf32, #tpu.memory_space<vmem>>
      %341 = tpu.memref_slice %arg5[%c0_i32_286] : memref<2x!tpu.dma_semaphore, #tpu.memory_space<semaphore_mem>> -> memref<1x!tpu.dma_semaphore, #tpu.memory_space<semaphore_mem>>
      %342 = tpu.memref_squeeze %341 : memref<1x!tpu.dma_semaphore, #tpu.memory_space<semaphore_mem>> -> memref<!tpu.dma_semaphore, #tpu.memory_space<semaphore_mem>>
      tpu.enqueue_dma source(%338 : memref<128xf32, #tpu.memory_space<any>>) target(%340 : memref<128xf32, #tpu.memory_space<vmem>>) target_semaphore(%342 : memref<!tpu.dma_semaphore, #tpu.memory_space<semaphore_mem>>)
      %c16 = arith.constant 16 : index
      %343 = memref.load %arg1[%c16] : memref<64xi32, #tpu.memory_space<smem>>
      %c0_i32_289 = arith.constant 0 : i32
      %c0_i32_290 = arith.constant 0 : i32
      %c4_i32 = arith.constant 4 : i32
      %c0_i32_291 = arith.constant 0 : i32
      %c0_i32_292 = arith.constant 0 : i32
      %344 = tpu.memref_slice %arg2[%343, %c0_i32_292] : memref<32x128xf32, #tpu.memory_space<any>> -> memref<1x128xf32, #tpu.memory_space<any>>
      %345 = tpu.memref_squeeze %344 : memref<1x128xf32, #tpu.memory_space<any>> -> memref<128xf32, #tpu.memory_space<any>>
      %c0_i32_293 = arith.constant 0 : i32
      %346 = tpu.memref_slice %arg4[%c0_i32_289, %c0_i32_290, %c4_i32, %c0_i32_293] : memref<2x4x8x128xf32, #tpu.memory_space<vmem>> -> memref<1x1x1x128xf32, #tpu.memory_space<vmem>>
      %347 = tpu.memref_squeeze %346 : memref<1x1x1x128xf32, #tpu.memory_space<vmem>> -> memref<128xf32, #tpu.memory_space<vmem>>
      %348 = tpu.memref_slice %arg5[%c0_i32_291] : memref<2x!tpu.dma_semaphore, #tpu.memory_space<semaphore_mem>> -> memref<1x!tpu.dma_semaphore, #tpu.memory_space<semaphore_mem>>
      %349 = tpu.memref_squeeze %348 : memref<1x!tpu.dma_semaphore, #tpu.memory_space<semaphore_mem>> -> memref<!tpu.dma_semaphore, #tpu.memory_space<semaphore_mem>>
      tpu.enqueue_dma source(%345 : memref<128xf32, #tpu.memory_space<any>>) target(%347 : memref<128xf32, #tpu.memory_space<vmem>>) target_semaphore(%349 : memref<!tpu.dma_semaphore, #tpu.memory_space<semaphore_mem>>)
      %c17 = arith.constant 17 : index
      %350 = memref.load %arg1[%c17] : memref<64xi32, #tpu.memory_space<smem>>
      %c0_i32_294 = arith.constant 0 : i32
      %c1_i32_295 = arith.constant 1 : i32
      %c4_i32_296 = arith.constant 4 : i32
      %c0_i32_297 = arith.constant 0 : i32
      %c0_i32_298 = arith.constant 0 : i32
      %351 = tpu.memref_slice %arg2[%350, %c0_i32_298] : memref<32x128xf32, #tpu.memory_space<any>> -> memref<1x128xf32, #tpu.memory_space<any>>
      %352 = tpu.memref_squeeze %351 : memref<1x128xf32, #tpu.memory_space<any>> -> memref<128xf32, #tpu.memory_space<any>>
      %c0_i32_299 = arith.constant 0 : i32
      %353 = tpu.memref_slice %arg4[%c0_i32_294, %c1_i32_295, %c4_i32_296, %c0_i32_299] : memref<2x4x8x128xf32, #tpu.memory_space<vmem>> -> memref<1x1x1x128xf32, #tpu.memory_space<vmem>>
      %354 = tpu.memref_squeeze %353 : memref<1x1x1x128xf32, #tpu.memory_space<vmem>> -> memref<128xf32, #tpu.memory_space<vmem>>
      %355 = tpu.memref_slice %arg5[%c0_i32_297] : memref<2x!tpu.dma_semaphore, #tpu.memory_space<semaphore_mem>> -> memref<1x!tpu.dma_semaphore, #tpu.memory_space<semaphore_mem>>
      %356 = tpu.memref_squeeze %355 : memref<1x!tpu.dma_semaphore, #tpu.memory_space<semaphore_mem>> -> memref<!tpu.dma_semaphore, #tpu.memory_space<semaphore_mem>>
      tpu.enqueue_dma source(%352 : memref<128xf32, #tpu.memory_space<any>>) target(%354 : memref<128xf32, #tpu.memory_space<vmem>>) target_semaphore(%356 : memref<!tpu.dma_semaphore, #tpu.memory_space<semaphore_mem>>)
      %c18 = arith.constant 18 : index
      %357 = memref.load %arg1[%c18] : memref<64xi32, #tpu.memory_space<smem>>
      %c0_i32_300 = arith.constant 0 : i32
      %c2_i32_301 = arith.constant 2 : i32
      %c4_i32_302 = arith.constant 4 : i32
      %c0_i32_303 = arith.constant 0 : i32
      %c0_i32_304 = arith.constant 0 : i32
      %358 = tpu.memref_slice %arg2[%357, %c0_i32_304] : memref<32x128xf32, #tpu.memory_space<any>> -> memref<1x128xf32, #tpu.memory_space<any>>
      %359 = tpu.memref_squeeze %358 : memref<1x128xf32, #tpu.memory_space<any>> -> memref<128xf32, #tpu.memory_space<any>>
      %c0_i32_305 = arith.constant 0 : i32
      %360 = tpu.memref_slice %arg4[%c0_i32_300, %c2_i32_301, %c4_i32_302, %c0_i32_305] : memref<2x4x8x128xf32, #tpu.memory_space<vmem>> -> memref<1x1x1x128xf32, #tpu.memory_space<vmem>>
      %361 = tpu.memref_squeeze %360 : memref<1x1x1x128xf32, #tpu.memory_space<vmem>> -> memref<128xf32, #tpu.memory_space<vmem>>
      %362 = tpu.memref_slice %arg5[%c0_i32_303] : memref<2x!tpu.dma_semaphore, #tpu.memory_space<semaphore_mem>> -> memref<1x!tpu.dma_semaphore, #tpu.memory_space<semaphore_mem>>
      %363 = tpu.memref_squeeze %362 : memref<1x!tpu.dma_semaphore, #tpu.memory_space<semaphore_mem>> -> memref<!tpu.dma_semaphore, #tpu.memory_space<semaphore_mem>>
      tpu.enqueue_dma source(%359 : memref<128xf32, #tpu.memory_space<any>>) target(%361 : memref<128xf32, #tpu.memory_space<vmem>>) target_semaphore(%363 : memref<!tpu.dma_semaphore, #tpu.memory_space<semaphore_mem>>)
      %c19 = arith.constant 19 : index
      %364 = memref.load %arg1[%c19] : memref<64xi32, #tpu.memory_space<smem>>
      %c0_i32_306 = arith.constant 0 : i32
      %c3_i32_307 = arith.constant 3 : i32
      %c4_i32_308 = arith.constant 4 : i32
      %c0_i32_309 = arith.constant 0 : i32
      %c0_i32_310 = arith.constant 0 : i32
      %365 = tpu.memref_slice %arg2[%364, %c0_i32_310] : memref<32x128xf32, #tpu.memory_space<any>> -> memref<1x128xf32, #tpu.memory_space<any>>
      %366 = tpu.memref_squeeze %365 : memref<1x128xf32, #tpu.memory_space<any>> -> memref<128xf32, #tpu.memory_space<any>>
      %c0_i32_311 = arith.constant 0 : i32
      %367 = tpu.memref_slice %arg4[%c0_i32_306, %c3_i32_307, %c4_i32_308, %c0_i32_311] : memref<2x4x8x128xf32, #tpu.memory_space<vmem>> -> memref<1x1x1x128xf32, #tpu.memory_space<vmem>>
      %368 = tpu.memref_squeeze %367 : memref<1x1x1x128xf32, #tpu.memory_space<vmem>> -> memref<128xf32, #tpu.memory_space<vmem>>
      %369 = tpu.memref_slice %arg5[%c0_i32_309] : memref<2x!tpu.dma_semaphore, #tpu.memory_space<semaphore_mem>> -> memref<1x!tpu.dma_semaphore, #tpu.memory_space<semaphore_mem>>
      %370 = tpu.memref_squeeze %369 : memref<1x!tpu.dma_semaphore, #tpu.memory_space<semaphore_mem>> -> memref<!tpu.dma_semaphore, #tpu.memory_space<semaphore_mem>>
      tpu.enqueue_dma source(%366 : memref<128xf32, #tpu.memory_space<any>>) target(%368 : memref<128xf32, #tpu.memory_space<vmem>>) target_semaphore(%370 : memref<!tpu.dma_semaphore, #tpu.memory_space<semaphore_mem>>)
      %c20 = arith.constant 20 : index
      %371 = memref.load %arg1[%c20] : memref<64xi32, #tpu.memory_space<smem>>
      %c0_i32_312 = arith.constant 0 : i32
      %c0_i32_313 = arith.constant 0 : i32
      %c5_i32 = arith.constant 5 : i32
      %c0_i32_314 = arith.constant 0 : i32
      %c0_i32_315 = arith.constant 0 : i32
      %372 = tpu.memref_slice %arg2[%371, %c0_i32_315] : memref<32x128xf32, #tpu.memory_space<any>> -> memref<1x128xf32, #tpu.memory_space<any>>
      %373 = tpu.memref_squeeze %372 : memref<1x128xf32, #tpu.memory_space<any>> -> memref<128xf32, #tpu.memory_space<any>>
      %c0_i32_316 = arith.constant 0 : i32
      %374 = tpu.memref_slice %arg4[%c0_i32_312, %c0_i32_313, %c5_i32, %c0_i32_316] : memref<2x4x8x128xf32, #tpu.memory_space<vmem>> -> memref<1x1x1x128xf32, #tpu.memory_space<vmem>>
      %375 = tpu.memref_squeeze %374 : memref<1x1x1x128xf32, #tpu.memory_space<vmem>> -> memref<128xf32, #tpu.memory_space<vmem>>
      %376 = tpu.memref_slice %arg5[%c0_i32_314] : memref<2x!tpu.dma_semaphore, #tpu.memory_space<semaphore_mem>> -> memref<1x!tpu.dma_semaphore, #tpu.memory_space<semaphore_mem>>
      %377 = tpu.memref_squeeze %376 : memref<1x!tpu.dma_semaphore, #tpu.memory_space<semaphore_mem>> -> memref<!tpu.dma_semaphore, #tpu.memory_space<semaphore_mem>>
      tpu.enqueue_dma source(%373 : memref<128xf32, #tpu.memory_space<any>>) target(%375 : memref<128xf32, #tpu.memory_space<vmem>>) target_semaphore(%377 : memref<!tpu.dma_semaphore, #tpu.memory_space<semaphore_mem>>)
      %c21 = arith.constant 21 : index
      %378 = memref.load %arg1[%c21] : memref<64xi32, #tpu.memory_space<smem>>
      %c0_i32_317 = arith.constant 0 : i32
      %c1_i32_318 = arith.constant 1 : i32
      %c5_i32_319 = arith.constant 5 : i32
      %c0_i32_320 = arith.constant 0 : i32
      %c0_i32_321 = arith.constant 0 : i32
      %379 = tpu.memref_slice %arg2[%378, %c0_i32_321] : memref<32x128xf32, #tpu.memory_space<any>> -> memref<1x128xf32, #tpu.memory_space<any>>
      %380 = tpu.memref_squeeze %379 : memref<1x128xf32, #tpu.memory_space<any>> -> memref<128xf32, #tpu.memory_space<any>>
      %c0_i32_322 = arith.constant 0 : i32
      %381 = tpu.memref_slice %arg4[%c0_i32_317, %c1_i32_318, %c5_i32_319, %c0_i32_322] : memref<2x4x8x128xf32, #tpu.memory_space<vmem>> -> memref<1x1x1x128xf32, #tpu.memory_space<vmem>>
      %382 = tpu.memref_squeeze %381 : memref<1x1x1x128xf32, #tpu.memory_space<vmem>> -> memref<128xf32, #tpu.memory_space<vmem>>
      %383 = tpu.memref_slice %arg5[%c0_i32_320] : memref<2x!tpu.dma_semaphore, #tpu.memory_space<semaphore_mem>> -> memref<1x!tpu.dma_semaphore, #tpu.memory_space<semaphore_mem>>
      %384 = tpu.memref_squeeze %383 : memref<1x!tpu.dma_semaphore, #tpu.memory_space<semaphore_mem>> -> memref<!tpu.dma_semaphore, #tpu.memory_space<semaphore_mem>>
      tpu.enqueue_dma source(%380 : memref<128xf32, #tpu.memory_space<any>>) target(%382 : memref<128xf32, #tpu.memory_space<vmem>>) target_semaphore(%384 : memref<!tpu.dma_semaphore, #tpu.memory_space<semaphore_mem>>)
      %c22 = arith.constant 22 : index
      %385 = memref.load %arg1[%c22] : memref<64xi32, #tpu.memory_space<smem>>
      %c0_i32_323 = arith.constant 0 : i32
      %c2_i32_324 = arith.constant 2 : i32
      %c5_i32_325 = arith.constant 5 : i32
      %c0_i32_326 = arith.constant 0 : i32
      %c0_i32_327 = arith.constant 0 : i32
      %386 = tpu.memref_slice %arg2[%385, %c0_i32_327] : memref<32x128xf32, #tpu.memory_space<any>> -> memref<1x128xf32, #tpu.memory_space<any>>
      %387 = tpu.memref_squeeze %386 : memref<1x128xf32, #tpu.memory_space<any>> -> memref<128xf32, #tpu.memory_space<any>>
      %c0_i32_328 = arith.constant 0 : i32
      %388 = tpu.memref_slice %arg4[%c0_i32_323, %c2_i32_324, %c5_i32_325, %c0_i32_328] : memref<2x4x8x128xf32, #tpu.memory_space<vmem>> -> memref<1x1x1x128xf32, #tpu.memory_space<vmem>>
      %389 = tpu.memref_squeeze %388 : memref<1x1x1x128xf32, #tpu.memory_space<vmem>> -> memref<128xf32, #tpu.memory_space<vmem>>
      %390 = tpu.memref_slice %arg5[%c0_i32_326] : memref<2x!tpu.dma_semaphore, #tpu.memory_space<semaphore_mem>> -> memref<1x!tpu.dma_semaphore, #tpu.memory_space<semaphore_mem>>
      %391 = tpu.memref_squeeze %390 : memref<1x!tpu.dma_semaphore, #tpu.memory_space<semaphore_mem>> -> memref<!tpu.dma_semaphore, #tpu.memory_space<semaphore_mem>>
      tpu.enqueue_dma source(%387 : memref<128xf32, #tpu.memory_space<any>>) target(%389 : memref<128xf32, #tpu.memory_space<vmem>>) target_semaphore(%391 : memref<!tpu.dma_semaphore, #tpu.memory_space<semaphore_mem>>)
      %c23 = arith.constant 23 : index
      %392 = memref.load %arg1[%c23] : memref<64xi32, #tpu.memory_space<smem>>
      %c0_i32_329 = arith.constant 0 : i32
      %c3_i32_330 = arith.constant 3 : i32
      %c5_i32_331 = arith.constant 5 : i32
      %c0_i32_332 = arith.constant 0 : i32
      %c0_i32_333 = arith.constant 0 : i32
      %393 = tpu.memref_slice %arg2[%392, %c0_i32_333] : memref<32x128xf32, #tpu.memory_space<any>> -> memref<1x128xf32, #tpu.memory_space<any>>
      %394 = tpu.memref_squeeze %393 : memref<1x128xf32, #tpu.memory_space<any>> -> memref<128xf32, #tpu.memory_space<any>>
      %c0_i32_334 = arith.constant 0 : i32
      %395 = tpu.memref_slice %arg4[%c0_i32_329, %c3_i32_330, %c5_i32_331, %c0_i32_334] : memref<2x4x8x128xf32, #tpu.memory_space<vmem>> -> memref<1x1x1x128xf32, #tpu.memory_space<vmem>>
      %396 = tpu.memref_squeeze %395 : memref<1x1x1x128xf32, #tpu.memory_space<vmem>> -> memref<128xf32, #tpu.memory_space<vmem>>
      %397 = tpu.memref_slice %arg5[%c0_i32_332] : memref<2x!tpu.dma_semaphore, #tpu.memory_space<semaphore_mem>> -> memref<1x!tpu.dma_semaphore, #tpu.memory_space<semaphore_mem>>
      %398 = tpu.memref_squeeze %397 : memref<1x!tpu.dma_semaphore, #tpu.memory_space<semaphore_mem>> -> memref<!tpu.dma_semaphore, #tpu.memory_space<semaphore_mem>>
      tpu.enqueue_dma source(%394 : memref<128xf32, #tpu.memory_space<any>>) target(%396 : memref<128xf32, #tpu.memory_space<vmem>>) target_semaphore(%398 : memref<!tpu.dma_semaphore, #tpu.memory_space<semaphore_mem>>)
      %c24 = arith.constant 24 : index
      %399 = memref.load %arg1[%c24] : memref<64xi32, #tpu.memory_space<smem>>
      %c0_i32_335 = arith.constant 0 : i32
      %c0_i32_336 = arith.constant 0 : i32
      %c6_i32 = arith.constant 6 : i32
      %c0_i32_337 = arith.constant 0 : i32
      %c0_i32_338 = arith.constant 0 : i32
      %400 = tpu.memref_slice %arg2[%399, %c0_i32_338] : memref<32x128xf32, #tpu.memory_space<any>> -> memref<1x128xf32, #tpu.memory_space<any>>
      %401 = tpu.memref_squeeze %400 : memref<1x128xf32, #tpu.memory_space<any>> -> memref<128xf32, #tpu.memory_space<any>>
      %c0_i32_339 = arith.constant 0 : i32
      %402 = tpu.memref_slice %arg4[%c0_i32_335, %c0_i32_336, %c6_i32, %c0_i32_339] : memref<2x4x8x128xf32, #tpu.memory_space<vmem>> -> memref<1x1x1x128xf32, #tpu.memory_space<vmem>>
      %403 = tpu.memref_squeeze %402 : memref<1x1x1x128xf32, #tpu.memory_space<vmem>> -> memref<128xf32, #tpu.memory_space<vmem>>
      %404 = tpu.memref_slice %arg5[%c0_i32_337] : memref<2x!tpu.dma_semaphore, #tpu.memory_space<semaphore_mem>> -> memref<1x!tpu.dma_semaphore, #tpu.memory_space<semaphore_mem>>
      %405 = tpu.memref_squeeze %404 : memref<1x!tpu.dma_semaphore, #tpu.memory_space<semaphore_mem>> -> memref<!tpu.dma_semaphore, #tpu.memory_space<semaphore_mem>>
      tpu.enqueue_dma source(%401 : memref<128xf32, #tpu.memory_space<any>>) target(%403 : memref<128xf32, #tpu.memory_space<vmem>>) target_semaphore(%405 : memref<!tpu.dma_semaphore, #tpu.memory_space<semaphore_mem>>)
      %c25 = arith.constant 25 : index
      %406 = memref.load %arg1[%c25] : memref<64xi32, #tpu.memory_space<smem>>
      %c0_i32_340 = arith.constant 0 : i32
      %c1_i32_341 = arith.constant 1 : i32
      %c6_i32_342 = arith.constant 6 : i32
      %c0_i32_343 = arith.constant 0 : i32
      %c0_i32_344 = arith.constant 0 : i32
      %407 = tpu.memref_slice %arg2[%406, %c0_i32_344] : memref<32x128xf32, #tpu.memory_space<any>> -> memref<1x128xf32, #tpu.memory_space<any>>
      %408 = tpu.memref_squeeze %407 : memref<1x128xf32, #tpu.memory_space<any>> -> memref<128xf32, #tpu.memory_space<any>>
      %c0_i32_345 = arith.constant 0 : i32
      %409 = tpu.memref_slice %arg4[%c0_i32_340, %c1_i32_341, %c6_i32_342, %c0_i32_345] : memref<2x4x8x128xf32, #tpu.memory_space<vmem>> -> memref<1x1x1x128xf32, #tpu.memory_space<vmem>>
      %410 = tpu.memref_squeeze %409 : memref<1x1x1x128xf32, #tpu.memory_space<vmem>> -> memref<128xf32, #tpu.memory_space<vmem>>
      %411 = tpu.memref_slice %arg5[%c0_i32_343] : memref<2x!tpu.dma_semaphore, #tpu.memory_space<semaphore_mem>> -> memref<1x!tpu.dma_semaphore, #tpu.memory_space<semaphore_mem>>
      %412 = tpu.memref_squeeze %411 : memref<1x!tpu.dma_semaphore, #tpu.memory_space<semaphore_mem>> -> memref<!tpu.dma_semaphore, #tpu.memory_space<semaphore_mem>>
      tpu.enqueue_dma source(%408 : memref<128xf32, #tpu.memory_space<any>>) target(%410 : memref<128xf32, #tpu.memory_space<vmem>>) target_semaphore(%412 : memref<!tpu.dma_semaphore, #tpu.memory_space<semaphore_mem>>)
      %c26 = arith.constant 26 : index
      %413 = memref.load %arg1[%c26] : memref<64xi32, #tpu.memory_space<smem>>
      %c0_i32_346 = arith.constant 0 : i32
      %c2_i32_347 = arith.constant 2 : i32
      %c6_i32_348 = arith.constant 6 : i32
      %c0_i32_349 = arith.constant 0 : i32
      %c0_i32_350 = arith.constant 0 : i32
      %414 = tpu.memref_slice %arg2[%413, %c0_i32_350] : memref<32x128xf32, #tpu.memory_space<any>> -> memref<1x128xf32, #tpu.memory_space<any>>
      %415 = tpu.memref_squeeze %414 : memref<1x128xf32, #tpu.memory_space<any>> -> memref<128xf32, #tpu.memory_space<any>>
      %c0_i32_351 = arith.constant 0 : i32
      %416 = tpu.memref_slice %arg4[%c0_i32_346, %c2_i32_347, %c6_i32_348, %c0_i32_351] : memref<2x4x8x128xf32, #tpu.memory_space<vmem>> -> memref<1x1x1x128xf32, #tpu.memory_space<vmem>>
      %417 = tpu.memref_squeeze %416 : memref<1x1x1x128xf32, #tpu.memory_space<vmem>> -> memref<128xf32, #tpu.memory_space<vmem>>
      %418 = tpu.memref_slice %arg5[%c0_i32_349] : memref<2x!tpu.dma_semaphore, #tpu.memory_space<semaphore_mem>> -> memref<1x!tpu.dma_semaphore, #tpu.memory_space<semaphore_mem>>
      %419 = tpu.memref_squeeze %418 : memref<1x!tpu.dma_semaphore, #tpu.memory_space<semaphore_mem>> -> memref<!tpu.dma_semaphore, #tpu.memory_space<semaphore_mem>>
      tpu.enqueue_dma source(%415 : memref<128xf32, #tpu.memory_space<any>>) target(%417 : memref<128xf32, #tpu.memory_space<vmem>>) target_semaphore(%419 : memref<!tpu.dma_semaphore, #tpu.memory_space<semaphore_mem>>)
      %c27 = arith.constant 27 : index
      %420 = memref.load %arg1[%c27] : memref<64xi32, #tpu.memory_space<smem>>
      %c0_i32_352 = arith.constant 0 : i32
      %c3_i32_353 = arith.constant 3 : i32
      %c6_i32_354 = arith.constant 6 : i32
      %c0_i32_355 = arith.constant 0 : i32
      %c0_i32_356 = arith.constant 0 : i32
      %421 = tpu.memref_slice %arg2[%420, %c0_i32_356] : memref<32x128xf32, #tpu.memory_space<any>> -> memref<1x128xf32, #tpu.memory_space<any>>
      %422 = tpu.memref_squeeze %421 : memref<1x128xf32, #tpu.memory_space<any>> -> memref<128xf32, #tpu.memory_space<any>>
      %c0_i32_357 = arith.constant 0 : i32
      %423 = tpu.memref_slice %arg4[%c0_i32_352, %c3_i32_353, %c6_i32_354, %c0_i32_357] : memref<2x4x8x128xf32, #tpu.memory_space<vmem>> -> memref<1x1x1x128xf32, #tpu.memory_space<vmem>>
      %424 = tpu.memref_squeeze %423 : memref<1x1x1x128xf32, #tpu.memory_space<vmem>> -> memref<128xf32, #tpu.memory_space<vmem>>
      %425 = tpu.memref_slice %arg5[%c0_i32_355] : memref<2x!tpu.dma_semaphore, #tpu.memory_space<semaphore_mem>> -> memref<1x!tpu.dma_semaphore, #tpu.memory_space<semaphore_mem>>
      %426 = tpu.memref_squeeze %425 : memref<1x!tpu.dma_semaphore, #tpu.memory_space<semaphore_mem>> -> memref<!tpu.dma_semaphore, #tpu.memory_space<semaphore_mem>>
      tpu.enqueue_dma source(%422 : memref<128xf32, #tpu.memory_space<any>>) target(%424 : memref<128xf32, #tpu.memory_space<vmem>>) target_semaphore(%426 : memref<!tpu.dma_semaphore, #tpu.memory_space<semaphore_mem>>)
      %c28 = arith.constant 28 : index
      %427 = memref.load %arg1[%c28] : memref<64xi32, #tpu.memory_space<smem>>
      %c0_i32_358 = arith.constant 0 : i32
      %c0_i32_359 = arith.constant 0 : i32
      %c7_i32 = arith.constant 7 : i32
      %c0_i32_360 = arith.constant 0 : i32
      %c0_i32_361 = arith.constant 0 : i32
      %428 = tpu.memref_slice %arg2[%427, %c0_i32_361] : memref<32x128xf32, #tpu.memory_space<any>> -> memref<1x128xf32, #tpu.memory_space<any>>
      %429 = tpu.memref_squeeze %428 : memref<1x128xf32, #tpu.memory_space<any>> -> memref<128xf32, #tpu.memory_space<any>>
      %c0_i32_362 = arith.constant 0 : i32
      %430 = tpu.memref_slice %arg4[%c0_i32_358, %c0_i32_359, %c7_i32, %c0_i32_362] : memref<2x4x8x128xf32, #tpu.memory_space<vmem>> -> memref<1x1x1x128xf32, #tpu.memory_space<vmem>>
      %431 = tpu.memref_squeeze %430 : memref<1x1x1x128xf32, #tpu.memory_space<vmem>> -> memref<128xf32, #tpu.memory_space<vmem>>
      %432 = tpu.memref_slice %arg5[%c0_i32_360] : memref<2x!tpu.dma_semaphore, #tpu.memory_space<semaphore_mem>> -> memref<1x!tpu.dma_semaphore, #tpu.memory_space<semaphore_mem>>
      %433 = tpu.memref_squeeze %432 : memref<1x!tpu.dma_semaphore, #tpu.memory_space<semaphore_mem>> -> memref<!tpu.dma_semaphore, #tpu.memory_space<semaphore_mem>>
      tpu.enqueue_dma source(%429 : memref<128xf32, #tpu.memory_space<any>>) target(%431 : memref<128xf32, #tpu.memory_space<vmem>>) target_semaphore(%433 : memref<!tpu.dma_semaphore, #tpu.memory_space<semaphore_mem>>)
      %c29 = arith.constant 29 : index
      %434 = memref.load %arg1[%c29] : memref<64xi32, #tpu.memory_space<smem>>
      %c0_i32_363 = arith.constant 0 : i32
      %c1_i32_364 = arith.constant 1 : i32
      %c7_i32_365 = arith.constant 7 : i32
      %c0_i32_366 = arith.constant 0 : i32
      %c0_i32_367 = arith.constant 0 : i32
      %435 = tpu.memref_slice %arg2[%434, %c0_i32_367] : memref<32x128xf32, #tpu.memory_space<any>> -> memref<1x128xf32, #tpu.memory_space<any>>
      %436 = tpu.memref_squeeze %435 : memref<1x128xf32, #tpu.memory_space<any>> -> memref<128xf32, #tpu.memory_space<any>>
      %c0_i32_368 = arith.constant 0 : i32
      %437 = tpu.memref_slice %arg4[%c0_i32_363, %c1_i32_364, %c7_i32_365, %c0_i32_368] : memref<2x4x8x128xf32, #tpu.memory_space<vmem>> -> memref<1x1x1x128xf32, #tpu.memory_space<vmem>>
      %438 = tpu.memref_squeeze %437 : memref<1x1x1x128xf32, #tpu.memory_space<vmem>> -> memref<128xf32, #tpu.memory_space<vmem>>
      %439 = tpu.memref_slice %arg5[%c0_i32_366] : memref<2x!tpu.dma_semaphore, #tpu.memory_space<semaphore_mem>> -> memref<1x!tpu.dma_semaphore, #tpu.memory_space<semaphore_mem>>
      %440 = tpu.memref_squeeze %439 : memref<1x!tpu.dma_semaphore, #tpu.memory_space<semaphore_mem>> -> memref<!tpu.dma_semaphore, #tpu.memory_space<semaphore_mem>>
      tpu.enqueue_dma source(%436 : memref<128xf32, #tpu.memory_space<any>>) target(%438 : memref<128xf32, #tpu.memory_space<vmem>>) target_semaphore(%440 : memref<!tpu.dma_semaphore, #tpu.memory_space<semaphore_mem>>)
      %c30 = arith.constant 30 : index
      %441 = memref.load %arg1[%c30] : memref<64xi32, #tpu.memory_space<smem>>
      %c0_i32_369 = arith.constant 0 : i32
      %c2_i32_370 = arith.constant 2 : i32
      %c7_i32_371 = arith.constant 7 : i32
      %c0_i32_372 = arith.constant 0 : i32
      %c0_i32_373 = arith.constant 0 : i32
      %442 = tpu.memref_slice %arg2[%441, %c0_i32_373] : memref<32x128xf32, #tpu.memory_space<any>> -> memref<1x128xf32, #tpu.memory_space<any>>
      %443 = tpu.memref_squeeze %442 : memref<1x128xf32, #tpu.memory_space<any>> -> memref<128xf32, #tpu.memory_space<any>>
      %c0_i32_374 = arith.constant 0 : i32
      %444 = tpu.memref_slice %arg4[%c0_i32_369, %c2_i32_370, %c7_i32_371, %c0_i32_374] : memref<2x4x8x128xf32, #tpu.memory_space<vmem>> -> memref<1x1x1x128xf32, #tpu.memory_space<vmem>>
      %445 = tpu.memref_squeeze %444 : memref<1x1x1x128xf32, #tpu.memory_space<vmem>> -> memref<128xf32, #tpu.memory_space<vmem>>
      %446 = tpu.memref_slice %arg5[%c0_i32_372] : memref<2x!tpu.dma_semaphore, #tpu.memory_space<semaphore_mem>> -> memref<1x!tpu.dma_semaphore, #tpu.memory_space<semaphore_mem>>
      %447 = tpu.memref_squeeze %446 : memref<1x!tpu.dma_semaphore, #tpu.memory_space<semaphore_mem>> -> memref<!tpu.dma_semaphore, #tpu.memory_space<semaphore_mem>>
      tpu.enqueue_dma source(%443 : memref<128xf32, #tpu.memory_space<any>>) target(%445 : memref<128xf32, #tpu.memory_space<vmem>>) target_semaphore(%447 : memref<!tpu.dma_semaphore, #tpu.memory_space<semaphore_mem>>)
      %c31 = arith.constant 31 : index
      %448 = memref.load %arg1[%c31] : memref<64xi32, #tpu.memory_space<smem>>
      %c0_i32_375 = arith.constant 0 : i32
      %c3_i32_376 = arith.constant 3 : i32
      %c7_i32_377 = arith.constant 7 : i32
      %c0_i32_378 = arith.constant 0 : i32
      %c0_i32_379 = arith.constant 0 : i32
      %449 = tpu.memref_slice %arg2[%448, %c0_i32_379] : memref<32x128xf32, #tpu.memory_space<any>> -> memref<1x128xf32, #tpu.memory_space<any>>
      %450 = tpu.memref_squeeze %449 : memref<1x128xf32, #tpu.memory_space<any>> -> memref<128xf32, #tpu.memory_space<any>>
      %c0_i32_380 = arith.constant 0 : i32
      %451 = tpu.memref_slice %arg4[%c0_i32_375, %c3_i32_376, %c7_i32_377, %c0_i32_380] : memref<2x4x8x128xf32, #tpu.memory_space<vmem>> -> memref<1x1x1x128xf32, #tpu.memory_space<vmem>>
      %452 = tpu.memref_squeeze %451 : memref<1x1x1x128xf32, #tpu.memory_space<vmem>> -> memref<128xf32, #tpu.memory_space<vmem>>
      %453 = tpu.memref_slice %arg5[%c0_i32_378] : memref<2x!tpu.dma_semaphore, #tpu.memory_space<semaphore_mem>> -> memref<1x!tpu.dma_semaphore, #tpu.memory_space<semaphore_mem>>
      %454 = tpu.memref_squeeze %453 : memref<1x!tpu.dma_semaphore, #tpu.memory_space<semaphore_mem>> -> memref<!tpu.dma_semaphore, #tpu.memory_space<semaphore_mem>>
      tpu.enqueue_dma source(%450 : memref<128xf32, #tpu.memory_space<any>>) target(%452 : memref<128xf32, #tpu.memory_space<vmem>>) target_semaphore(%454 : memref<!tpu.dma_semaphore, #tpu.memory_space<semaphore_mem>>)
    } else {
    }
    %c1_i32 = arith.constant 1 : i32
    %3 = arith.addi %arg0, %c1_i32 : i32
    %c2_i32 = arith.constant 2 : i32
    %4 = arith.cmpi slt, %3, %c2_i32 : i32
    %5 = arith.extui %4 : i1 to i32
    %c0_i32_1 = arith.constant 0 : i32
    %6 = arith.cmpi ne, %5, %c0_i32_1 : i32
    scf.if %6 {
      %c1_i32_190 = arith.constant 1 : i32
      %231 = arith.addi %arg0, %c1_i32_190 : i32
      %c1_i32_191 = arith.constant 1 : i32
      %232 = arith.addi %arg0, %c1_i32_191 : i32
      %c2_i32_192 = arith.constant 2 : i32
      %c0_i32_193 = arith.constant 0 : i32
      %233 = arith.cmpi eq, %c2_i32_192, %c0_i32_193 : i32
      %c1_i32_194 = arith.constant 1 : i32
      %234 = arith.select %233, %c1_i32_194, %c2_i32_192 : i32
      %235 = arith.remsi %232, %234 : i32
      %c0_i32_195 = arith.constant 0 : i32
      %236 = arith.cmpi ne, %235, %c0_i32_195 : i32
      %c0_i32_196 = arith.constant 0 : i32
      %237 = arith.cmpi slt, %235, %c0_i32_196 : i32
      %c0_i32_197 = arith.constant 0 : i32
      %238 = arith.cmpi slt, %234, %c0_i32_197 : i32
      %239 = arith.xori %237, %238 : i1
      %240 = arith.andi %239, %236 : i1
      %241 = arith.addi %235, %234 : i32
      %242 = arith.select %240, %241, %235 : i32
      %c32_i32 = arith.constant 32 : i32
      %243 = arith.muli %231, %c32_i32 : i32
      %c0_i32_198 = arith.constant 0 : i32
      %244 = arith.addi %243, %c0_i32_198 : i32
      %c0_i32_199 = arith.constant 0 : i32
      %245 = arith.addi %244, %c0_i32_199 : i32
      %246 = arith.index_cast %245 : i32 to index
      %247 = memref.load %arg1[%246] : memref<64xi32, #tpu.memory_space<smem>>
      %c0_i32_200 = arith.constant 0 : i32
      %c0_i32_201 = arith.constant 0 : i32
      %c0_i32_202 = arith.constant 0 : i32
      %248 = tpu.memref_slice %arg2[%247, %c0_i32_202] : memref<32x128xf32, #tpu.memory_space<any>> -> memref<1x128xf32, #tpu.memory_space<any>>
      %249 = tpu.memref_squeeze %248 : memref<1x128xf32, #tpu.memory_space<any>> -> memref<128xf32, #tpu.memory_space<any>>
      %c0_i32_203 = arith.constant 0 : i32
      %250 = tpu.memref_slice %arg4[%242, %c0_i32_200, %c0_i32_201, %c0_i32_203] : memref<2x4x8x128xf32, #tpu.memory_space<vmem>> -> memref<1x1x1x128xf32, #tpu.memory_space<vmem>>
      %251 = tpu.memref_squeeze %250 : memref<1x1x1x128xf32, #tpu.memory_space<vmem>> -> memref<128xf32, #tpu.memory_space<vmem>>
      %252 = tpu.memref_slice %arg5[%242] : memref<2x!tpu.dma_semaphore, #tpu.memory_space<semaphore_mem>> -> memref<1x!tpu.dma_semaphore, #tpu.memory_space<semaphore_mem>>
      %253 = tpu.memref_squeeze %252 : memref<1x!tpu.dma_semaphore, #tpu.memory_space<semaphore_mem>> -> memref<!tpu.dma_semaphore, #tpu.memory_space<semaphore_mem>>
      tpu.enqueue_dma source(%249 : memref<128xf32, #tpu.memory_space<any>>) target(%251 : memref<128xf32, #tpu.memory_space<vmem>>) target_semaphore(%253 : memref<!tpu.dma_semaphore, #tpu.memory_space<semaphore_mem>>)
      %c0_i32_204 = arith.constant 0 : i32
      %254 = arith.addi %243, %c0_i32_204 : i32
      %c1_i32_205 = arith.constant 1 : i32
      %255 = arith.addi %254, %c1_i32_205 : i32
      %256 = arith.index_cast %255 : i32 to index
      %257 = memref.load %arg1[%256] : memref<64xi32, #tpu.memory_space<smem>>
      %c1_i32_206 = arith.constant 1 : i32
      %c0_i32_207 = arith.constant 0 : i32
      %c0_i32_208 = arith.constant 0 : i32
      %258 = tpu.memref_slice %arg2[%257, %c0_i32_208] : memref<32x128xf32, #tpu.memory_space<any>> -> memref<1x128xf32, #tpu.memory_space<any>>
      %259 = tpu.memref_squeeze %258 : memref<1x128xf32, #tpu.memory_space<any>> -> memref<128xf32, #tpu.memory_space<any>>
      %c0_i32_209 = arith.constant 0 : i32
      %260 = tpu.memref_slice %arg4[%242, %c1_i32_206, %c0_i32_207, %c0_i32_209] : memref<2x4x8x128xf32, #tpu.memory_space<vmem>> -> memref<1x1x1x128xf32, #tpu.memory_space<vmem>>
      %261 = tpu.memref_squeeze %260 : memref<1x1x1x128xf32, #tpu.memory_space<vmem>> -> memref<128xf32, #tpu.memory_space<vmem>>
      %262 = tpu.memref_slice %arg5[%242] : memref<2x!tpu.dma_semaphore, #tpu.memory_space<semaphore_mem>> -> memref<1x!tpu.dma_semaphore, #tpu.memory_space<semaphore_mem>>
      %263 = tpu.memref_squeeze %262 : memref<1x!tpu.dma_semaphore, #tpu.memory_space<semaphore_mem>> -> memref<!tpu.dma_semaphore, #tpu.memory_space<semaphore_mem>>
      tpu.enqueue_dma source(%259 : memref<128xf32, #tpu.memory_space<any>>) target(%261 : memref<128xf32, #tpu.memory_space<vmem>>) target_semaphore(%263 : memref<!tpu.dma_semaphore, #tpu.memory_space<semaphore_mem>>)
      %c0_i32_210 = arith.constant 0 : i32
      %264 = arith.addi %243, %c0_i32_210 : i32
      %c2_i32_211 = arith.constant 2 : i32
      %265 = arith.addi %264, %c2_i32_211 : i32
      %266 = arith.index_cast %265 : i32 to index
      %267 = memref.load %arg1[%266] : memref<64xi32, #tpu.memory_space<smem>>
      %c2_i32_212 = arith.constant 2 : i32
      %c0_i32_213 = arith.constant 0 : i32
      %c0_i32_214 = arith.constant 0 : i32
      %268 = tpu.memref_slice %arg2[%267, %c0_i32_214] : memref<32x128xf32, #tpu.memory_space<any>> -> memref<1x128xf32, #tpu.memory_space<any>>
      %269 = tpu.memref_squeeze %268 : memref<1x128xf32, #tpu.memory_space<any>> -> memref<128xf32, #tpu.memory_space<any>>
      %c0_i32_215 = arith.constant 0 : i32
      %270 = tpu.memref_slice %arg4[%242, %c2_i32_212, %c0_i32_213, %c0_i32_215] : memref<2x4x8x128xf32, #tpu.memory_space<vmem>> -> memref<1x1x1x128xf32, #tpu.memory_space<vmem>>
      %271 = tpu.memref_squeeze %270 : memref<1x1x1x128xf32, #tpu.memory_space<vmem>> -> memref<128xf32, #tpu.memory_space<vmem>>
      %272 = tpu.memref_slice %arg5[%242] : memref<2x!tpu.dma_semaphore, #tpu.memory_space<semaphore_mem>> -> memref<1x!tpu.dma_semaphore, #tpu.memory_space<semaphore_mem>>
      %273 = tpu.memref_squeeze %272 : memref<1x!tpu.dma_semaphore, #tpu.memory_space<semaphore_mem>> -> memref<!tpu.dma_semaphore, #tpu.memory_space<semaphore_mem>>
      tpu.enqueue_dma source(%269 : memref<128xf32, #tpu.memory_space<any>>) target(%271 : memref<128xf32, #tpu.memory_space<vmem>>) target_semaphore(%273 : memref<!tpu.dma_semaphore, #tpu.memory_space<semaphore_mem>>)
      %c0_i32_216 = arith.constant 0 : i32
      %274 = arith.addi %243, %c0_i32_216 : i32
      %c3_i32 = arith.constant 3 : i32
      %275 = arith.addi %274, %c3_i32 : i32
      %276 = arith.index_cast %275 : i32 to index
      %277 = memref.load %arg1[%276] : memref<64xi32, #tpu.memory_space<smem>>
      %c3_i32_217 = arith.constant 3 : i32
      %c0_i32_218 = arith.constant 0 : i32
      %c0_i32_219 = arith.constant 0 : i32
      %278 = tpu.memref_slice %arg2[%277, %c0_i32_219] : memref<32x128xf32, #tpu.memory_space<any>> -> memref<1x128xf32, #tpu.memory_space<any>>
      %279 = tpu.memref_squeeze %278 : memref<1x128xf32, #tpu.memory_space<any>> -> memref<128xf32, #tpu.memory_space<any>>
      %c0_i32_220 = arith.constant 0 : i32
      %280 = tpu.memref_slice %arg4[%242, %c3_i32_217, %c0_i32_218, %c0_i32_220] : memref<2x4x8x128xf32, #tpu.memory_space<vmem>> -> memref<1x1x1x128xf32, #tpu.memory_space<vmem>>
      %281 = tpu.memref_squeeze %280 : memref<1x1x1x128xf32, #tpu.memory_space<vmem>> -> memref<128xf32, #tpu.memory_space<vmem>>
      %282 = tpu.memref_slice %arg5[%242] : memref<2x!tpu.dma_semaphore, #tpu.memory_space<semaphore_mem>> -> memref<1x!tpu.dma_semaphore, #tpu.memory_space<semaphore_mem>>
      %283 = tpu.memref_squeeze %282 : memref<1x!tpu.dma_semaphore, #tpu.memory_space<semaphore_mem>> -> memref<!tpu.dma_semaphore, #tpu.memory_space<semaphore_mem>>
      tpu.enqueue_dma source(%279 : memref<128xf32, #tpu.memory_space<any>>) target(%281 : memref<128xf32, #tpu.memory_space<vmem>>) target_semaphore(%283 : memref<!tpu.dma_semaphore, #tpu.memory_space<semaphore_mem>>)
      %c4_i32 = arith.constant 4 : i32
      %284 = arith.addi %243, %c4_i32 : i32
      %c0_i32_221 = arith.constant 0 : i32
      %285 = arith.addi %284, %c0_i32_221 : i32
      %286 = arith.index_cast %285 : i32 to index
      %287 = memref.load %arg1[%286] : memref<64xi32, #tpu.memory_space<smem>>
      %c0_i32_222 = arith.constant 0 : i32
      %c1_i32_223 = arith.constant 1 : i32
      %c0_i32_224 = arith.constant 0 : i32
      %288 = tpu.memref_slice %arg2[%287, %c0_i32_224] : memref<32x128xf32, #tpu.memory_space<any>> -> memref<1x128xf32, #tpu.memory_space<any>>
      %289 = tpu.memref_squeeze %288 : memref<1x128xf32, #tpu.memory_space<any>> -> memref<128xf32, #tpu.memory_space<any>>
      %c0_i32_225 = arith.constant 0 : i32
      %290 = tpu.memref_slice %arg4[%242, %c0_i32_222, %c1_i32_223, %c0_i32_225] : memref<2x4x8x128xf32, #tpu.memory_space<vmem>> -> memref<1x1x1x128xf32, #tpu.memory_space<vmem>>
      %291 = tpu.memref_squeeze %290 : memref<1x1x1x128xf32, #tpu.memory_space<vmem>> -> memref<128xf32, #tpu.memory_space<vmem>>
      %292 = tpu.memref_slice %arg5[%242] : memref<2x!tpu.dma_semaphore, #tpu.memory_space<semaphore_mem>> -> memref<1x!tpu.dma_semaphore, #tpu.memory_space<semaphore_mem>>
      %293 = tpu.memref_squeeze %292 : memref<1x!tpu.dma_semaphore, #tpu.memory_space<semaphore_mem>> -> memref<!tpu.dma_semaphore, #tpu.memory_space<semaphore_mem>>
      tpu.enqueue_dma source(%289 : memref<128xf32, #tpu.memory_space<any>>) target(%291 : memref<128xf32, #tpu.memory_space<vmem>>) target_semaphore(%293 : memref<!tpu.dma_semaphore, #tpu.memory_space<semaphore_mem>>)
      %c4_i32_226 = arith.constant 4 : i32
      %294 = arith.addi %243, %c4_i32_226 : i32
      %c1_i32_227 = arith.constant 1 : i32
      %295 = arith.addi %294, %c1_i32_227 : i32
      %296 = arith.index_cast %295 : i32 to index
      %297 = memref.load %arg1[%296] : memref<64xi32, #tpu.memory_space<smem>>
      %c1_i32_228 = arith.constant 1 : i32
      %c1_i32_229 = arith.constant 1 : i32
      %c0_i32_230 = arith.constant 0 : i32
      %298 = tpu.memref_slice %arg2[%297, %c0_i32_230] : memref<32x128xf32, #tpu.memory_space<any>> -> memref<1x128xf32, #tpu.memory_space<any>>
      %299 = tpu.memref_squeeze %298 : memref<1x128xf32, #tpu.memory_space<any>> -> memref<128xf32, #tpu.memory_space<any>>
      %c0_i32_231 = arith.constant 0 : i32
      %300 = tpu.memref_slice %arg4[%242, %c1_i32_228, %c1_i32_229, %c0_i32_231] : memref<2x4x8x128xf32, #tpu.memory_space<vmem>> -> memref<1x1x1x128xf32, #tpu.memory_space<vmem>>
      %301 = tpu.memref_squeeze %300 : memref<1x1x1x128xf32, #tpu.memory_space<vmem>> -> memref<128xf32, #tpu.memory_space<vmem>>
      %302 = tpu.memref_slice %arg5[%242] : memref<2x!tpu.dma_semaphore, #tpu.memory_space<semaphore_mem>> -> memref<1x!tpu.dma_semaphore, #tpu.memory_space<semaphore_mem>>
      %303 = tpu.memref_squeeze %302 : memref<1x!tpu.dma_semaphore, #tpu.memory_space<semaphore_mem>> -> memref<!tpu.dma_semaphore, #tpu.memory_space<semaphore_mem>>
      tpu.enqueue_dma source(%299 : memref<128xf32, #tpu.memory_space<any>>) target(%301 : memref<128xf32, #tpu.memory_space<vmem>>) target_semaphore(%303 : memref<!tpu.dma_semaphore, #tpu.memory_space<semaphore_mem>>)
      %c4_i32_232 = arith.constant 4 : i32
      %304 = arith.addi %243, %c4_i32_232 : i32
      %c2_i32_233 = arith.constant 2 : i32
      %305 = arith.addi %304, %c2_i32_233 : i32
      %306 = arith.index_cast %305 : i32 to index
      %307 = memref.load %arg1[%306] : memref<64xi32, #tpu.memory_space<smem>>
      %c2_i32_234 = arith.constant 2 : i32
      %c1_i32_235 = arith.constant 1 : i32
      %c0_i32_236 = arith.constant 0 : i32
      %308 = tpu.memref_slice %arg2[%307, %c0_i32_236] : memref<32x128xf32, #tpu.memory_space<any>> -> memref<1x128xf32, #tpu.memory_space<any>>
      %309 = tpu.memref_squeeze %308 : memref<1x128xf32, #tpu.memory_space<any>> -> memref<128xf32, #tpu.memory_space<any>>
      %c0_i32_237 = arith.constant 0 : i32
      %310 = tpu.memref_slice %arg4[%242, %c2_i32_234, %c1_i32_235, %c0_i32_237] : memref<2x4x8x128xf32, #tpu.memory_space<vmem>> -> memref<1x1x1x128xf32, #tpu.memory_space<vmem>>
      %311 = tpu.memref_squeeze %310 : memref<1x1x1x128xf32, #tpu.memory_space<vmem>> -> memref<128xf32, #tpu.memory_space<vmem>>
      %312 = tpu.memref_slice %arg5[%242] : memref<2x!tpu.dma_semaphore, #tpu.memory_space<semaphore_mem>> -> memref<1x!tpu.dma_semaphore, #tpu.memory_space<semaphore_mem>>
      %313 = tpu.memref_squeeze %312 : memref<1x!tpu.dma_semaphore, #tpu.memory_space<semaphore_mem>> -> memref<!tpu.dma_semaphore, #tpu.memory_space<semaphore_mem>>
      tpu.enqueue_dma source(%309 : memref<128xf32, #tpu.memory_space<any>>) target(%311 : memref<128xf32, #tpu.memory_space<vmem>>) target_semaphore(%313 : memref<!tpu.dma_semaphore, #tpu.memory_space<semaphore_mem>>)
      %c4_i32_238 = arith.constant 4 : i32
      %314 = arith.addi %243, %c4_i32_238 : i32
      %c3_i32_239 = arith.constant 3 : i32
      %315 = arith.addi %314, %c3_i32_239 : i32
      %316 = arith.index_cast %315 : i32 to index
      %317 = memref.load %arg1[%316] : memref<64xi32, #tpu.memory_space<smem>>
      %c3_i32_240 = arith.constant 3 : i32
      %c1_i32_241 = arith.constant 1 : i32
      %c0_i32_242 = arith.constant 0 : i32
      %318 = tpu.memref_slice %arg2[%317, %c0_i32_242] : memref<32x128xf32, #tpu.memory_space<any>> -> memref<1x128xf32, #tpu.memory_space<any>>
      %319 = tpu.memref_squeeze %318 : memref<1x128xf32, #tpu.memory_space<any>> -> memref<128xf32, #tpu.memory_space<any>>
      %c0_i32_243 = arith.constant 0 : i32
      %320 = tpu.memref_slice %arg4[%242, %c3_i32_240, %c1_i32_241, %c0_i32_243] : memref<2x4x8x128xf32, #tpu.memory_space<vmem>> -> memref<1x1x1x128xf32, #tpu.memory_space<vmem>>
      %321 = tpu.memref_squeeze %320 : memref<1x1x1x128xf32, #tpu.memory_space<vmem>> -> memref<128xf32, #tpu.memory_space<vmem>>
      %322 = tpu.memref_slice %arg5[%242] : memref<2x!tpu.dma_semaphore, #tpu.memory_space<semaphore_mem>> -> memref<1x!tpu.dma_semaphore, #tpu.memory_space<semaphore_mem>>
      %323 = tpu.memref_squeeze %322 : memref<1x!tpu.dma_semaphore, #tpu.memory_space<semaphore_mem>> -> memref<!tpu.dma_semaphore, #tpu.memory_space<semaphore_mem>>
      tpu.enqueue_dma source(%319 : memref<128xf32, #tpu.memory_space<any>>) target(%321 : memref<128xf32, #tpu.memory_space<vmem>>) target_semaphore(%323 : memref<!tpu.dma_semaphore, #tpu.memory_space<semaphore_mem>>)
      %c8_i32 = arith.constant 8 : i32
      %324 = arith.addi %243, %c8_i32 : i32
      %c0_i32_244 = arith.constant 0 : i32
      %325 = arith.addi %324, %c0_i32_244 : i32
      %326 = arith.index_cast %325 : i32 to index
      %327 = memref.load %arg1[%326] : memref<64xi32, #tpu.memory_space<smem>>
      %c0_i32_245 = arith.constant 0 : i32
      %c2_i32_246 = arith.constant 2 : i32
      %c0_i32_247 = arith.constant 0 : i32
      %328 = tpu.memref_slice %arg2[%327, %c0_i32_247] : memref<32x128xf32, #tpu.memory_space<any>> -> memref<1x128xf32, #tpu.memory_space<any>>
      %329 = tpu.memref_squeeze %328 : memref<1x128xf32, #tpu.memory_space<any>> -> memref<128xf32, #tpu.memory_space<any>>
      %c0_i32_248 = arith.constant 0 : i32
      %330 = tpu.memref_slice %arg4[%242, %c0_i32_245, %c2_i32_246, %c0_i32_248] : memref<2x4x8x128xf32, #tpu.memory_space<vmem>> -> memref<1x1x1x128xf32, #tpu.memory_space<vmem>>
      %331 = tpu.memref_squeeze %330 : memref<1x1x1x128xf32, #tpu.memory_space<vmem>> -> memref<128xf32, #tpu.memory_space<vmem>>
      %332 = tpu.memref_slice %arg5[%242] : memref<2x!tpu.dma_semaphore, #tpu.memory_space<semaphore_mem>> -> memref<1x!tpu.dma_semaphore, #tpu.memory_space<semaphore_mem>>
      %333 = tpu.memref_squeeze %332 : memref<1x!tpu.dma_semaphore, #tpu.memory_space<semaphore_mem>> -> memref<!tpu.dma_semaphore, #tpu.memory_space<semaphore_mem>>
      tpu.enqueue_dma source(%329 : memref<128xf32, #tpu.memory_space<any>>) target(%331 : memref<128xf32, #tpu.memory_space<vmem>>) target_semaphore(%333 : memref<!tpu.dma_semaphore, #tpu.memory_space<semaphore_mem>>)
      %c8_i32_249 = arith.constant 8 : i32
      %334 = arith.addi %243, %c8_i32_249 : i32
      %c1_i32_250 = arith.constant 1 : i32
      %335 = arith.addi %334, %c1_i32_250 : i32
      %336 = arith.index_cast %335 : i32 to index
      %337 = memref.load %arg1[%336] : memref<64xi32, #tpu.memory_space<smem>>
      %c1_i32_251 = arith.constant 1 : i32
      %c2_i32_252 = arith.constant 2 : i32
      %c0_i32_253 = arith.constant 0 : i32
      %338 = tpu.memref_slice %arg2[%337, %c0_i32_253] : memref<32x128xf32, #tpu.memory_space<any>> -> memref<1x128xf32, #tpu.memory_space<any>>
      %339 = tpu.memref_squeeze %338 : memref<1x128xf32, #tpu.memory_space<any>> -> memref<128xf32, #tpu.memory_space<any>>
      %c0_i32_254 = arith.constant 0 : i32
      %340 = tpu.memref_slice %arg4[%242, %c1_i32_251, %c2_i32_252, %c0_i32_254] : memref<2x4x8x128xf32, #tpu.memory_space<vmem>> -> memref<1x1x1x128xf32, #tpu.memory_space<vmem>>
      %341 = tpu.memref_squeeze %340 : memref<1x1x1x128xf32, #tpu.memory_space<vmem>> -> memref<128xf32, #tpu.memory_space<vmem>>
      %342 = tpu.memref_slice %arg5[%242] : memref<2x!tpu.dma_semaphore, #tpu.memory_space<semaphore_mem>> -> memref<1x!tpu.dma_semaphore, #tpu.memory_space<semaphore_mem>>
      %343 = tpu.memref_squeeze %342 : memref<1x!tpu.dma_semaphore, #tpu.memory_space<semaphore_mem>> -> memref<!tpu.dma_semaphore, #tpu.memory_space<semaphore_mem>>
      tpu.enqueue_dma source(%339 : memref<128xf32, #tpu.memory_space<any>>) target(%341 : memref<128xf32, #tpu.memory_space<vmem>>) target_semaphore(%343 : memref<!tpu.dma_semaphore, #tpu.memory_space<semaphore_mem>>)
      %c8_i32_255 = arith.constant 8 : i32
      %344 = arith.addi %243, %c8_i32_255 : i32
      %c2_i32_256 = arith.constant 2 : i32
      %345 = arith.addi %344, %c2_i32_256 : i32
      %346 = arith.index_cast %345 : i32 to index
      %347 = memref.load %arg1[%346] : memref<64xi32, #tpu.memory_space<smem>>
      %c2_i32_257 = arith.constant 2 : i32
      %c2_i32_258 = arith.constant 2 : i32
      %c0_i32_259 = arith.constant 0 : i32
      %348 = tpu.memref_slice %arg2[%347, %c0_i32_259] : memref<32x128xf32, #tpu.memory_space<any>> -> memref<1x128xf32, #tpu.memory_space<any>>
      %349 = tpu.memref_squeeze %348 : memref<1x128xf32, #tpu.memory_space<any>> -> memref<128xf32, #tpu.memory_space<any>>
      %c0_i32_260 = arith.constant 0 : i32
      %350 = tpu.memref_slice %arg4[%242, %c2_i32_257, %c2_i32_258, %c0_i32_260] : memref<2x4x8x128xf32, #tpu.memory_space<vmem>> -> memref<1x1x1x128xf32, #tpu.memory_space<vmem>>
      %351 = tpu.memref_squeeze %350 : memref<1x1x1x128xf32, #tpu.memory_space<vmem>> -> memref<128xf32, #tpu.memory_space<vmem>>
      %352 = tpu.memref_slice %arg5[%242] : memref<2x!tpu.dma_semaphore, #tpu.memory_space<semaphore_mem>> -> memref<1x!tpu.dma_semaphore, #tpu.memory_space<semaphore_mem>>
      %353 = tpu.memref_squeeze %352 : memref<1x!tpu.dma_semaphore, #tpu.memory_space<semaphore_mem>> -> memref<!tpu.dma_semaphore, #tpu.memory_space<semaphore_mem>>
      tpu.enqueue_dma source(%349 : memref<128xf32, #tpu.memory_space<any>>) target(%351 : memref<128xf32, #tpu.memory_space<vmem>>) target_semaphore(%353 : memref<!tpu.dma_semaphore, #tpu.memory_space<semaphore_mem>>)
      %c8_i32_261 = arith.constant 8 : i32
      %354 = arith.addi %243, %c8_i32_261 : i32
      %c3_i32_262 = arith.constant 3 : i32
      %355 = arith.addi %354, %c3_i32_262 : i32
      %356 = arith.index_cast %355 : i32 to index
      %357 = memref.load %arg1[%356] : memref<64xi32, #tpu.memory_space<smem>>
      %c3_i32_263 = arith.constant 3 : i32
      %c2_i32_264 = arith.constant 2 : i32
      %c0_i32_265 = arith.constant 0 : i32
      %358 = tpu.memref_slice %arg2[%357, %c0_i32_265] : memref<32x128xf32, #tpu.memory_space<any>> -> memref<1x128xf32, #tpu.memory_space<any>>
      %359 = tpu.memref_squeeze %358 : memref<1x128xf32, #tpu.memory_space<any>> -> memref<128xf32, #tpu.memory_space<any>>
      %c0_i32_266 = arith.constant 0 : i32
      %360 = tpu.memref_slice %arg4[%242, %c3_i32_263, %c2_i32_264, %c0_i32_266] : memref<2x4x8x128xf32, #tpu.memory_space<vmem>> -> memref<1x1x1x128xf32, #tpu.memory_space<vmem>>
      %361 = tpu.memref_squeeze %360 : memref<1x1x1x128xf32, #tpu.memory_space<vmem>> -> memref<128xf32, #tpu.memory_space<vmem>>
      %362 = tpu.memref_slice %arg5[%242] : memref<2x!tpu.dma_semaphore, #tpu.memory_space<semaphore_mem>> -> memref<1x!tpu.dma_semaphore, #tpu.memory_space<semaphore_mem>>
      %363 = tpu.memref_squeeze %362 : memref<1x!tpu.dma_semaphore, #tpu.memory_space<semaphore_mem>> -> memref<!tpu.dma_semaphore, #tpu.memory_space<semaphore_mem>>
      tpu.enqueue_dma source(%359 : memref<128xf32, #tpu.memory_space<any>>) target(%361 : memref<128xf32, #tpu.memory_space<vmem>>) target_semaphore(%363 : memref<!tpu.dma_semaphore, #tpu.memory_space<semaphore_mem>>)
      %c12_i32 = arith.constant 12 : i32
      %364 = arith.addi %243, %c12_i32 : i32
      %c0_i32_267 = arith.constant 0 : i32
      %365 = arith.addi %364, %c0_i32_267 : i32
      %366 = arith.index_cast %365 : i32 to index
      %367 = memref.load %arg1[%366] : memref<64xi32, #tpu.memory_space<smem>>
      %c0_i32_268 = arith.constant 0 : i32
      %c3_i32_269 = arith.constant 3 : i32
      %c0_i32_270 = arith.constant 0 : i32
      %368 = tpu.memref_slice %arg2[%367, %c0_i32_270] : memref<32x128xf32, #tpu.memory_space<any>> -> memref<1x128xf32, #tpu.memory_space<any>>
      %369 = tpu.memref_squeeze %368 : memref<1x128xf32, #tpu.memory_space<any>> -> memref<128xf32, #tpu.memory_space<any>>
      %c0_i32_271 = arith.constant 0 : i32
      %370 = tpu.memref_slice %arg4[%242, %c0_i32_268, %c3_i32_269, %c0_i32_271] : memref<2x4x8x128xf32, #tpu.memory_space<vmem>> -> memref<1x1x1x128xf32, #tpu.memory_space<vmem>>
      %371 = tpu.memref_squeeze %370 : memref<1x1x1x128xf32, #tpu.memory_space<vmem>> -> memref<128xf32, #tpu.memory_space<vmem>>
      %372 = tpu.memref_slice %arg5[%242] : memref<2x!tpu.dma_semaphore, #tpu.memory_space<semaphore_mem>> -> memref<1x!tpu.dma_semaphore, #tpu.memory_space<semaphore_mem>>
      %373 = tpu.memref_squeeze %372 : memref<1x!tpu.dma_semaphore, #tpu.memory_space<semaphore_mem>> -> memref<!tpu.dma_semaphore, #tpu.memory_space<semaphore_mem>>
      tpu.enqueue_dma source(%369 : memref<128xf32, #tpu.memory_space<any>>) target(%371 : memref<128xf32, #tpu.memory_space<vmem>>) target_semaphore(%373 : memref<!tpu.dma_semaphore, #tpu.memory_space<semaphore_mem>>)
      %c12_i32_272 = arith.constant 12 : i32
      %374 = arith.addi %243, %c12_i32_272 : i32
      %c1_i32_273 = arith.constant 1 : i32
      %375 = arith.addi %374, %c1_i32_273 : i32
      %376 = arith.index_cast %375 : i32 to index
      %377 = memref.load %arg1[%376] : memref<64xi32, #tpu.memory_space<smem>>
      %c1_i32_274 = arith.constant 1 : i32
      %c3_i32_275 = arith.constant 3 : i32
      %c0_i32_276 = arith.constant 0 : i32
      %378 = tpu.memref_slice %arg2[%377, %c0_i32_276] : memref<32x128xf32, #tpu.memory_space<any>> -> memref<1x128xf32, #tpu.memory_space<any>>
      %379 = tpu.memref_squeeze %378 : memref<1x128xf32, #tpu.memory_space<any>> -> memref<128xf32, #tpu.memory_space<any>>
      %c0_i32_277 = arith.constant 0 : i32
      %380 = tpu.memref_slice %arg4[%242, %c1_i32_274, %c3_i32_275, %c0_i32_277] : memref<2x4x8x128xf32, #tpu.memory_space<vmem>> -> memref<1x1x1x128xf32, #tpu.memory_space<vmem>>
      %381 = tpu.memref_squeeze %380 : memref<1x1x1x128xf32, #tpu.memory_space<vmem>> -> memref<128xf32, #tpu.memory_space<vmem>>
      %382 = tpu.memref_slice %arg5[%242] : memref<2x!tpu.dma_semaphore, #tpu.memory_space<semaphore_mem>> -> memref<1x!tpu.dma_semaphore, #tpu.memory_space<semaphore_mem>>
      %383 = tpu.memref_squeeze %382 : memref<1x!tpu.dma_semaphore, #tpu.memory_space<semaphore_mem>> -> memref<!tpu.dma_semaphore, #tpu.memory_space<semaphore_mem>>
      tpu.enqueue_dma source(%379 : memref<128xf32, #tpu.memory_space<any>>) target(%381 : memref<128xf32, #tpu.memory_space<vmem>>) target_semaphore(%383 : memref<!tpu.dma_semaphore, #tpu.memory_space<semaphore_mem>>)
      %c12_i32_278 = arith.constant 12 : i32
      %384 = arith.addi %243, %c12_i32_278 : i32
      %c2_i32_279 = arith.constant 2 : i32
      %385 = arith.addi %384, %c2_i32_279 : i32
      %386 = arith.index_cast %385 : i32 to index
      %387 = memref.load %arg1[%386] : memref<64xi32, #tpu.memory_space<smem>>
      %c2_i32_280 = arith.constant 2 : i32
      %c3_i32_281 = arith.constant 3 : i32
      %c0_i32_282 = arith.constant 0 : i32
      %388 = tpu.memref_slice %arg2[%387, %c0_i32_282] : memref<32x128xf32, #tpu.memory_space<any>> -> memref<1x128xf32, #tpu.memory_space<any>>
      %389 = tpu.memref_squeeze %388 : memref<1x128xf32, #tpu.memory_space<any>> -> memref<128xf32, #tpu.memory_space<any>>
      %c0_i32_283 = arith.constant 0 : i32
      %390 = tpu.memref_slice %arg4[%242, %c2_i32_280, %c3_i32_281, %c0_i32_283] : memref<2x4x8x128xf32, #tpu.memory_space<vmem>> -> memref<1x1x1x128xf32, #tpu.memory_space<vmem>>
      %391 = tpu.memref_squeeze %390 : memref<1x1x1x128xf32, #tpu.memory_space<vmem>> -> memref<128xf32, #tpu.memory_space<vmem>>
      %392 = tpu.memref_slice %arg5[%242] : memref<2x!tpu.dma_semaphore, #tpu.memory_space<semaphore_mem>> -> memref<1x!tpu.dma_semaphore, #tpu.memory_space<semaphore_mem>>
      %393 = tpu.memref_squeeze %392 : memref<1x!tpu.dma_semaphore, #tpu.memory_space<semaphore_mem>> -> memref<!tpu.dma_semaphore, #tpu.memory_space<semaphore_mem>>
      tpu.enqueue_dma source(%389 : memref<128xf32, #tpu.memory_space<any>>) target(%391 : memref<128xf32, #tpu.memory_space<vmem>>) target_semaphore(%393 : memref<!tpu.dma_semaphore, #tpu.memory_space<semaphore_mem>>)
      %c12_i32_284 = arith.constant 12 : i32
      %394 = arith.addi %243, %c12_i32_284 : i32
      %c3_i32_285 = arith.constant 3 : i32
      %395 = arith.addi %394, %c3_i32_285 : i32
      %396 = arith.index_cast %395 : i32 to index
      %397 = memref.load %arg1[%396] : memref<64xi32, #tpu.memory_space<smem>>
      %c3_i32_286 = arith.constant 3 : i32
      %c3_i32_287 = arith.constant 3 : i32
      %c0_i32_288 = arith.constant 0 : i32
      %398 = tpu.memref_slice %arg2[%397, %c0_i32_288] : memref<32x128xf32, #tpu.memory_space<any>> -> memref<1x128xf32, #tpu.memory_space<any>>
      %399 = tpu.memref_squeeze %398 : memref<1x128xf32, #tpu.memory_space<any>> -> memref<128xf32, #tpu.memory_space<any>>
      %c0_i32_289 = arith.constant 0 : i32
      %400 = tpu.memref_slice %arg4[%242, %c3_i32_286, %c3_i32_287, %c0_i32_289] : memref<2x4x8x128xf32, #tpu.memory_space<vmem>> -> memref<1x1x1x128xf32, #tpu.memory_space<vmem>>
      %401 = tpu.memref_squeeze %400 : memref<1x1x1x128xf32, #tpu.memory_space<vmem>> -> memref<128xf32, #tpu.memory_space<vmem>>
      %402 = tpu.memref_slice %arg5[%242] : memref<2x!tpu.dma_semaphore, #tpu.memory_space<semaphore_mem>> -> memref<1x!tpu.dma_semaphore, #tpu.memory_space<semaphore_mem>>
      %403 = tpu.memref_squeeze %402 : memref<1x!tpu.dma_semaphore, #tpu.memory_space<semaphore_mem>> -> memref<!tpu.dma_semaphore, #tpu.memory_space<semaphore_mem>>
      tpu.enqueue_dma source(%399 : memref<128xf32, #tpu.memory_space<any>>) target(%401 : memref<128xf32, #tpu.memory_space<vmem>>) target_semaphore(%403 : memref<!tpu.dma_semaphore, #tpu.memory_space<semaphore_mem>>)
      %c16_i32 = arith.constant 16 : i32
      %404 = arith.addi %243, %c16_i32 : i32
      %c0_i32_290 = arith.constant 0 : i32
      %405 = arith.addi %404, %c0_i32_290 : i32
      %406 = arith.index_cast %405 : i32 to index
      %407 = memref.load %arg1[%406] : memref<64xi32, #tpu.memory_space<smem>>
      %c0_i32_291 = arith.constant 0 : i32
      %c4_i32_292 = arith.constant 4 : i32
      %c0_i32_293 = arith.constant 0 : i32
      %408 = tpu.memref_slice %arg2[%407, %c0_i32_293] : memref<32x128xf32, #tpu.memory_space<any>> -> memref<1x128xf32, #tpu.memory_space<any>>
      %409 = tpu.memref_squeeze %408 : memref<1x128xf32, #tpu.memory_space<any>> -> memref<128xf32, #tpu.memory_space<any>>
      %c0_i32_294 = arith.constant 0 : i32
      %410 = tpu.memref_slice %arg4[%242, %c0_i32_291, %c4_i32_292, %c0_i32_294] : memref<2x4x8x128xf32, #tpu.memory_space<vmem>> -> memref<1x1x1x128xf32, #tpu.memory_space<vmem>>
      %411 = tpu.memref_squeeze %410 : memref<1x1x1x128xf32, #tpu.memory_space<vmem>> -> memref<128xf32, #tpu.memory_space<vmem>>
      %412 = tpu.memref_slice %arg5[%242] : memref<2x!tpu.dma_semaphore, #tpu.memory_space<semaphore_mem>> -> memref<1x!tpu.dma_semaphore, #tpu.memory_space<semaphore_mem>>
      %413 = tpu.memref_squeeze %412 : memref<1x!tpu.dma_semaphore, #tpu.memory_space<semaphore_mem>> -> memref<!tpu.dma_semaphore, #tpu.memory_space<semaphore_mem>>
      tpu.enqueue_dma source(%409 : memref<128xf32, #tpu.memory_space<any>>) target(%411 : memref<128xf32, #tpu.memory_space<vmem>>) target_semaphore(%413 : memref<!tpu.dma_semaphore, #tpu.memory_space<semaphore_mem>>)
      %c16_i32_295 = arith.constant 16 : i32
      %414 = arith.addi %243, %c16_i32_295 : i32
      %c1_i32_296 = arith.constant 1 : i32
      %415 = arith.addi %414, %c1_i32_296 : i32
      %416 = arith.index_cast %415 : i32 to index
      %417 = memref.load %arg1[%416] : memref<64xi32, #tpu.memory_space<smem>>
      %c1_i32_297 = arith.constant 1 : i32
      %c4_i32_298 = arith.constant 4 : i32
      %c0_i32_299 = arith.constant 0 : i32
      %418 = tpu.memref_slice %arg2[%417, %c0_i32_299] : memref<32x128xf32, #tpu.memory_space<any>> -> memref<1x128xf32, #tpu.memory_space<any>>
      %419 = tpu.memref_squeeze %418 : memref<1x128xf32, #tpu.memory_space<any>> -> memref<128xf32, #tpu.memory_space<any>>
      %c0_i32_300 = arith.constant 0 : i32
      %420 = tpu.memref_slice %arg4[%242, %c1_i32_297, %c4_i32_298, %c0_i32_300] : memref<2x4x8x128xf32, #tpu.memory_space<vmem>> -> memref<1x1x1x128xf32, #tpu.memory_space<vmem>>
      %421 = tpu.memref_squeeze %420 : memref<1x1x1x128xf32, #tpu.memory_space<vmem>> -> memref<128xf32, #tpu.memory_space<vmem>>
      %422 = tpu.memref_slice %arg5[%242] : memref<2x!tpu.dma_semaphore, #tpu.memory_space<semaphore_mem>> -> memref<1x!tpu.dma_semaphore, #tpu.memory_space<semaphore_mem>>
      %423 = tpu.memref_squeeze %422 : memref<1x!tpu.dma_semaphore, #tpu.memory_space<semaphore_mem>> -> memref<!tpu.dma_semaphore, #tpu.memory_space<semaphore_mem>>
      tpu.enqueue_dma source(%419 : memref<128xf32, #tpu.memory_space<any>>) target(%421 : memref<128xf32, #tpu.memory_space<vmem>>) target_semaphore(%423 : memref<!tpu.dma_semaphore, #tpu.memory_space<semaphore_mem>>)
      %c16_i32_301 = arith.constant 16 : i32
      %424 = arith.addi %243, %c16_i32_301 : i32
      %c2_i32_302 = arith.constant 2 : i32
      %425 = arith.addi %424, %c2_i32_302 : i32
      %426 = arith.index_cast %425 : i32 to index
      %427 = memref.load %arg1[%426] : memref<64xi32, #tpu.memory_space<smem>>
      %c2_i32_303 = arith.constant 2 : i32
      %c4_i32_304 = arith.constant 4 : i32
      %c0_i32_305 = arith.constant 0 : i32
      %428 = tpu.memref_slice %arg2[%427, %c0_i32_305] : memref<32x128xf32, #tpu.memory_space<any>> -> memref<1x128xf32, #tpu.memory_space<any>>
      %429 = tpu.memref_squeeze %428 : memref<1x128xf32, #tpu.memory_space<any>> -> memref<128xf32, #tpu.memory_space<any>>
      %c0_i32_306 = arith.constant 0 : i32
      %430 = tpu.memref_slice %arg4[%242, %c2_i32_303, %c4_i32_304, %c0_i32_306] : memref<2x4x8x128xf32, #tpu.memory_space<vmem>> -> memref<1x1x1x128xf32, #tpu.memory_space<vmem>>
      %431 = tpu.memref_squeeze %430 : memref<1x1x1x128xf32, #tpu.memory_space<vmem>> -> memref<128xf32, #tpu.memory_space<vmem>>
      %432 = tpu.memref_slice %arg5[%242] : memref<2x!tpu.dma_semaphore, #tpu.memory_space<semaphore_mem>> -> memref<1x!tpu.dma_semaphore, #tpu.memory_space<semaphore_mem>>
      %433 = tpu.memref_squeeze %432 : memref<1x!tpu.dma_semaphore, #tpu.memory_space<semaphore_mem>> -> memref<!tpu.dma_semaphore, #tpu.memory_space<semaphore_mem>>
      tpu.enqueue_dma source(%429 : memref<128xf32, #tpu.memory_space<any>>) target(%431 : memref<128xf32, #tpu.memory_space<vmem>>) target_semaphore(%433 : memref<!tpu.dma_semaphore, #tpu.memory_space<semaphore_mem>>)
      %c16_i32_307 = arith.constant 16 : i32
      %434 = arith.addi %243, %c16_i32_307 : i32
      %c3_i32_308 = arith.constant 3 : i32
      %435 = arith.addi %434, %c3_i32_308 : i32
      %436 = arith.index_cast %435 : i32 to index
      %437 = memref.load %arg1[%436] : memref<64xi32, #tpu.memory_space<smem>>
      %c3_i32_309 = arith.constant 3 : i32
      %c4_i32_310 = arith.constant 4 : i32
      %c0_i32_311 = arith.constant 0 : i32
      %438 = tpu.memref_slice %arg2[%437, %c0_i32_311] : memref<32x128xf32, #tpu.memory_space<any>> -> memref<1x128xf32, #tpu.memory_space<any>>
      %439 = tpu.memref_squeeze %438 : memref<1x128xf32, #tpu.memory_space<any>> -> memref<128xf32, #tpu.memory_space<any>>
      %c0_i32_312 = arith.constant 0 : i32
      %440 = tpu.memref_slice %arg4[%242, %c3_i32_309, %c4_i32_310, %c0_i32_312] : memref<2x4x8x128xf32, #tpu.memory_space<vmem>> -> memref<1x1x1x128xf32, #tpu.memory_space<vmem>>
      %441 = tpu.memref_squeeze %440 : memref<1x1x1x128xf32, #tpu.memory_space<vmem>> -> memref<128xf32, #tpu.memory_space<vmem>>
      %442 = tpu.memref_slice %arg5[%242] : memref<2x!tpu.dma_semaphore, #tpu.memory_space<semaphore_mem>> -> memref<1x!tpu.dma_semaphore, #tpu.memory_space<semaphore_mem>>
      %443 = tpu.memref_squeeze %442 : memref<1x!tpu.dma_semaphore, #tpu.memory_space<semaphore_mem>> -> memref<!tpu.dma_semaphore, #tpu.memory_space<semaphore_mem>>
      tpu.enqueue_dma source(%439 : memref<128xf32, #tpu.memory_space<any>>) target(%441 : memref<128xf32, #tpu.memory_space<vmem>>) target_semaphore(%443 : memref<!tpu.dma_semaphore, #tpu.memory_space<semaphore_mem>>)
      %c20_i32 = arith.constant 20 : i32
      %444 = arith.addi %243, %c20_i32 : i32
      %c0_i32_313 = arith.constant 0 : i32
      %445 = arith.addi %444, %c0_i32_313 : i32
      %446 = arith.index_cast %445 : i32 to index
      %447 = memref.load %arg1[%446] : memref<64xi32, #tpu.memory_space<smem>>
      %c0_i32_314 = arith.constant 0 : i32
      %c5_i32 = arith.constant 5 : i32
      %c0_i32_315 = arith.constant 0 : i32
      %448 = tpu.memref_slice %arg2[%447, %c0_i32_315] : memref<32x128xf32, #tpu.memory_space<any>> -> memref<1x128xf32, #tpu.memory_space<any>>
      %449 = tpu.memref_squeeze %448 : memref<1x128xf32, #tpu.memory_space<any>> -> memref<128xf32, #tpu.memory_space<any>>
      %c0_i32_316 = arith.constant 0 : i32
      %450 = tpu.memref_slice %arg4[%242, %c0_i32_314, %c5_i32, %c0_i32_316] : memref<2x4x8x128xf32, #tpu.memory_space<vmem>> -> memref<1x1x1x128xf32, #tpu.memory_space<vmem>>
      %451 = tpu.memref_squeeze %450 : memref<1x1x1x128xf32, #tpu.memory_space<vmem>> -> memref<128xf32, #tpu.memory_space<vmem>>
      %452 = tpu.memref_slice %arg5[%242] : memref<2x!tpu.dma_semaphore, #tpu.memory_space<semaphore_mem>> -> memref<1x!tpu.dma_semaphore, #tpu.memory_space<semaphore_mem>>
      %453 = tpu.memref_squeeze %452 : memref<1x!tpu.dma_semaphore, #tpu.memory_space<semaphore_mem>> -> memref<!tpu.dma_semaphore, #tpu.memory_space<semaphore_mem>>
      tpu.enqueue_dma source(%449 : memref<128xf32, #tpu.memory_space<any>>) target(%451 : memref<128xf32, #tpu.memory_space<vmem>>) target_semaphore(%453 : memref<!tpu.dma_semaphore, #tpu.memory_space<semaphore_mem>>)
      %c20_i32_317 = arith.constant 20 : i32
      %454 = arith.addi %243, %c20_i32_317 : i32
      %c1_i32_318 = arith.constant 1 : i32
      %455 = arith.addi %454, %c1_i32_318 : i32
      %456 = arith.index_cast %455 : i32 to index
      %457 = memref.load %arg1[%456] : memref<64xi32, #tpu.memory_space<smem>>
      %c1_i32_319 = arith.constant 1 : i32
      %c5_i32_320 = arith.constant 5 : i32
      %c0_i32_321 = arith.constant 0 : i32
      %458 = tpu.memref_slice %arg2[%457, %c0_i32_321] : memref<32x128xf32, #tpu.memory_space<any>> -> memref<1x128xf32, #tpu.memory_space<any>>
      %459 = tpu.memref_squeeze %458 : memref<1x128xf32, #tpu.memory_space<any>> -> memref<128xf32, #tpu.memory_space<any>>
      %c0_i32_322 = arith.constant 0 : i32
      %460 = tpu.memref_slice %arg4[%242, %c1_i32_319, %c5_i32_320, %c0_i32_322] : memref<2x4x8x128xf32, #tpu.memory_space<vmem>> -> memref<1x1x1x128xf32, #tpu.memory_space<vmem>>
      %461 = tpu.memref_squeeze %460 : memref<1x1x1x128xf32, #tpu.memory_space<vmem>> -> memref<128xf32, #tpu.memory_space<vmem>>
      %462 = tpu.memref_slice %arg5[%242] : memref<2x!tpu.dma_semaphore, #tpu.memory_space<semaphore_mem>> -> memref<1x!tpu.dma_semaphore, #tpu.memory_space<semaphore_mem>>
      %463 = tpu.memref_squeeze %462 : memref<1x!tpu.dma_semaphore, #tpu.memory_space<semaphore_mem>> -> memref<!tpu.dma_semaphore, #tpu.memory_space<semaphore_mem>>
      tpu.enqueue_dma source(%459 : memref<128xf32, #tpu.memory_space<any>>) target(%461 : memref<128xf32, #tpu.memory_space<vmem>>) target_semaphore(%463 : memref<!tpu.dma_semaphore, #tpu.memory_space<semaphore_mem>>)
      %c20_i32_323 = arith.constant 20 : i32
      %464 = arith.addi %243, %c20_i32_323 : i32
      %c2_i32_324 = arith.constant 2 : i32
      %465 = arith.addi %464, %c2_i32_324 : i32
      %466 = arith.index_cast %465 : i32 to index
      %467 = memref.load %arg1[%466] : memref<64xi32, #tpu.memory_space<smem>>
      %c2_i32_325 = arith.constant 2 : i32
      %c5_i32_326 = arith.constant 5 : i32
      %c0_i32_327 = arith.constant 0 : i32
      %468 = tpu.memref_slice %arg2[%467, %c0_i32_327] : memref<32x128xf32, #tpu.memory_space<any>> -> memref<1x128xf32, #tpu.memory_space<any>>
      %469 = tpu.memref_squeeze %468 : memref<1x128xf32, #tpu.memory_space<any>> -> memref<128xf32, #tpu.memory_space<any>>
      %c0_i32_328 = arith.constant 0 : i32
      %470 = tpu.memref_slice %arg4[%242, %c2_i32_325, %c5_i32_326, %c0_i32_328] : memref<2x4x8x128xf32, #tpu.memory_space<vmem>> -> memref<1x1x1x128xf32, #tpu.memory_space<vmem>>
      %471 = tpu.memref_squeeze %470 : memref<1x1x1x128xf32, #tpu.memory_space<vmem>> -> memref<128xf32, #tpu.memory_space<vmem>>
      %472 = tpu.memref_slice %arg5[%242] : memref<2x!tpu.dma_semaphore, #tpu.memory_space<semaphore_mem>> -> memref<1x!tpu.dma_semaphore, #tpu.memory_space<semaphore_mem>>
      %473 = tpu.memref_squeeze %472 : memref<1x!tpu.dma_semaphore, #tpu.memory_space<semaphore_mem>> -> memref<!tpu.dma_semaphore, #tpu.memory_space<semaphore_mem>>
      tpu.enqueue_dma source(%469 : memref<128xf32, #tpu.memory_space<any>>) target(%471 : memref<128xf32, #tpu.memory_space<vmem>>) target_semaphore(%473 : memref<!tpu.dma_semaphore, #tpu.memory_space<semaphore_mem>>)
      %c20_i32_329 = arith.constant 20 : i32
      %474 = arith.addi %243, %c20_i32_329 : i32
      %c3_i32_330 = arith.constant 3 : i32
      %475 = arith.addi %474, %c3_i32_330 : i32
      %476 = arith.index_cast %475 : i32 to index
      %477 = memref.load %arg1[%476] : memref<64xi32, #tpu.memory_space<smem>>
      %c3_i32_331 = arith.constant 3 : i32
      %c5_i32_332 = arith.constant 5 : i32
      %c0_i32_333 = arith.constant 0 : i32
      %478 = tpu.memref_slice %arg2[%477, %c0_i32_333] : memref<32x128xf32, #tpu.memory_space<any>> -> memref<1x128xf32, #tpu.memory_space<any>>
      %479 = tpu.memref_squeeze %478 : memref<1x128xf32, #tpu.memory_space<any>> -> memref<128xf32, #tpu.memory_space<any>>
      %c0_i32_334 = arith.constant 0 : i32
      %480 = tpu.memref_slice %arg4[%242, %c3_i32_331, %c5_i32_332, %c0_i32_334] : memref<2x4x8x128xf32, #tpu.memory_space<vmem>> -> memref<1x1x1x128xf32, #tpu.memory_space<vmem>>
      %481 = tpu.memref_squeeze %480 : memref<1x1x1x128xf32, #tpu.memory_space<vmem>> -> memref<128xf32, #tpu.memory_space<vmem>>
      %482 = tpu.memref_slice %arg5[%242] : memref<2x!tpu.dma_semaphore, #tpu.memory_space<semaphore_mem>> -> memref<1x!tpu.dma_semaphore, #tpu.memory_space<semaphore_mem>>
      %483 = tpu.memref_squeeze %482 : memref<1x!tpu.dma_semaphore, #tpu.memory_space<semaphore_mem>> -> memref<!tpu.dma_semaphore, #tpu.memory_space<semaphore_mem>>
      tpu.enqueue_dma source(%479 : memref<128xf32, #tpu.memory_space<any>>) target(%481 : memref<128xf32, #tpu.memory_space<vmem>>) target_semaphore(%483 : memref<!tpu.dma_semaphore, #tpu.memory_space<semaphore_mem>>)
      %c24_i32 = arith.constant 24 : i32
      %484 = arith.addi %243, %c24_i32 : i32
      %c0_i32_335 = arith.constant 0 : i32
      %485 = arith.addi %484, %c0_i32_335 : i32
      %486 = arith.index_cast %485 : i32 to index
      %487 = memref.load %arg1[%486] : memref<64xi32, #tpu.memory_space<smem>>
      %c0_i32_336 = arith.constant 0 : i32
      %c6_i32 = arith.constant 6 : i32
      %c0_i32_337 = arith.constant 0 : i32
      %488 = tpu.memref_slice %arg2[%487, %c0_i32_337] : memref<32x128xf32, #tpu.memory_space<any>> -> memref<1x128xf32, #tpu.memory_space<any>>
      %489 = tpu.memref_squeeze %488 : memref<1x128xf32, #tpu.memory_space<any>> -> memref<128xf32, #tpu.memory_space<any>>
      %c0_i32_338 = arith.constant 0 : i32
      %490 = tpu.memref_slice %arg4[%242, %c0_i32_336, %c6_i32, %c0_i32_338] : memref<2x4x8x128xf32, #tpu.memory_space<vmem>> -> memref<1x1x1x128xf32, #tpu.memory_space<vmem>>
      %491 = tpu.memref_squeeze %490 : memref<1x1x1x128xf32, #tpu.memory_space<vmem>> -> memref<128xf32, #tpu.memory_space<vmem>>
      %492 = tpu.memref_slice %arg5[%242] : memref<2x!tpu.dma_semaphore, #tpu.memory_space<semaphore_mem>> -> memref<1x!tpu.dma_semaphore, #tpu.memory_space<semaphore_mem>>
      %493 = tpu.memref_squeeze %492 : memref<1x!tpu.dma_semaphore, #tpu.memory_space<semaphore_mem>> -> memref<!tpu.dma_semaphore, #tpu.memory_space<semaphore_mem>>
      tpu.enqueue_dma source(%489 : memref<128xf32, #tpu.memory_space<any>>) target(%491 : memref<128xf32, #tpu.memory_space<vmem>>) target_semaphore(%493 : memref<!tpu.dma_semaphore, #tpu.memory_space<semaphore_mem>>)
      %c24_i32_339 = arith.constant 24 : i32
      %494 = arith.addi %243, %c24_i32_339 : i32
      %c1_i32_340 = arith.constant 1 : i32
      %495 = arith.addi %494, %c1_i32_340 : i32
      %496 = arith.index_cast %495 : i32 to index
      %497 = memref.load %arg1[%496] : memref<64xi32, #tpu.memory_space<smem>>
      %c1_i32_341 = arith.constant 1 : i32
      %c6_i32_342 = arith.constant 6 : i32
      %c0_i32_343 = arith.constant 0 : i32
      %498 = tpu.memref_slice %arg2[%497, %c0_i32_343] : memref<32x128xf32, #tpu.memory_space<any>> -> memref<1x128xf32, #tpu.memory_space<any>>
      %499 = tpu.memref_squeeze %498 : memref<1x128xf32, #tpu.memory_space<any>> -> memref<128xf32, #tpu.memory_space<any>>
      %c0_i32_344 = arith.constant 0 : i32
      %500 = tpu.memref_slice %arg4[%242, %c1_i32_341, %c6_i32_342, %c0_i32_344] : memref<2x4x8x128xf32, #tpu.memory_space<vmem>> -> memref<1x1x1x128xf32, #tpu.memory_space<vmem>>
      %501 = tpu.memref_squeeze %500 : memref<1x1x1x128xf32, #tpu.memory_space<vmem>> -> memref<128xf32, #tpu.memory_space<vmem>>
      %502 = tpu.memref_slice %arg5[%242] : memref<2x!tpu.dma_semaphore, #tpu.memory_space<semaphore_mem>> -> memref<1x!tpu.dma_semaphore, #tpu.memory_space<semaphore_mem>>
      %503 = tpu.memref_squeeze %502 : memref<1x!tpu.dma_semaphore, #tpu.memory_space<semaphore_mem>> -> memref<!tpu.dma_semaphore, #tpu.memory_space<semaphore_mem>>
      tpu.enqueue_dma source(%499 : memref<128xf32, #tpu.memory_space<any>>) target(%501 : memref<128xf32, #tpu.memory_space<vmem>>) target_semaphore(%503 : memref<!tpu.dma_semaphore, #tpu.memory_space<semaphore_mem>>)
      %c24_i32_345 = arith.constant 24 : i32
      %504 = arith.addi %243, %c24_i32_345 : i32
      %c2_i32_346 = arith.constant 2 : i32
      %505 = arith.addi %504, %c2_i32_346 : i32
      %506 = arith.index_cast %505 : i32 to index
      %507 = memref.load %arg1[%506] : memref<64xi32, #tpu.memory_space<smem>>
      %c2_i32_347 = arith.constant 2 : i32
      %c6_i32_348 = arith.constant 6 : i32
      %c0_i32_349 = arith.constant 0 : i32
      %508 = tpu.memref_slice %arg2[%507, %c0_i32_349] : memref<32x128xf32, #tpu.memory_space<any>> -> memref<1x128xf32, #tpu.memory_space<any>>
      %509 = tpu.memref_squeeze %508 : memref<1x128xf32, #tpu.memory_space<any>> -> memref<128xf32, #tpu.memory_space<any>>
      %c0_i32_350 = arith.constant 0 : i32
      %510 = tpu.memref_slice %arg4[%242, %c2_i32_347, %c6_i32_348, %c0_i32_350] : memref<2x4x8x128xf32, #tpu.memory_space<vmem>> -> memref<1x1x1x128xf32, #tpu.memory_space<vmem>>
      %511 = tpu.memref_squeeze %510 : memref<1x1x1x128xf32, #tpu.memory_space<vmem>> -> memref<128xf32, #tpu.memory_space<vmem>>
      %512 = tpu.memref_slice %arg5[%242] : memref<2x!tpu.dma_semaphore, #tpu.memory_space<semaphore_mem>> -> memref<1x!tpu.dma_semaphore, #tpu.memory_space<semaphore_mem>>
      %513 = tpu.memref_squeeze %512 : memref<1x!tpu.dma_semaphore, #tpu.memory_space<semaphore_mem>> -> memref<!tpu.dma_semaphore, #tpu.memory_space<semaphore_mem>>
      tpu.enqueue_dma source(%509 : memref<128xf32, #tpu.memory_space<any>>) target(%511 : memref<128xf32, #tpu.memory_space<vmem>>) target_semaphore(%513 : memref<!tpu.dma_semaphore, #tpu.memory_space<semaphore_mem>>)
      %c24_i32_351 = arith.constant 24 : i32
      %514 = arith.addi %243, %c24_i32_351 : i32
      %c3_i32_352 = arith.constant 3 : i32
      %515 = arith.addi %514, %c3_i32_352 : i32
      %516 = arith.index_cast %515 : i32 to index
      %517 = memref.load %arg1[%516] : memref<64xi32, #tpu.memory_space<smem>>
      %c3_i32_353 = arith.constant 3 : i32
      %c6_i32_354 = arith.constant 6 : i32
      %c0_i32_355 = arith.constant 0 : i32
      %518 = tpu.memref_slice %arg2[%517, %c0_i32_355] : memref<32x128xf32, #tpu.memory_space<any>> -> memref<1x128xf32, #tpu.memory_space<any>>
      %519 = tpu.memref_squeeze %518 : memref<1x128xf32, #tpu.memory_space<any>> -> memref<128xf32, #tpu.memory_space<any>>
      %c0_i32_356 = arith.constant 0 : i32
      %520 = tpu.memref_slice %arg4[%242, %c3_i32_353, %c6_i32_354, %c0_i32_356] : memref<2x4x8x128xf32, #tpu.memory_space<vmem>> -> memref<1x1x1x128xf32, #tpu.memory_space<vmem>>
      %521 = tpu.memref_squeeze %520 : memref<1x1x1x128xf32, #tpu.memory_space<vmem>> -> memref<128xf32, #tpu.memory_space<vmem>>
      %522 = tpu.memref_slice %arg5[%242] : memref<2x!tpu.dma_semaphore, #tpu.memory_space<semaphore_mem>> -> memref<1x!tpu.dma_semaphore, #tpu.memory_space<semaphore_mem>>
      %523 = tpu.memref_squeeze %522 : memref<1x!tpu.dma_semaphore, #tpu.memory_space<semaphore_mem>> -> memref<!tpu.dma_semaphore, #tpu.memory_space<semaphore_mem>>
      tpu.enqueue_dma source(%519 : memref<128xf32, #tpu.memory_space<any>>) target(%521 : memref<128xf32, #tpu.memory_space<vmem>>) target_semaphore(%523 : memref<!tpu.dma_semaphore, #tpu.memory_space<semaphore_mem>>)
      %c28_i32 = arith.constant 28 : i32
      %524 = arith.addi %243, %c28_i32 : i32
      %c0_i32_357 = arith.constant 0 : i32
      %525 = arith.addi %524, %c0_i32_357 : i32
      %526 = arith.index_cast %525 : i32 to index
      %527 = memref.load %arg1[%526] : memref<64xi32, #tpu.memory_space<smem>>
      %c0_i32_358 = arith.constant 0 : i32
      %c7_i32 = arith.constant 7 : i32
      %c0_i32_359 = arith.constant 0 : i32
      %528 = tpu.memref_slice %arg2[%527, %c0_i32_359] : memref<32x128xf32, #tpu.memory_space<any>> -> memref<1x128xf32, #tpu.memory_space<any>>
      %529 = tpu.memref_squeeze %528 : memref<1x128xf32, #tpu.memory_space<any>> -> memref<128xf32, #tpu.memory_space<any>>
      %c0_i32_360 = arith.constant 0 : i32
      %530 = tpu.memref_slice %arg4[%242, %c0_i32_358, %c7_i32, %c0_i32_360] : memref<2x4x8x128xf32, #tpu.memory_space<vmem>> -> memref<1x1x1x128xf32, #tpu.memory_space<vmem>>
      %531 = tpu.memref_squeeze %530 : memref<1x1x1x128xf32, #tpu.memory_space<vmem>> -> memref<128xf32, #tpu.memory_space<vmem>>
      %532 = tpu.memref_slice %arg5[%242] : memref<2x!tpu.dma_semaphore, #tpu.memory_space<semaphore_mem>> -> memref<1x!tpu.dma_semaphore, #tpu.memory_space<semaphore_mem>>
      %533 = tpu.memref_squeeze %532 : memref<1x!tpu.dma_semaphore, #tpu.memory_space<semaphore_mem>> -> memref<!tpu.dma_semaphore, #tpu.memory_space<semaphore_mem>>
      tpu.enqueue_dma source(%529 : memref<128xf32, #tpu.memory_space<any>>) target(%531 : memref<128xf32, #tpu.memory_space<vmem>>) target_semaphore(%533 : memref<!tpu.dma_semaphore, #tpu.memory_space<semaphore_mem>>)
      %c28_i32_361 = arith.constant 28 : i32
      %534 = arith.addi %243, %c28_i32_361 : i32
      %c1_i32_362 = arith.constant 1 : i32
      %535 = arith.addi %534, %c1_i32_362 : i32
      %536 = arith.index_cast %535 : i32 to index
      %537 = memref.load %arg1[%536] : memref<64xi32, #tpu.memory_space<smem>>
      %c1_i32_363 = arith.constant 1 : i32
      %c7_i32_364 = arith.constant 7 : i32
      %c0_i32_365 = arith.constant 0 : i32
      %538 = tpu.memref_slice %arg2[%537, %c0_i32_365] : memref<32x128xf32, #tpu.memory_space<any>> -> memref<1x128xf32, #tpu.memory_space<any>>
      %539 = tpu.memref_squeeze %538 : memref<1x128xf32, #tpu.memory_space<any>> -> memref<128xf32, #tpu.memory_space<any>>
      %c0_i32_366 = arith.constant 0 : i32
      %540 = tpu.memref_slice %arg4[%242, %c1_i32_363, %c7_i32_364, %c0_i32_366] : memref<2x4x8x128xf32, #tpu.memory_space<vmem>> -> memref<1x1x1x128xf32, #tpu.memory_space<vmem>>
      %541 = tpu.memref_squeeze %540 : memref<1x1x1x128xf32, #tpu.memory_space<vmem>> -> memref<128xf32, #tpu.memory_space<vmem>>
      %542 = tpu.memref_slice %arg5[%242] : memref<2x!tpu.dma_semaphore, #tpu.memory_space<semaphore_mem>> -> memref<1x!tpu.dma_semaphore, #tpu.memory_space<semaphore_mem>>
      %543 = tpu.memref_squeeze %542 : memref<1x!tpu.dma_semaphore, #tpu.memory_space<semaphore_mem>> -> memref<!tpu.dma_semaphore, #tpu.memory_space<semaphore_mem>>
      tpu.enqueue_dma source(%539 : memref<128xf32, #tpu.memory_space<any>>) target(%541 : memref<128xf32, #tpu.memory_space<vmem>>) target_semaphore(%543 : memref<!tpu.dma_semaphore, #tpu.memory_space<semaphore_mem>>)
      %c28_i32_367 = arith.constant 28 : i32
      %544 = arith.addi %243, %c28_i32_367 : i32
      %c2_i32_368 = arith.constant 2 : i32
      %545 = arith.addi %544, %c2_i32_368 : i32
      %546 = arith.index_cast %545 : i32 to index
      %547 = memref.load %arg1[%546] : memref<64xi32, #tpu.memory_space<smem>>
      %c2_i32_369 = arith.constant 2 : i32
      %c7_i32_370 = arith.constant 7 : i32
      %c0_i32_371 = arith.constant 0 : i32
      %548 = tpu.memref_slice %arg2[%547, %c0_i32_371] : memref<32x128xf32, #tpu.memory_space<any>> -> memref<1x128xf32, #tpu.memory_space<any>>
      %549 = tpu.memref_squeeze %548 : memref<1x128xf32, #tpu.memory_space<any>> -> memref<128xf32, #tpu.memory_space<any>>
      %c0_i32_372 = arith.constant 0 : i32
      %550 = tpu.memref_slice %arg4[%242, %c2_i32_369, %c7_i32_370, %c0_i32_372] : memref<2x4x8x128xf32, #tpu.memory_space<vmem>> -> memref<1x1x1x128xf32, #tpu.memory_space<vmem>>
      %551 = tpu.memref_squeeze %550 : memref<1x1x1x128xf32, #tpu.memory_space<vmem>> -> memref<128xf32, #tpu.memory_space<vmem>>
      %552 = tpu.memref_slice %arg5[%242] : memref<2x!tpu.dma_semaphore, #tpu.memory_space<semaphore_mem>> -> memref<1x!tpu.dma_semaphore, #tpu.memory_space<semaphore_mem>>
      %553 = tpu.memref_squeeze %552 : memref<1x!tpu.dma_semaphore, #tpu.memory_space<semaphore_mem>> -> memref<!tpu.dma_semaphore, #tpu.memory_space<semaphore_mem>>
      tpu.enqueue_dma source(%549 : memref<128xf32, #tpu.memory_space<any>>) target(%551 : memref<128xf32, #tpu.memory_space<vmem>>) target_semaphore(%553 : memref<!tpu.dma_semaphore, #tpu.memory_space<semaphore_mem>>)
      %c28_i32_373 = arith.constant 28 : i32
      %554 = arith.addi %243, %c28_i32_373 : i32
      %c3_i32_374 = arith.constant 3 : i32
      %555 = arith.addi %554, %c3_i32_374 : i32
      %556 = arith.index_cast %555 : i32 to index
      %557 = memref.load %arg1[%556] : memref<64xi32, #tpu.memory_space<smem>>
      %c3_i32_375 = arith.constant 3 : i32
      %c7_i32_376 = arith.constant 7 : i32
      %c0_i32_377 = arith.constant 0 : i32
      %558 = tpu.memref_slice %arg2[%557, %c0_i32_377] : memref<32x128xf32, #tpu.memory_space<any>> -> memref<1x128xf32, #tpu.memory_space<any>>
      %559 = tpu.memref_squeeze %558 : memref<1x128xf32, #tpu.memory_space<any>> -> memref<128xf32, #tpu.memory_space<any>>
      %c0_i32_378 = arith.constant 0 : i32
      %560 = tpu.memref_slice %arg4[%242, %c3_i32_375, %c7_i32_376, %c0_i32_378] : memref<2x4x8x128xf32, #tpu.memory_space<vmem>> -> memref<1x1x1x128xf32, #tpu.memory_space<vmem>>
      %561 = tpu.memref_squeeze %560 : memref<1x1x1x128xf32, #tpu.memory_space<vmem>> -> memref<128xf32, #tpu.memory_space<vmem>>
      %562 = tpu.memref_slice %arg5[%242] : memref<2x!tpu.dma_semaphore, #tpu.memory_space<semaphore_mem>> -> memref<1x!tpu.dma_semaphore, #tpu.memory_space<semaphore_mem>>
      %563 = tpu.memref_squeeze %562 : memref<1x!tpu.dma_semaphore, #tpu.memory_space<semaphore_mem>> -> memref<!tpu.dma_semaphore, #tpu.memory_space<semaphore_mem>>
      tpu.enqueue_dma source(%559 : memref<128xf32, #tpu.memory_space<any>>) target(%561 : memref<128xf32, #tpu.memory_space<vmem>>) target_semaphore(%563 : memref<!tpu.dma_semaphore, #tpu.memory_space<semaphore_mem>>)
    } else {
    }
    %c2_i32_2 = arith.constant 2 : i32
    %c0_i32_3 = arith.constant 0 : i32
    %7 = arith.cmpi eq, %c2_i32_2, %c0_i32_3 : i32
    %c1_i32_4 = arith.constant 1 : i32
    %8 = arith.select %7, %c1_i32_4, %c2_i32_2 : i32
    %9 = arith.remsi %arg0, %8 : i32
    %c0_i32_5 = arith.constant 0 : i32
    %10 = arith.cmpi ne, %9, %c0_i32_5 : i32
    %c0_i32_6 = arith.constant 0 : i32
    %11 = arith.cmpi slt, %9, %c0_i32_6 : i32
    %c0_i32_7 = arith.constant 0 : i32
    %12 = arith.cmpi slt, %8, %c0_i32_7 : i32
    %13 = arith.xori %11, %12 : i1
    %14 = arith.andi %13, %10 : i1
    %15 = arith.addi %9, %8 : i32
    %16 = arith.select %14, %15, %9 : i32
    %c0_i32_8 = arith.constant 0 : i32
    %c0_i32_9 = arith.constant 0 : i32
    %c0_i32_10 = arith.constant 0 : i32
    %c0_i32_11 = arith.constant 0 : i32
    %17 = tpu.memref_slice %arg2[%c0_i32_8, %c0_i32_11] : memref<32x128xf32, #tpu.memory_space<any>> -> memref<1x128xf32, #tpu.memory_space<any>>
    %18 = tpu.memref_squeeze %17 : memref<1x128xf32, #tpu.memory_space<any>> -> memref<128xf32, #tpu.memory_space<any>>
    %c0_i32_12 = arith.constant 0 : i32
    %19 = tpu.memref_slice %arg4[%16, %c0_i32_9, %c0_i32_10, %c0_i32_12] : memref<2x4x8x128xf32, #tpu.memory_space<vmem>> -> memref<1x1x1x128xf32, #tpu.memory_space<vmem>>
    %20 = tpu.memref_squeeze %19 : memref<1x1x1x128xf32, #tpu.memory_space<vmem>> -> memref<128xf32, #tpu.memory_space<vmem>>
    %21 = tpu.memref_slice %arg5[%16] : memref<2x!tpu.dma_semaphore, #tpu.memory_space<semaphore_mem>> -> memref<1x!tpu.dma_semaphore, #tpu.memory_space<semaphore_mem>>
    %22 = tpu.memref_squeeze %21 : memref<1x!tpu.dma_semaphore, #tpu.memory_space<semaphore_mem>> -> memref<!tpu.dma_semaphore, #tpu.memory_space<semaphore_mem>>
    tpu.wait_dma2 semaphore(%22 : memref<!tpu.dma_semaphore, #tpu.memory_space<semaphore_mem>>) src(%18 : memref<128xf32, #tpu.memory_space<any>>) dst(%20 : memref<128xf32, #tpu.memory_space<vmem>>)
    %c0_i32_13 = arith.constant 0 : i32
    %c0_i32_14 = arith.constant 0 : i32
    %c0_i32_15 = arith.constant 0 : i32
    %c0_i32_16 = arith.constant 0 : i32
    %23 = tpu.memref_slice %arg2[%c0_i32_13, %c0_i32_16] : memref<32x128xf32, #tpu.memory_space<any>> -> memref<1x128xf32, #tpu.memory_space<any>>
    %24 = tpu.memref_squeeze %23 : memref<1x128xf32, #tpu.memory_space<any>> -> memref<128xf32, #tpu.memory_space<any>>
    %c0_i32_17 = arith.constant 0 : i32
    %25 = tpu.memref_slice %arg4[%16, %c0_i32_14, %c0_i32_15, %c0_i32_17] : memref<2x4x8x128xf32, #tpu.memory_space<vmem>> -> memref<1x1x1x128xf32, #tpu.memory_space<vmem>>
    %26 = tpu.memref_squeeze %25 : memref<1x1x1x128xf32, #tpu.memory_space<vmem>> -> memref<128xf32, #tpu.memory_space<vmem>>
    %27 = tpu.memref_slice %arg5[%16] : memref<2x!tpu.dma_semaphore, #tpu.memory_space<semaphore_mem>> -> memref<1x!tpu.dma_semaphore, #tpu.memory_space<semaphore_mem>>
    %28 = tpu.memref_squeeze %27 : memref<1x!tpu.dma_semaphore, #tpu.memory_space<semaphore_mem>> -> memref<!tpu.dma_semaphore, #tpu.memory_space<semaphore_mem>>
    tpu.wait_dma2 semaphore(%28 : memref<!tpu.dma_semaphore, #tpu.memory_space<semaphore_mem>>) src(%24 : memref<128xf32, #tpu.memory_space<any>>) dst(%26 : memref<128xf32, #tpu.memory_space<vmem>>)
    %c0_i32_18 = arith.constant 0 : i32
    %c0_i32_19 = arith.constant 0 : i32
    %c0_i32_20 = arith.constant 0 : i32
    %c0_i32_21 = arith.constant 0 : i32
    %29 = tpu.memref_slice %arg2[%c0_i32_18, %c0_i32_21] : memref<32x128xf32, #tpu.memory_space<any>> -> memref<1x128xf32, #tpu.memory_space<any>>
    %30 = tpu.memref_squeeze %29 : memref<1x128xf32, #tpu.memory_space<any>> -> memref<128xf32, #tpu.memory_space<any>>
    %c0_i32_22 = arith.constant 0 : i32
    %31 = tpu.memref_slice %arg4[%16, %c0_i32_19, %c0_i32_20, %c0_i32_22] : memref<2x4x8x128xf32, #tpu.memory_space<vmem>> -> memref<1x1x1x128xf32, #tpu.memory_space<vmem>>
    %32 = tpu.memref_squeeze %31 : memref<1x1x1x128xf32, #tpu.memory_space<vmem>> -> memref<128xf32, #tpu.memory_space<vmem>>
    %33 = tpu.memref_slice %arg5[%16] : memref<2x!tpu.dma_semaphore, #tpu.memory_space<semaphore_mem>> -> memref<1x!tpu.dma_semaphore, #tpu.memory_space<semaphore_mem>>
    %34 = tpu.memref_squeeze %33 : memref<1x!tpu.dma_semaphore, #tpu.memory_space<semaphore_mem>> -> memref<!tpu.dma_semaphore, #tpu.memory_space<semaphore_mem>>
    tpu.wait_dma2 semaphore(%34 : memref<!tpu.dma_semaphore, #tpu.memory_space<semaphore_mem>>) src(%30 : memref<128xf32, #tpu.memory_space<any>>) dst(%32 : memref<128xf32, #tpu.memory_space<vmem>>)
    %c0_i32_23 = arith.constant 0 : i32
    %c0_i32_24 = arith.constant 0 : i32
    %c0_i32_25 = arith.constant 0 : i32
    %c0_i32_26 = arith.constant 0 : i32
    %35 = tpu.memref_slice %arg2[%c0_i32_23, %c0_i32_26] : memref<32x128xf32, #tpu.memory_space<any>> -> memref<1x128xf32, #tpu.memory_space<any>>
    %36 = tpu.memref_squeeze %35 : memref<1x128xf32, #tpu.memory_space<any>> -> memref<128xf32, #tpu.memory_space<any>>
    %c0_i32_27 = arith.constant 0 : i32
    %37 = tpu.memref_slice %arg4[%16, %c0_i32_24, %c0_i32_25, %c0_i32_27] : memref<2x4x8x128xf32, #tpu.memory_space<vmem>> -> memref<1x1x1x128xf32, #tpu.memory_space<vmem>>
    %38 = tpu.memref_squeeze %37 : memref<1x1x1x128xf32, #tpu.memory_space<vmem>> -> memref<128xf32, #tpu.memory_space<vmem>>
    %39 = tpu.memref_slice %arg5[%16] : memref<2x!tpu.dma_semaphore, #tpu.memory_space<semaphore_mem>> -> memref<1x!tpu.dma_semaphore, #tpu.memory_space<semaphore_mem>>
    %40 = tpu.memref_squeeze %39 : memref<1x!tpu.dma_semaphore, #tpu.memory_space<semaphore_mem>> -> memref<!tpu.dma_semaphore, #tpu.memory_space<semaphore_mem>>
    tpu.wait_dma2 semaphore(%40 : memref<!tpu.dma_semaphore, #tpu.memory_space<semaphore_mem>>) src(%36 : memref<128xf32, #tpu.memory_space<any>>) dst(%38 : memref<128xf32, #tpu.memory_space<vmem>>)
    %c0_i32_28 = arith.constant 0 : i32
    %c0_i32_29 = arith.constant 0 : i32
    %c0_i32_30 = arith.constant 0 : i32
    %c0_i32_31 = arith.constant 0 : i32
    %41 = tpu.memref_slice %arg2[%c0_i32_28, %c0_i32_31] : memref<32x128xf32, #tpu.memory_space<any>> -> memref<1x128xf32, #tpu.memory_space<any>>
    %42 = tpu.memref_squeeze %41 : memref<1x128xf32, #tpu.memory_space<any>> -> memref<128xf32, #tpu.memory_space<any>>
    %c0_i32_32 = arith.constant 0 : i32
    %43 = tpu.memref_slice %arg4[%16, %c0_i32_29, %c0_i32_30, %c0_i32_32] : memref<2x4x8x128xf32, #tpu.memory_space<vmem>> -> memref<1x1x1x128xf32, #tpu.memory_space<vmem>>
    %44 = tpu.memref_squeeze %43 : memref<1x1x1x128xf32, #tpu.memory_space<vmem>> -> memref<128xf32, #tpu.memory_space<vmem>>
    %45 = tpu.memref_slice %arg5[%16] : memref<2x!tpu.dma_semaphore, #tpu.memory_space<semaphore_mem>> -> memref<1x!tpu.dma_semaphore, #tpu.memory_space<semaphore_mem>>
    %46 = tpu.memref_squeeze %45 : memref<1x!tpu.dma_semaphore, #tpu.memory_space<semaphore_mem>> -> memref<!tpu.dma_semaphore, #tpu.memory_space<semaphore_mem>>
    tpu.wait_dma2 semaphore(%46 : memref<!tpu.dma_semaphore, #tpu.memory_space<semaphore_mem>>) src(%42 : memref<128xf32, #tpu.memory_space<any>>) dst(%44 : memref<128xf32, #tpu.memory_space<vmem>>)
    %c0_i32_33 = arith.constant 0 : i32
    %c0_i32_34 = arith.constant 0 : i32
    %c0_i32_35 = arith.constant 0 : i32
    %c0_i32_36 = arith.constant 0 : i32
    %47 = tpu.memref_slice %arg2[%c0_i32_33, %c0_i32_36] : memref<32x128xf32, #tpu.memory_space<any>> -> memref<1x128xf32, #tpu.memory_space<any>>
    %48 = tpu.memref_squeeze %47 : memref<1x128xf32, #tpu.memory_space<any>> -> memref<128xf32, #tpu.memory_space<any>>
    %c0_i32_37 = arith.constant 0 : i32
    %49 = tpu.memref_slice %arg4[%16, %c0_i32_34, %c0_i32_35, %c0_i32_37] : memref<2x4x8x128xf32, #tpu.memory_space<vmem>> -> memref<1x1x1x128xf32, #tpu.memory_space<vmem>>
    %50 = tpu.memref_squeeze %49 : memref<1x1x1x128xf32, #tpu.memory_space<vmem>> -> memref<128xf32, #tpu.memory_space<vmem>>
    %51 = tpu.memref_slice %arg5[%16] : memref<2x!tpu.dma_semaphore, #tpu.memory_space<semaphore_mem>> -> memref<1x!tpu.dma_semaphore, #tpu.memory_space<semaphore_mem>>
    %52 = tpu.memref_squeeze %51 : memref<1x!tpu.dma_semaphore, #tpu.memory_space<semaphore_mem>> -> memref<!tpu.dma_semaphore, #tpu.memory_space<semaphore_mem>>
    tpu.wait_dma2 semaphore(%52 : memref<!tpu.dma_semaphore, #tpu.memory_space<semaphore_mem>>) src(%48 : memref<128xf32, #tpu.memory_space<any>>) dst(%50 : memref<128xf32, #tpu.memory_space<vmem>>)
    %c0_i32_38 = arith.constant 0 : i32
    %c0_i32_39 = arith.constant 0 : i32
    %c0_i32_40 = arith.constant 0 : i32
    %c0_i32_41 = arith.constant 0 : i32
    %53 = tpu.memref_slice %arg2[%c0_i32_38, %c0_i32_41] : memref<32x128xf32, #tpu.memory_space<any>> -> memref<1x128xf32, #tpu.memory_space<any>>
    %54 = tpu.memref_squeeze %53 : memref<1x128xf32, #tpu.memory_space<any>> -> memref<128xf32, #tpu.memory_space<any>>
    %c0_i32_42 = arith.constant 0 : i32
    %55 = tpu.memref_slice %arg4[%16, %c0_i32_39, %c0_i32_40, %c0_i32_42] : memref<2x4x8x128xf32, #tpu.memory_space<vmem>> -> memref<1x1x1x128xf32, #tpu.memory_space<vmem>>
    %56 = tpu.memref_squeeze %55 : memref<1x1x1x128xf32, #tpu.memory_space<vmem>> -> memref<128xf32, #tpu.memory_space<vmem>>
    %57 = tpu.memref_slice %arg5[%16] : memref<2x!tpu.dma_semaphore, #tpu.memory_space<semaphore_mem>> -> memref<1x!tpu.dma_semaphore, #tpu.memory_space<semaphore_mem>>
    %58 = tpu.memref_squeeze %57 : memref<1x!tpu.dma_semaphore, #tpu.memory_space<semaphore_mem>> -> memref<!tpu.dma_semaphore, #tpu.memory_space<semaphore_mem>>
    tpu.wait_dma2 semaphore(%58 : memref<!tpu.dma_semaphore, #tpu.memory_space<semaphore_mem>>) src(%54 : memref<128xf32, #tpu.memory_space<any>>) dst(%56 : memref<128xf32, #tpu.memory_space<vmem>>)
    %c0_i32_43 = arith.constant 0 : i32
    %c0_i32_44 = arith.constant 0 : i32
    %c0_i32_45 = arith.constant 0 : i32
    %c0_i32_46 = arith.constant 0 : i32
    %59 = tpu.memref_slice %arg2[%c0_i32_43, %c0_i32_46] : memref<32x128xf32, #tpu.memory_space<any>> -> memref<1x128xf32, #tpu.memory_space<any>>
    %60 = tpu.memref_squeeze %59 : memref<1x128xf32, #tpu.memory_space<any>> -> memref<128xf32, #tpu.memory_space<any>>
    %c0_i32_47 = arith.constant 0 : i32
    %61 = tpu.memref_slice %arg4[%16, %c0_i32_44, %c0_i32_45, %c0_i32_47] : memref<2x4x8x128xf32, #tpu.memory_space<vmem>> -> memref<1x1x1x128xf32, #tpu.memory_space<vmem>>
    %62 = tpu.memref_squeeze %61 : memref<1x1x1x128xf32, #tpu.memory_space<vmem>> -> memref<128xf32, #tpu.memory_space<vmem>>
    %63 = tpu.memref_slice %arg5[%16] : memref<2x!tpu.dma_semaphore, #tpu.memory_space<semaphore_mem>> -> memref<1x!tpu.dma_semaphore, #tpu.memory_space<semaphore_mem>>
    %64 = tpu.memref_squeeze %63 : memref<1x!tpu.dma_semaphore, #tpu.memory_space<semaphore_mem>> -> memref<!tpu.dma_semaphore, #tpu.memory_space<semaphore_mem>>
    tpu.wait_dma2 semaphore(%64 : memref<!tpu.dma_semaphore, #tpu.memory_space<semaphore_mem>>) src(%60 : memref<128xf32, #tpu.memory_space<any>>) dst(%62 : memref<128xf32, #tpu.memory_space<vmem>>)
    %c0_i32_48 = arith.constant 0 : i32
    %c0_i32_49 = arith.constant 0 : i32
    %c0_i32_50 = arith.constant 0 : i32
    %c0_i32_51 = arith.constant 0 : i32
    %65 = tpu.memref_slice %arg2[%c0_i32_48, %c0_i32_51] : memref<32x128xf32, #tpu.memory_space<any>> -> memref<1x128xf32, #tpu.memory_space<any>>
    %66 = tpu.memref_squeeze %65 : memref<1x128xf32, #tpu.memory_space<any>> -> memref<128xf32, #tpu.memory_space<any>>
    %c0_i32_52 = arith.constant 0 : i32
    %67 = tpu.memref_slice %arg4[%16, %c0_i32_49, %c0_i32_50, %c0_i32_52] : memref<2x4x8x128xf32, #tpu.memory_space<vmem>> -> memref<1x1x1x128xf32, #tpu.memory_space<vmem>>
    %68 = tpu.memref_squeeze %67 : memref<1x1x1x128xf32, #tpu.memory_space<vmem>> -> memref<128xf32, #tpu.memory_space<vmem>>
    %69 = tpu.memref_slice %arg5[%16] : memref<2x!tpu.dma_semaphore, #tpu.memory_space<semaphore_mem>> -> memref<1x!tpu.dma_semaphore, #tpu.memory_space<semaphore_mem>>
    %70 = tpu.memref_squeeze %69 : memref<1x!tpu.dma_semaphore, #tpu.memory_space<semaphore_mem>> -> memref<!tpu.dma_semaphore, #tpu.memory_space<semaphore_mem>>
    tpu.wait_dma2 semaphore(%70 : memref<!tpu.dma_semaphore, #tpu.memory_space<semaphore_mem>>) src(%66 : memref<128xf32, #tpu.memory_space<any>>) dst(%68 : memref<128xf32, #tpu.memory_space<vmem>>)
    %c0_i32_53 = arith.constant 0 : i32
    %c0_i32_54 = arith.constant 0 : i32
    %c0_i32_55 = arith.constant 0 : i32
    %c0_i32_56 = arith.constant 0 : i32
    %71 = tpu.memref_slice %arg2[%c0_i32_53, %c0_i32_56] : memref<32x128xf32, #tpu.memory_space<any>> -> memref<1x128xf32, #tpu.memory_space<any>>
    %72 = tpu.memref_squeeze %71 : memref<1x128xf32, #tpu.memory_space<any>> -> memref<128xf32, #tpu.memory_space<any>>
    %c0_i32_57 = arith.constant 0 : i32
    %73 = tpu.memref_slice %arg4[%16, %c0_i32_54, %c0_i32_55, %c0_i32_57] : memref<2x4x8x128xf32, #tpu.memory_space<vmem>> -> memref<1x1x1x128xf32, #tpu.memory_space<vmem>>
    %74 = tpu.memref_squeeze %73 : memref<1x1x1x128xf32, #tpu.memory_space<vmem>> -> memref<128xf32, #tpu.memory_space<vmem>>
    %75 = tpu.memref_slice %arg5[%16] : memref<2x!tpu.dma_semaphore, #tpu.memory_space<semaphore_mem>> -> memref<1x!tpu.dma_semaphore, #tpu.memory_space<semaphore_mem>>
    %76 = tpu.memref_squeeze %75 : memref<1x!tpu.dma_semaphore, #tpu.memory_space<semaphore_mem>> -> memref<!tpu.dma_semaphore, #tpu.memory_space<semaphore_mem>>
    tpu.wait_dma2 semaphore(%76 : memref<!tpu.dma_semaphore, #tpu.memory_space<semaphore_mem>>) src(%72 : memref<128xf32, #tpu.memory_space<any>>) dst(%74 : memref<128xf32, #tpu.memory_space<vmem>>)
    %c0_i32_58 = arith.constant 0 : i32
    %c0_i32_59 = arith.constant 0 : i32
    %c0_i32_60 = arith.constant 0 : i32
    %c0_i32_61 = arith.constant 0 : i32
    %77 = tpu.memref_slice %arg2[%c0_i32_58, %c0_i32_61] : memref<32x128xf32, #tpu.memory_space<any>> -> memref<1x128xf32, #tpu.memory_space<any>>
    %78 = tpu.memref_squeeze %77 : memref<1x128xf32, #tpu.memory_space<any>> -> memref<128xf32, #tpu.memory_space<any>>
    %c0_i32_62 = arith.constant 0 : i32
    %79 = tpu.memref_slice %arg4[%16, %c0_i32_59, %c0_i32_60, %c0_i32_62] : memref<2x4x8x128xf32, #tpu.memory_space<vmem>> -> memref<1x1x1x128xf32, #tpu.memory_space<vmem>>
    %80 = tpu.memref_squeeze %79 : memref<1x1x1x128xf32, #tpu.memory_space<vmem>> -> memref<128xf32, #tpu.memory_space<vmem>>
    %81 = tpu.memref_slice %arg5[%16] : memref<2x!tpu.dma_semaphore, #tpu.memory_space<semaphore_mem>> -> memref<1x!tpu.dma_semaphore, #tpu.memory_space<semaphore_mem>>
    %82 = tpu.memref_squeeze %81 : memref<1x!tpu.dma_semaphore, #tpu.memory_space<semaphore_mem>> -> memref<!tpu.dma_semaphore, #tpu.memory_space<semaphore_mem>>
    tpu.wait_dma2 semaphore(%82 : memref<!tpu.dma_semaphore, #tpu.memory_space<semaphore_mem>>) src(%78 : memref<128xf32, #tpu.memory_space<any>>) dst(%80 : memref<128xf32, #tpu.memory_space<vmem>>)
    %c0_i32_63 = arith.constant 0 : i32
    %c0_i32_64 = arith.constant 0 : i32
    %c0_i32_65 = arith.constant 0 : i32
    %c0_i32_66 = arith.constant 0 : i32
    %83 = tpu.memref_slice %arg2[%c0_i32_63, %c0_i32_66] : memref<32x128xf32, #tpu.memory_space<any>> -> memref<1x128xf32, #tpu.memory_space<any>>
    %84 = tpu.memref_squeeze %83 : memref<1x128xf32, #tpu.memory_space<any>> -> memref<128xf32, #tpu.memory_space<any>>
    %c0_i32_67 = arith.constant 0 : i32
    %85 = tpu.memref_slice %arg4[%16, %c0_i32_64, %c0_i32_65, %c0_i32_67] : memref<2x4x8x128xf32, #tpu.memory_space<vmem>> -> memref<1x1x1x128xf32, #tpu.memory_space<vmem>>
    %86 = tpu.memref_squeeze %85 : memref<1x1x1x128xf32, #tpu.memory_space<vmem>> -> memref<128xf32, #tpu.memory_space<vmem>>
    %87 = tpu.memref_slice %arg5[%16] : memref<2x!tpu.dma_semaphore, #tpu.memory_space<semaphore_mem>> -> memref<1x!tpu.dma_semaphore, #tpu.memory_space<semaphore_mem>>
    %88 = tpu.memref_squeeze %87 : memref<1x!tpu.dma_semaphore, #tpu.memory_space<semaphore_mem>> -> memref<!tpu.dma_semaphore, #tpu.memory_space<semaphore_mem>>
    tpu.wait_dma2 semaphore(%88 : memref<!tpu.dma_semaphore, #tpu.memory_space<semaphore_mem>>) src(%84 : memref<128xf32, #tpu.memory_space<any>>) dst(%86 : memref<128xf32, #tpu.memory_space<vmem>>)
    %c0_i32_68 = arith.constant 0 : i32
    %c0_i32_69 = arith.constant 0 : i32
    %c0_i32_70 = arith.constant 0 : i32
    %c0_i32_71 = arith.constant 0 : i32
    %89 = tpu.memref_slice %arg2[%c0_i32_68, %c0_i32_71] : memref<32x128xf32, #tpu.memory_space<any>> -> memref<1x128xf32, #tpu.memory_space<any>>
    %90 = tpu.memref_squeeze %89 : memref<1x128xf32, #tpu.memory_space<any>> -> memref<128xf32, #tpu.memory_space<any>>
    %c0_i32_72 = arith.constant 0 : i32
    %91 = tpu.memref_slice %arg4[%16, %c0_i32_69, %c0_i32_70, %c0_i32_72] : memref<2x4x8x128xf32, #tpu.memory_space<vmem>> -> memref<1x1x1x128xf32, #tpu.memory_space<vmem>>
    %92 = tpu.memref_squeeze %91 : memref<1x1x1x128xf32, #tpu.memory_space<vmem>> -> memref<128xf32, #tpu.memory_space<vmem>>
    %93 = tpu.memref_slice %arg5[%16] : memref<2x!tpu.dma_semaphore, #tpu.memory_space<semaphore_mem>> -> memref<1x!tpu.dma_semaphore, #tpu.memory_space<semaphore_mem>>
    %94 = tpu.memref_squeeze %93 : memref<1x!tpu.dma_semaphore, #tpu.memory_space<semaphore_mem>> -> memref<!tpu.dma_semaphore, #tpu.memory_space<semaphore_mem>>
    tpu.wait_dma2 semaphore(%94 : memref<!tpu.dma_semaphore, #tpu.memory_space<semaphore_mem>>) src(%90 : memref<128xf32, #tpu.memory_space<any>>) dst(%92 : memref<128xf32, #tpu.memory_space<vmem>>)
    %c0_i32_73 = arith.constant 0 : i32
    %c0_i32_74 = arith.constant 0 : i32
    %c0_i32_75 = arith.constant 0 : i32
    %c0_i32_76 = arith.constant 0 : i32
    %95 = tpu.memref_slice %arg2[%c0_i32_73, %c0_i32_76] : memref<32x128xf32, #tpu.memory_space<any>> -> memref<1x128xf32, #tpu.memory_space<any>>
    %96 = tpu.memref_squeeze %95 : memref<1x128xf32, #tpu.memory_space<any>> -> memref<128xf32, #tpu.memory_space<any>>
    %c0_i32_77 = arith.constant 0 : i32
    %97 = tpu.memref_slice %arg4[%16, %c0_i32_74, %c0_i32_75, %c0_i32_77] : memref<2x4x8x128xf32, #tpu.memory_space<vmem>> -> memref<1x1x1x128xf32, #tpu.memory_space<vmem>>
    %98 = tpu.memref_squeeze %97 : memref<1x1x1x128xf32, #tpu.memory_space<vmem>> -> memref<128xf32, #tpu.memory_space<vmem>>
    %99 = tpu.memref_slice %arg5[%16] : memref<2x!tpu.dma_semaphore, #tpu.memory_space<semaphore_mem>> -> memref<1x!tpu.dma_semaphore, #tpu.memory_space<semaphore_mem>>
    %100 = tpu.memref_squeeze %99 : memref<1x!tpu.dma_semaphore, #tpu.memory_space<semaphore_mem>> -> memref<!tpu.dma_semaphore, #tpu.memory_space<semaphore_mem>>
    tpu.wait_dma2 semaphore(%100 : memref<!tpu.dma_semaphore, #tpu.memory_space<semaphore_mem>>) src(%96 : memref<128xf32, #tpu.memory_space<any>>) dst(%98 : memref<128xf32, #tpu.memory_space<vmem>>)
    %c0_i32_78 = arith.constant 0 : i32
    %c0_i32_79 = arith.constant 0 : i32
    %c0_i32_80 = arith.constant 0 : i32
    %c0_i32_81 = arith.constant 0 : i32
    %101 = tpu.memref_slice %arg2[%c0_i32_78, %c0_i32_81] : memref<32x128xf32, #tpu.memory_space<any>> -> memref<1x128xf32, #tpu.memory_space<any>>
    %102 = tpu.memref_squeeze %101 : memref<1x128xf32, #tpu.memory_space<any>> -> memref<128xf32, #tpu.memory_space<any>>
    %c0_i32_82 = arith.constant 0 : i32
    %103 = tpu.memref_slice %arg4[%16, %c0_i32_79, %c0_i32_80, %c0_i32_82] : memref<2x4x8x128xf32, #tpu.memory_space<vmem>> -> memref<1x1x1x128xf32, #tpu.memory_space<vmem>>
    %104 = tpu.memref_squeeze %103 : memref<1x1x1x128xf32, #tpu.memory_space<vmem>> -> memref<128xf32, #tpu.memory_space<vmem>>
    %105 = tpu.memref_slice %arg5[%16] : memref<2x!tpu.dma_semaphore, #tpu.memory_space<semaphore_mem>> -> memref<1x!tpu.dma_semaphore, #tpu.memory_space<semaphore_mem>>
    %106 = tpu.memref_squeeze %105 : memref<1x!tpu.dma_semaphore, #tpu.memory_space<semaphore_mem>> -> memref<!tpu.dma_semaphore, #tpu.memory_space<semaphore_mem>>
    tpu.wait_dma2 semaphore(%106 : memref<!tpu.dma_semaphore, #tpu.memory_space<semaphore_mem>>) src(%102 : memref<128xf32, #tpu.memory_space<any>>) dst(%104 : memref<128xf32, #tpu.memory_space<vmem>>)
    %c0_i32_83 = arith.constant 0 : i32
    %c0_i32_84 = arith.constant 0 : i32
    %c0_i32_85 = arith.constant 0 : i32
    %c0_i32_86 = arith.constant 0 : i32
    %107 = tpu.memref_slice %arg2[%c0_i32_83, %c0_i32_86] : memref<32x128xf32, #tpu.memory_space<any>> -> memref<1x128xf32, #tpu.memory_space<any>>
    %108 = tpu.memref_squeeze %107 : memref<1x128xf32, #tpu.memory_space<any>> -> memref<128xf32, #tpu.memory_space<any>>
    %c0_i32_87 = arith.constant 0 : i32
    %109 = tpu.memref_slice %arg4[%16, %c0_i32_84, %c0_i32_85, %c0_i32_87] : memref<2x4x8x128xf32, #tpu.memory_space<vmem>> -> memref<1x1x1x128xf32, #tpu.memory_space<vmem>>
    %110 = tpu.memref_squeeze %109 : memref<1x1x1x128xf32, #tpu.memory_space<vmem>> -> memref<128xf32, #tpu.memory_space<vmem>>
    %111 = tpu.memref_slice %arg5[%16] : memref<2x!tpu.dma_semaphore, #tpu.memory_space<semaphore_mem>> -> memref<1x!tpu.dma_semaphore, #tpu.memory_space<semaphore_mem>>
    %112 = tpu.memref_squeeze %111 : memref<1x!tpu.dma_semaphore, #tpu.memory_space<semaphore_mem>> -> memref<!tpu.dma_semaphore, #tpu.memory_space<semaphore_mem>>
    tpu.wait_dma2 semaphore(%112 : memref<!tpu.dma_semaphore, #tpu.memory_space<semaphore_mem>>) src(%108 : memref<128xf32, #tpu.memory_space<any>>) dst(%110 : memref<128xf32, #tpu.memory_space<vmem>>)
    %c0_i32_88 = arith.constant 0 : i32
    %c0_i32_89 = arith.constant 0 : i32
    %c0_i32_90 = arith.constant 0 : i32
    %c0_i32_91 = arith.constant 0 : i32
    %113 = tpu.memref_slice %arg2[%c0_i32_88, %c0_i32_91] : memref<32x128xf32, #tpu.memory_space<any>> -> memref<1x128xf32, #tpu.memory_space<any>>
    %114 = tpu.memref_squeeze %113 : memref<1x128xf32, #tpu.memory_space<any>> -> memref<128xf32, #tpu.memory_space<any>>
    %c0_i32_92 = arith.constant 0 : i32
    %115 = tpu.memref_slice %arg4[%16, %c0_i32_89, %c0_i32_90, %c0_i32_92] : memref<2x4x8x128xf32, #tpu.memory_space<vmem>> -> memref<1x1x1x128xf32, #tpu.memory_space<vmem>>
    %116 = tpu.memref_squeeze %115 : memref<1x1x1x128xf32, #tpu.memory_space<vmem>> -> memref<128xf32, #tpu.memory_space<vmem>>
    %117 = tpu.memref_slice %arg5[%16] : memref<2x!tpu.dma_semaphore, #tpu.memory_space<semaphore_mem>> -> memref<1x!tpu.dma_semaphore, #tpu.memory_space<semaphore_mem>>
    %118 = tpu.memref_squeeze %117 : memref<1x!tpu.dma_semaphore, #tpu.memory_space<semaphore_mem>> -> memref<!tpu.dma_semaphore, #tpu.memory_space<semaphore_mem>>
    tpu.wait_dma2 semaphore(%118 : memref<!tpu.dma_semaphore, #tpu.memory_space<semaphore_mem>>) src(%114 : memref<128xf32, #tpu.memory_space<any>>) dst(%116 : memref<128xf32, #tpu.memory_space<vmem>>)
    %c0_i32_93 = arith.constant 0 : i32
    %c0_i32_94 = arith.constant 0 : i32
    %c0_i32_95 = arith.constant 0 : i32
    %c0_i32_96 = arith.constant 0 : i32
    %119 = tpu.memref_slice %arg2[%c0_i32_93, %c0_i32_96] : memref<32x128xf32, #tpu.memory_space<any>> -> memref<1x128xf32, #tpu.memory_space<any>>
    %120 = tpu.memref_squeeze %119 : memref<1x128xf32, #tpu.memory_space<any>> -> memref<128xf32, #tpu.memory_space<any>>
    %c0_i32_97 = arith.constant 0 : i32
    %121 = tpu.memref_slice %arg4[%16, %c0_i32_94, %c0_i32_95, %c0_i32_97] : memref<2x4x8x128xf32, #tpu.memory_space<vmem>> -> memref<1x1x1x128xf32, #tpu.memory_space<vmem>>
    %122 = tpu.memref_squeeze %121 : memref<1x1x1x128xf32, #tpu.memory_space<vmem>> -> memref<128xf32, #tpu.memory_space<vmem>>
    %123 = tpu.memref_slice %arg5[%16] : memref<2x!tpu.dma_semaphore, #tpu.memory_space<semaphore_mem>> -> memref<1x!tpu.dma_semaphore, #tpu.memory_space<semaphore_mem>>
    %124 = tpu.memref_squeeze %123 : memref<1x!tpu.dma_semaphore, #tpu.memory_space<semaphore_mem>> -> memref<!tpu.dma_semaphore, #tpu.memory_space<semaphore_mem>>
    tpu.wait_dma2 semaphore(%124 : memref<!tpu.dma_semaphore, #tpu.memory_space<semaphore_mem>>) src(%120 : memref<128xf32, #tpu.memory_space<any>>) dst(%122 : memref<128xf32, #tpu.memory_space<vmem>>)
    %c0_i32_98 = arith.constant 0 : i32
    %c0_i32_99 = arith.constant 0 : i32
    %c0_i32_100 = arith.constant 0 : i32
    %c0_i32_101 = arith.constant 0 : i32
    %125 = tpu.memref_slice %arg2[%c0_i32_98, %c0_i32_101] : memref<32x128xf32, #tpu.memory_space<any>> -> memref<1x128xf32, #tpu.memory_space<any>>
    %126 = tpu.memref_squeeze %125 : memref<1x128xf32, #tpu.memory_space<any>> -> memref<128xf32, #tpu.memory_space<any>>
    %c0_i32_102 = arith.constant 0 : i32
    %127 = tpu.memref_slice %arg4[%16, %c0_i32_99, %c0_i32_100, %c0_i32_102] : memref<2x4x8x128xf32, #tpu.memory_space<vmem>> -> memref<1x1x1x128xf32, #tpu.memory_space<vmem>>
    %128 = tpu.memref_squeeze %127 : memref<1x1x1x128xf32, #tpu.memory_space<vmem>> -> memref<128xf32, #tpu.memory_space<vmem>>
    %129 = tpu.memref_slice %arg5[%16] : memref<2x!tpu.dma_semaphore, #tpu.memory_space<semaphore_mem>> -> memref<1x!tpu.dma_semaphore, #tpu.memory_space<semaphore_mem>>
    %130 = tpu.memref_squeeze %129 : memref<1x!tpu.dma_semaphore, #tpu.memory_space<semaphore_mem>> -> memref<!tpu.dma_semaphore, #tpu.memory_space<semaphore_mem>>
    tpu.wait_dma2 semaphore(%130 : memref<!tpu.dma_semaphore, #tpu.memory_space<semaphore_mem>>) src(%126 : memref<128xf32, #tpu.memory_space<any>>) dst(%128 : memref<128xf32, #tpu.memory_space<vmem>>)
    %c0_i32_103 = arith.constant 0 : i32
    %c0_i32_104 = arith.constant 0 : i32
    %c0_i32_105 = arith.constant 0 : i32
    %c0_i32_106 = arith.constant 0 : i32
    %131 = tpu.memref_slice %arg2[%c0_i32_103, %c0_i32_106] : memref<32x128xf32, #tpu.memory_space<any>> -> memref<1x128xf32, #tpu.memory_space<any>>
    %132 = tpu.memref_squeeze %131 : memref<1x128xf32, #tpu.memory_space<any>> -> memref<128xf32, #tpu.memory_space<any>>
    %c0_i32_107 = arith.constant 0 : i32
    %133 = tpu.memref_slice %arg4[%16, %c0_i32_104, %c0_i32_105, %c0_i32_107] : memref<2x4x8x128xf32, #tpu.memory_space<vmem>> -> memref<1x1x1x128xf32, #tpu.memory_space<vmem>>
    %134 = tpu.memref_squeeze %133 : memref<1x1x1x128xf32, #tpu.memory_space<vmem>> -> memref<128xf32, #tpu.memory_space<vmem>>
    %135 = tpu.memref_slice %arg5[%16] : memref<2x!tpu.dma_semaphore, #tpu.memory_space<semaphore_mem>> -> memref<1x!tpu.dma_semaphore, #tpu.memory_space<semaphore_mem>>
    %136 = tpu.memref_squeeze %135 : memref<1x!tpu.dma_semaphore, #tpu.memory_space<semaphore_mem>> -> memref<!tpu.dma_semaphore, #tpu.memory_space<semaphore_mem>>
    tpu.wait_dma2 semaphore(%136 : memref<!tpu.dma_semaphore, #tpu.memory_space<semaphore_mem>>) src(%132 : memref<128xf32, #tpu.memory_space<any>>) dst(%134 : memref<128xf32, #tpu.memory_space<vmem>>)
    %c0_i32_108 = arith.constant 0 : i32
    %c0_i32_109 = arith.constant 0 : i32
    %c0_i32_110 = arith.constant 0 : i32
    %c0_i32_111 = arith.constant 0 : i32
    %137 = tpu.memref_slice %arg2[%c0_i32_108, %c0_i32_111] : memref<32x128xf32, #tpu.memory_space<any>> -> memref<1x128xf32, #tpu.memory_space<any>>
    %138 = tpu.memref_squeeze %137 : memref<1x128xf32, #tpu.memory_space<any>> -> memref<128xf32, #tpu.memory_space<any>>
    %c0_i32_112 = arith.constant 0 : i32
    %139 = tpu.memref_slice %arg4[%16, %c0_i32_109, %c0_i32_110, %c0_i32_112] : memref<2x4x8x128xf32, #tpu.memory_space<vmem>> -> memref<1x1x1x128xf32, #tpu.memory_space<vmem>>
    %140 = tpu.memref_squeeze %139 : memref<1x1x1x128xf32, #tpu.memory_space<vmem>> -> memref<128xf32, #tpu.memory_space<vmem>>
    %141 = tpu.memref_slice %arg5[%16] : memref<2x!tpu.dma_semaphore, #tpu.memory_space<semaphore_mem>> -> memref<1x!tpu.dma_semaphore, #tpu.memory_space<semaphore_mem>>
    %142 = tpu.memref_squeeze %141 : memref<1x!tpu.dma_semaphore, #tpu.memory_space<semaphore_mem>> -> memref<!tpu.dma_semaphore, #tpu.memory_space<semaphore_mem>>
    tpu.wait_dma2 semaphore(%142 : memref<!tpu.dma_semaphore, #tpu.memory_space<semaphore_mem>>) src(%138 : memref<128xf32, #tpu.memory_space<any>>) dst(%140 : memref<128xf32, #tpu.memory_space<vmem>>)
    %c0_i32_113 = arith.constant 0 : i32
    %c0_i32_114 = arith.constant 0 : i32
    %c0_i32_115 = arith.constant 0 : i32
    %c0_i32_116 = arith.constant 0 : i32
    %143 = tpu.memref_slice %arg2[%c0_i32_113, %c0_i32_116] : memref<32x128xf32, #tpu.memory_space<any>> -> memref<1x128xf32, #tpu.memory_space<any>>
    %144 = tpu.memref_squeeze %143 : memref<1x128xf32, #tpu.memory_space<any>> -> memref<128xf32, #tpu.memory_space<any>>
    %c0_i32_117 = arith.constant 0 : i32
    %145 = tpu.memref_slice %arg4[%16, %c0_i32_114, %c0_i32_115, %c0_i32_117] : memref<2x4x8x128xf32, #tpu.memory_space<vmem>> -> memref<1x1x1x128xf32, #tpu.memory_space<vmem>>
    %146 = tpu.memref_squeeze %145 : memref<1x1x1x128xf32, #tpu.memory_space<vmem>> -> memref<128xf32, #tpu.memory_space<vmem>>
    %147 = tpu.memref_slice %arg5[%16] : memref<2x!tpu.dma_semaphore, #tpu.memory_space<semaphore_mem>> -> memref<1x!tpu.dma_semaphore, #tpu.memory_space<semaphore_mem>>
    %148 = tpu.memref_squeeze %147 : memref<1x!tpu.dma_semaphore, #tpu.memory_space<semaphore_mem>> -> memref<!tpu.dma_semaphore, #tpu.memory_space<semaphore_mem>>
    tpu.wait_dma2 semaphore(%148 : memref<!tpu.dma_semaphore, #tpu.memory_space<semaphore_mem>>) src(%144 : memref<128xf32, #tpu.memory_space<any>>) dst(%146 : memref<128xf32, #tpu.memory_space<vmem>>)
    %c0_i32_118 = arith.constant 0 : i32
    %c0_i32_119 = arith.constant 0 : i32
    %c0_i32_120 = arith.constant 0 : i32
    %c0_i32_121 = arith.constant 0 : i32
    %149 = tpu.memref_slice %arg2[%c0_i32_118, %c0_i32_121] : memref<32x128xf32, #tpu.memory_space<any>> -> memref<1x128xf32, #tpu.memory_space<any>>
    %150 = tpu.memref_squeeze %149 : memref<1x128xf32, #tpu.memory_space<any>> -> memref<128xf32, #tpu.memory_space<any>>
    %c0_i32_122 = arith.constant 0 : i32
    %151 = tpu.memref_slice %arg4[%16, %c0_i32_119, %c0_i32_120, %c0_i32_122] : memref<2x4x8x128xf32, #tpu.memory_space<vmem>> -> memref<1x1x1x128xf32, #tpu.memory_space<vmem>>
    %152 = tpu.memref_squeeze %151 : memref<1x1x1x128xf32, #tpu.memory_space<vmem>> -> memref<128xf32, #tpu.memory_space<vmem>>
    %153 = tpu.memref_slice %arg5[%16] : memref<2x!tpu.dma_semaphore, #tpu.memory_space<semaphore_mem>> -> memref<1x!tpu.dma_semaphore, #tpu.memory_space<semaphore_mem>>
    %154 = tpu.memref_squeeze %153 : memref<1x!tpu.dma_semaphore, #tpu.memory_space<semaphore_mem>> -> memref<!tpu.dma_semaphore, #tpu.memory_space<semaphore_mem>>
    tpu.wait_dma2 semaphore(%154 : memref<!tpu.dma_semaphore, #tpu.memory_space<semaphore_mem>>) src(%150 : memref<128xf32, #tpu.memory_space<any>>) dst(%152 : memref<128xf32, #tpu.memory_space<vmem>>)
    %c0_i32_123 = arith.constant 0 : i32
    %c0_i32_124 = arith.constant 0 : i32
    %c0_i32_125 = arith.constant 0 : i32
    %c0_i32_126 = arith.constant 0 : i32
    %155 = tpu.memref_slice %arg2[%c0_i32_123, %c0_i32_126] : memref<32x128xf32, #tpu.memory_space<any>> -> memref<1x128xf32, #tpu.memory_space<any>>
    %156 = tpu.memref_squeeze %155 : memref<1x128xf32, #tpu.memory_space<any>> -> memref<128xf32, #tpu.memory_space<any>>
    %c0_i32_127 = arith.constant 0 : i32
    %157 = tpu.memref_slice %arg4[%16, %c0_i32_124, %c0_i32_125, %c0_i32_127] : memref<2x4x8x128xf32, #tpu.memory_space<vmem>> -> memref<1x1x1x128xf32, #tpu.memory_space<vmem>>
    %158 = tpu.memref_squeeze %157 : memref<1x1x1x128xf32, #tpu.memory_space<vmem>> -> memref<128xf32, #tpu.memory_space<vmem>>
    %159 = tpu.memref_slice %arg5[%16] : memref<2x!tpu.dma_semaphore, #tpu.memory_space<semaphore_mem>> -> memref<1x!tpu.dma_semaphore, #tpu.memory_space<semaphore_mem>>
    %160 = tpu.memref_squeeze %159 : memref<1x!tpu.dma_semaphore, #tpu.memory_space<semaphore_mem>> -> memref<!tpu.dma_semaphore, #tpu.memory_space<semaphore_mem>>
    tpu.wait_dma2 semaphore(%160 : memref<!tpu.dma_semaphore, #tpu.memory_space<semaphore_mem>>) src(%156 : memref<128xf32, #tpu.memory_space<any>>) dst(%158 : memref<128xf32, #tpu.memory_space<vmem>>)
    %c0_i32_128 = arith.constant 0 : i32
    %c0_i32_129 = arith.constant 0 : i32
    %c0_i32_130 = arith.constant 0 : i32
    %c0_i32_131 = arith.constant 0 : i32
    %161 = tpu.memref_slice %arg2[%c0_i32_128, %c0_i32_131] : memref<32x128xf32, #tpu.memory_space<any>> -> memref<1x128xf32, #tpu.memory_space<any>>
    %162 = tpu.memref_squeeze %161 : memref<1x128xf32, #tpu.memory_space<any>> -> memref<128xf32, #tpu.memory_space<any>>
    %c0_i32_132 = arith.constant 0 : i32
    %163 = tpu.memref_slice %arg4[%16, %c0_i32_129, %c0_i32_130, %c0_i32_132] : memref<2x4x8x128xf32, #tpu.memory_space<vmem>> -> memref<1x1x1x128xf32, #tpu.memory_space<vmem>>
    %164 = tpu.memref_squeeze %163 : memref<1x1x1x128xf32, #tpu.memory_space<vmem>> -> memref<128xf32, #tpu.memory_space<vmem>>
    %165 = tpu.memref_slice %arg5[%16] : memref<2x!tpu.dma_semaphore, #tpu.memory_space<semaphore_mem>> -> memref<1x!tpu.dma_semaphore, #tpu.memory_space<semaphore_mem>>
    %166 = tpu.memref_squeeze %165 : memref<1x!tpu.dma_semaphore, #tpu.memory_space<semaphore_mem>> -> memref<!tpu.dma_semaphore, #tpu.memory_space<semaphore_mem>>
    tpu.wait_dma2 semaphore(%166 : memref<!tpu.dma_semaphore, #tpu.memory_space<semaphore_mem>>) src(%162 : memref<128xf32, #tpu.memory_space<any>>) dst(%164 : memref<128xf32, #tpu.memory_space<vmem>>)
    %c0_i32_133 = arith.constant 0 : i32
    %c0_i32_134 = arith.constant 0 : i32
    %c0_i32_135 = arith.constant 0 : i32
    %c0_i32_136 = arith.constant 0 : i32
    %167 = tpu.memref_slice %arg2[%c0_i32_133, %c0_i32_136] : memref<32x128xf32, #tpu.memory_space<any>> -> memref<1x128xf32, #tpu.memory_space<any>>
    %168 = tpu.memref_squeeze %167 : memref<1x128xf32, #tpu.memory_space<any>> -> memref<128xf32, #tpu.memory_space<any>>
    %c0_i32_137 = arith.constant 0 : i32
    %169 = tpu.memref_slice %arg4[%16, %c0_i32_134, %c0_i32_135, %c0_i32_137] : memref<2x4x8x128xf32, #tpu.memory_space<vmem>> -> memref<1x1x1x128xf32, #tpu.memory_space<vmem>>
    %170 = tpu.memref_squeeze %169 : memref<1x1x1x128xf32, #tpu.memory_space<vmem>> -> memref<128xf32, #tpu.memory_space<vmem>>
    %171 = tpu.memref_slice %arg5[%16] : memref<2x!tpu.dma_semaphore, #tpu.memory_space<semaphore_mem>> -> memref<1x!tpu.dma_semaphore, #tpu.memory_space<semaphore_mem>>
    %172 = tpu.memref_squeeze %171 : memref<1x!tpu.dma_semaphore, #tpu.memory_space<semaphore_mem>> -> memref<!tpu.dma_semaphore, #tpu.memory_space<semaphore_mem>>
    tpu.wait_dma2 semaphore(%172 : memref<!tpu.dma_semaphore, #tpu.memory_space<semaphore_mem>>) src(%168 : memref<128xf32, #tpu.memory_space<any>>) dst(%170 : memref<128xf32, #tpu.memory_space<vmem>>)
    %c0_i32_138 = arith.constant 0 : i32
    %c0_i32_139 = arith.constant 0 : i32
    %c0_i32_140 = arith.constant 0 : i32
    %c0_i32_141 = arith.constant 0 : i32
    %173 = tpu.memref_slice %arg2[%c0_i32_138, %c0_i32_141] : memref<32x128xf32, #tpu.memory_space<any>> -> memref<1x128xf32, #tpu.memory_space<any>>
    %174 = tpu.memref_squeeze %173 : memref<1x128xf32, #tpu.memory_space<any>> -> memref<128xf32, #tpu.memory_space<any>>
    %c0_i32_142 = arith.constant 0 : i32
    %175 = tpu.memref_slice %arg4[%16, %c0_i32_139, %c0_i32_140, %c0_i32_142] : memref<2x4x8x128xf32, #tpu.memory_space<vmem>> -> memref<1x1x1x128xf32, #tpu.memory_space<vmem>>
    %176 = tpu.memref_squeeze %175 : memref<1x1x1x128xf32, #tpu.memory_space<vmem>> -> memref<128xf32, #tpu.memory_space<vmem>>
    %177 = tpu.memref_slice %arg5[%16] : memref<2x!tpu.dma_semaphore, #tpu.memory_space<semaphore_mem>> -> memref<1x!tpu.dma_semaphore, #tpu.memory_space<semaphore_mem>>
    %178 = tpu.memref_squeeze %177 : memref<1x!tpu.dma_semaphore, #tpu.memory_space<semaphore_mem>> -> memref<!tpu.dma_semaphore, #tpu.memory_space<semaphore_mem>>
    tpu.wait_dma2 semaphore(%178 : memref<!tpu.dma_semaphore, #tpu.memory_space<semaphore_mem>>) src(%174 : memref<128xf32, #tpu.memory_space<any>>) dst(%176 : memref<128xf32, #tpu.memory_space<vmem>>)
    %c0_i32_143 = arith.constant 0 : i32
    %c0_i32_144 = arith.constant 0 : i32
    %c0_i32_145 = arith.constant 0 : i32
    %c0_i32_146 = arith.constant 0 : i32
    %179 = tpu.memref_slice %arg2[%c0_i32_143, %c0_i32_146] : memref<32x128xf32, #tpu.memory_space<any>> -> memref<1x128xf32, #tpu.memory_space<any>>
    %180 = tpu.memref_squeeze %179 : memref<1x128xf32, #tpu.memory_space<any>> -> memref<128xf32, #tpu.memory_space<any>>
    %c0_i32_147 = arith.constant 0 : i32
    %181 = tpu.memref_slice %arg4[%16, %c0_i32_144, %c0_i32_145, %c0_i32_147] : memref<2x4x8x128xf32, #tpu.memory_space<vmem>> -> memref<1x1x1x128xf32, #tpu.memory_space<vmem>>
    %182 = tpu.memref_squeeze %181 : memref<1x1x1x128xf32, #tpu.memory_space<vmem>> -> memref<128xf32, #tpu.memory_space<vmem>>
    %183 = tpu.memref_slice %arg5[%16] : memref<2x!tpu.dma_semaphore, #tpu.memory_space<semaphore_mem>> -> memref<1x!tpu.dma_semaphore, #tpu.memory_space<semaphore_mem>>
    %184 = tpu.memref_squeeze %183 : memref<1x!tpu.dma_semaphore, #tpu.memory_space<semaphore_mem>> -> memref<!tpu.dma_semaphore, #tpu.memory_space<semaphore_mem>>
    tpu.wait_dma2 semaphore(%184 : memref<!tpu.dma_semaphore, #tpu.memory_space<semaphore_mem>>) src(%180 : memref<128xf32, #tpu.memory_space<any>>) dst(%182 : memref<128xf32, #tpu.memory_space<vmem>>)
    %c0_i32_148 = arith.constant 0 : i32
    %c0_i32_149 = arith.constant 0 : i32
    %c0_i32_150 = arith.constant 0 : i32
    %c0_i32_151 = arith.constant 0 : i32
    %185 = tpu.memref_slice %arg2[%c0_i32_148, %c0_i32_151] : memref<32x128xf32, #tpu.memory_space<any>> -> memref<1x128xf32, #tpu.memory_space<any>>
    %186 = tpu.memref_squeeze %185 : memref<1x128xf32, #tpu.memory_space<any>> -> memref<128xf32, #tpu.memory_space<any>>
    %c0_i32_152 = arith.constant 0 : i32
    %187 = tpu.memref_slice %arg4[%16, %c0_i32_149, %c0_i32_150, %c0_i32_152] : memref<2x4x8x128xf32, #tpu.memory_space<vmem>> -> memref<1x1x1x128xf32, #tpu.memory_space<vmem>>
    %188 = tpu.memref_squeeze %187 : memref<1x1x1x128xf32, #tpu.memory_space<vmem>> -> memref<128xf32, #tpu.memory_space<vmem>>
    %189 = tpu.memref_slice %arg5[%16] : memref<2x!tpu.dma_semaphore, #tpu.memory_space<semaphore_mem>> -> memref<1x!tpu.dma_semaphore, #tpu.memory_space<semaphore_mem>>
    %190 = tpu.memref_squeeze %189 : memref<1x!tpu.dma_semaphore, #tpu.memory_space<semaphore_mem>> -> memref<!tpu.dma_semaphore, #tpu.memory_space<semaphore_mem>>
    tpu.wait_dma2 semaphore(%190 : memref<!tpu.dma_semaphore, #tpu.memory_space<semaphore_mem>>) src(%186 : memref<128xf32, #tpu.memory_space<any>>) dst(%188 : memref<128xf32, #tpu.memory_space<vmem>>)
    %c0_i32_153 = arith.constant 0 : i32
    %c0_i32_154 = arith.constant 0 : i32
    %c0_i32_155 = arith.constant 0 : i32
    %c0_i32_156 = arith.constant 0 : i32
    %191 = tpu.memref_slice %arg2[%c0_i32_153, %c0_i32_156] : memref<32x128xf32, #tpu.memory_space<any>> -> memref<1x128xf32, #tpu.memory_space<any>>
    %192 = tpu.memref_squeeze %191 : memref<1x128xf32, #tpu.memory_space<any>> -> memref<128xf32, #tpu.memory_space<any>>
    %c0_i32_157 = arith.constant 0 : i32
    %193 = tpu.memref_slice %arg4[%16, %c0_i32_154, %c0_i32_155, %c0_i32_157] : memref<2x4x8x128xf32, #tpu.memory_space<vmem>> -> memref<1x1x1x128xf32, #tpu.memory_space<vmem>>
    %194 = tpu.memref_squeeze %193 : memref<1x1x1x128xf32, #tpu.memory_space<vmem>> -> memref<128xf32, #tpu.memory_space<vmem>>
    %195 = tpu.memref_slice %arg5[%16] : memref<2x!tpu.dma_semaphore, #tpu.memory_space<semaphore_mem>> -> memref<1x!tpu.dma_semaphore, #tpu.memory_space<semaphore_mem>>
    %196 = tpu.memref_squeeze %195 : memref<1x!tpu.dma_semaphore, #tpu.memory_space<semaphore_mem>> -> memref<!tpu.dma_semaphore, #tpu.memory_space<semaphore_mem>>
    tpu.wait_dma2 semaphore(%196 : memref<!tpu.dma_semaphore, #tpu.memory_space<semaphore_mem>>) src(%192 : memref<128xf32, #tpu.memory_space<any>>) dst(%194 : memref<128xf32, #tpu.memory_space<vmem>>)
    %c0_i32_158 = arith.constant 0 : i32
    %c0_i32_159 = arith.constant 0 : i32
    %c0_i32_160 = arith.constant 0 : i32
    %c0_i32_161 = arith.constant 0 : i32
    %197 = tpu.memref_slice %arg2[%c0_i32_158, %c0_i32_161] : memref<32x128xf32, #tpu.memory_space<any>> -> memref<1x128xf32, #tpu.memory_space<any>>
    %198 = tpu.memref_squeeze %197 : memref<1x128xf32, #tpu.memory_space<any>> -> memref<128xf32, #tpu.memory_space<any>>
    %c0_i32_162 = arith.constant 0 : i32
    %199 = tpu.memref_slice %arg4[%16, %c0_i32_159, %c0_i32_160, %c0_i32_162] : memref<2x4x8x128xf32, #tpu.memory_space<vmem>> -> memref<1x1x1x128xf32, #tpu.memory_space<vmem>>
    %200 = tpu.memref_squeeze %199 : memref<1x1x1x128xf32, #tpu.memory_space<vmem>> -> memref<128xf32, #tpu.memory_space<vmem>>
    %201 = tpu.memref_slice %arg5[%16] : memref<2x!tpu.dma_semaphore, #tpu.memory_space<semaphore_mem>> -> memref<1x!tpu.dma_semaphore, #tpu.memory_space<semaphore_mem>>
    %202 = tpu.memref_squeeze %201 : memref<1x!tpu.dma_semaphore, #tpu.memory_space<semaphore_mem>> -> memref<!tpu.dma_semaphore, #tpu.memory_space<semaphore_mem>>
    tpu.wait_dma2 semaphore(%202 : memref<!tpu.dma_semaphore, #tpu.memory_space<semaphore_mem>>) src(%198 : memref<128xf32, #tpu.memory_space<any>>) dst(%200 : memref<128xf32, #tpu.memory_space<vmem>>)
    %c0_i32_163 = arith.constant 0 : i32
    %c0_i32_164 = arith.constant 0 : i32
    %c0_i32_165 = arith.constant 0 : i32
    %c0_i32_166 = arith.constant 0 : i32
    %203 = tpu.memref_slice %arg2[%c0_i32_163, %c0_i32_166] : memref<32x128xf32, #tpu.memory_space<any>> -> memref<1x128xf32, #tpu.memory_space<any>>
    %204 = tpu.memref_squeeze %203 : memref<1x128xf32, #tpu.memory_space<any>> -> memref<128xf32, #tpu.memory_space<any>>
    %c0_i32_167 = arith.constant 0 : i32
    %205 = tpu.memref_slice %arg4[%16, %c0_i32_164, %c0_i32_165, %c0_i32_167] : memref<2x4x8x128xf32, #tpu.memory_space<vmem>> -> memref<1x1x1x128xf32, #tpu.memory_space<vmem>>
    %206 = tpu.memref_squeeze %205 : memref<1x1x1x128xf32, #tpu.memory_space<vmem>> -> memref<128xf32, #tpu.memory_space<vmem>>
    %207 = tpu.memref_slice %arg5[%16] : memref<2x!tpu.dma_semaphore, #tpu.memory_space<semaphore_mem>> -> memref<1x!tpu.dma_semaphore, #tpu.memory_space<semaphore_mem>>
    %208 = tpu.memref_squeeze %207 : memref<1x!tpu.dma_semaphore, #tpu.memory_space<semaphore_mem>> -> memref<!tpu.dma_semaphore, #tpu.memory_space<semaphore_mem>>
    tpu.wait_dma2 semaphore(%208 : memref<!tpu.dma_semaphore, #tpu.memory_space<semaphore_mem>>) src(%204 : memref<128xf32, #tpu.memory_space<any>>) dst(%206 : memref<128xf32, #tpu.memory_space<vmem>>)
    %c0_i32_168 = arith.constant 0 : i32
    %c0_i32_169 = arith.constant 0 : i32
    %c0_i32_170 = arith.constant 0 : i32
    %209 = tpu.memref_slice %arg4[%16, %c0_i32_168, %c0_i32_169, %c0_i32_170] : memref<2x4x8x128xf32, #tpu.memory_space<vmem>> -> memref<1x4x8x128xf32, #tpu.memory_space<vmem>>
    %210 = tpu.memref_squeeze %209 : memref<1x4x8x128xf32, #tpu.memory_space<vmem>> -> memref<4x8x128xf32, #tpu.memory_space<vmem>>
    %c0 = arith.constant 0 : index
    %c0_171 = arith.constant 0 : index
    %c0_172 = arith.constant 0 : index
    %211 = vector.load %210[%c0, %c0_171, %c0_172] : memref<4x8x128xf32, #tpu.memory_space<vmem>>, vector<1x8x128xf32>
    %212 = vector.shape_cast %211 : vector<1x8x128xf32> to vector<8x128xf32>
    %c0_i32_173 = arith.constant 0 : i32
    %c0_i32_174 = arith.constant 0 : i32
    %c0_i32_175 = arith.constant 0 : i32
    %213 = tpu.memref_slice %arg4[%16, %c0_i32_173, %c0_i32_174, %c0_i32_175] : memref<2x4x8x128xf32, #tpu.memory_space<vmem>> -> memref<1x4x8x128xf32, #tpu.memory_space<vmem>>
    %214 = tpu.memref_squeeze %213 : memref<1x4x8x128xf32, #tpu.memory_space<vmem>> -> memref<4x8x128xf32, #tpu.memory_space<vmem>>
    %c1 = arith.constant 1 : index
    %c0_176 = arith.constant 0 : index
    %c0_177 = arith.constant 0 : index
    %215 = vector.load %214[%c1, %c0_176, %c0_177] : memref<4x8x128xf32, #tpu.memory_space<vmem>>, vector<1x8x128xf32>
    %216 = vector.shape_cast %215 : vector<1x8x128xf32> to vector<8x128xf32>
    %217 = arith.addf %212, %216 : vector<8x128xf32>
    %c0_i32_178 = arith.constant 0 : i32
    %c0_i32_179 = arith.constant 0 : i32
    %c0_i32_180 = arith.constant 0 : i32
    %218 = tpu.memref_slice %arg4[%16, %c0_i32_178, %c0_i32_179, %c0_i32_180] : memref<2x4x8x128xf32, #tpu.memory_space<vmem>> -> memref<1x4x8x128xf32, #tpu.memory_space<vmem>>
    %219 = tpu.memref_squeeze %218 : memref<1x4x8x128xf32, #tpu.memory_space<vmem>> -> memref<4x8x128xf32, #tpu.memory_space<vmem>>
    %c2 = arith.constant 2 : index
    %c0_181 = arith.constant 0 : index
    %c0_182 = arith.constant 0 : index
    %220 = vector.load %219[%c2, %c0_181, %c0_182] : memref<4x8x128xf32, #tpu.memory_space<vmem>>, vector<1x8x128xf32>
    %221 = vector.shape_cast %220 : vector<1x8x128xf32> to vector<8x128xf32>
    %222 = arith.addf %217, %221 : vector<8x128xf32>
    %c0_i32_183 = arith.constant 0 : i32
    %c0_i32_184 = arith.constant 0 : i32
    %c0_i32_185 = arith.constant 0 : i32
    %223 = tpu.memref_slice %arg4[%16, %c0_i32_183, %c0_i32_184, %c0_i32_185] : memref<2x4x8x128xf32, #tpu.memory_space<vmem>> -> memref<1x4x8x128xf32, #tpu.memory_space<vmem>>
    %224 = tpu.memref_squeeze %223 : memref<1x4x8x128xf32, #tpu.memory_space<vmem>> -> memref<4x8x128xf32, #tpu.memory_space<vmem>>
    %c3 = arith.constant 3 : index
    %c0_186 = arith.constant 0 : index
    %c0_187 = arith.constant 0 : index
    %225 = vector.load %224[%c3, %c0_186, %c0_187] : memref<4x8x128xf32, #tpu.memory_space<vmem>>, vector<1x8x128xf32>
    %226 = vector.shape_cast %225 : vector<1x8x128xf32> to vector<8x128xf32>
    %227 = arith.addf %222, %226 : vector<8x128xf32>
    %cst = arith.constant 2.500000e-01 : f32
    %228 = vector.broadcast %cst : f32 to vector<8x128xf32>
    %229 = arith.mulf %227, %228 : vector<8x128xf32>
    %c0_188 = arith.constant 0 : index
    %c0_189 = arith.constant 0 : index
    %230 = vector.load %arg3[%c0_188, %c0_189] : memref<8x128xf32, #tpu.memory_space<vmem>>, vector<8x128xf32>
    tpu.vector_store %arg3[%c0_188, %c0_189], %229 {strides = array<i32>} : memref<8x128xf32, #tpu.memory_space<vmem>>, vector<8x128xf32>,
    return
  }
  func.func @transform_1(%arg0: i32, %arg1: memref<64xi32, #tpu.memory_space<smem>>) -> (i32, i32) {
    %c0_i32 = arith.constant 0 : i32
    %c0_i32_0 = arith.constant 0 : i32
    return %arg0, %c0_i32 : i32, i32
  }
}

</mosaic_0001>

<llo_original>
// kernel: tpu_custom_call.1
$region0: #{tpu_custom_call.1}
  #allocation0 [shape = 'u32[]', space=smem, size = 0x4, offset = 0x4, fixed_abs, tag = 'smem constant byte address 0x4 - core index']
  #allocation1 [shape = 'u32[72,128]{1,0:T(1,128)}', space=vmem, size = 0x9000, scoped, tag = 'internal scratch']
  #allocation2 [shape = 'f32[2,4,8,128]{3,2,1,0:T(8,128)}', space=vmem, size = 0x8000, scoped, tag = 'scratch operand']
  #allocation3 [shape = 's32[2]{0}', space=sflag, size = 0x8, scoped, tag = 'scratch operand']
  #allocation4 [shape = 's32[1]{0}', space=sflag, size = 0x4, scoped, tag = 'scoped memory for tpu_custom_call.1']
  #allocation5 [shape = 'u8[512]{0}', space=smem, size = 0x200, scoped, tag = 'prefetched SMEM operand 0']
  #allocation8 [shape = 's32[]', space=sflag, size = 0x4, offset = 0, fixed_abs, tag = 'sflag constant byte address 0x0 - dummy sync flag']
  #allocation9 [shape = 's32[]', space=sflag, size = 0x4, offset = 0, fixed_abs, tag = 'sflag constant byte address 0x0 - dummy sync flag']
  #allocation10 [shape = 'u32[]', space=smem, size = 0x4, offset = 0x44, fixed_abs, tag = 'smem constant byte address 0x44 - assertion arg 0']
  #allocation11 [shape = 'u32[]', space=smem, size = 0x4, offset = 0x48, fixed_abs, tag = 'smem constant byte address 0x48 - assertion arg 1']
  #allocation12 [shape = 's32[]', space=sflag, size = 0x4, offset = 0, fixed_abs, tag = 'sflag constant byte address 0x0 - dummy sync flag']
  #allocation13 [shape = 's32[]', space=sflag, size = 0x4, offset = 0, fixed_abs, tag = 'sflag constant byte address 0x0 - dummy sync flag']
  #allocation14 [shape = 's32[]', space=sflag, size = 0x4, offset = 0, fixed_abs, tag = 'sflag constant byte address 0x0 - dummy sync flag']
  #allocation15 [shape = 's32[]', space=sflag, size = 0x4, offset = 0, fixed_abs, tag = 'sflag constant byte address 0x0 - dummy sync flag']
  #allocation16 [shape = 's32[]', space=sflag, size = 0x4, offset = 0, fixed_abs, tag = 'sflag constant byte address 0x0 - dummy sync flag']
  #allocation17 [shape = 's32[]', space=sflag, size = 0x4, offset = 0, fixed_abs, tag = 'sflag constant byte address 0x0 - dummy sync flag']
  #allocation18 [shape = 's32[]', space=sflag, size = 0x4, offset = 0, fixed_abs, tag = 'sflag constant byte address 0x0 - dummy sync flag']
  #allocation19 [shape = 's32[]', space=sflag, size = 0x4, offset = 0, fixed_abs, tag = 'sflag constant byte address 0x0 - dummy sync flag']
  #allocation20 [shape = 's32[]', space=sflag, size = 0x4, offset = 0, fixed_abs, tag = 'sflag constant byte address 0x0 - dummy sync flag']
  #allocation21 [shape = 's32[]', space=sflag, size = 0x4, offset = 0, fixed_abs, tag = 'sflag constant byte address 0x0 - dummy sync flag']
  #allocation22 [shape = 's32[]', space=sflag, size = 0x4, offset = 0, fixed_abs, tag = 'sflag constant byte address 0x0 - dummy sync flag']
  #allocation23 [shape = 's32[]', space=sflag, size = 0x4, offset = 0, fixed_abs, tag = 'sflag constant byte address 0x0 - dummy sync flag']
  #allocation24 [shape = 's32[]', space=sflag, size = 0x4, offset = 0, fixed_abs, tag = 'sflag constant byte address 0x0 - dummy sync flag']
  #allocation25 [shape = 's32[]', space=sflag, size = 0x4, offset = 0, fixed_abs, tag = 'sflag constant byte address 0x0 - dummy sync flag']
  #allocation26 [shape = 's32[]', space=sflag, size = 0x4, offset = 0, fixed_abs, tag = 'sflag constant byte address 0x0 - dummy sync flag']
  #allocation27 [shape = 's32[]', space=sflag, size = 0x4, offset = 0, fixed_abs, tag = 'sflag constant byte address 0x0 - dummy sync flag']
  #allocation28 [shape = 's32[]', space=sflag, size = 0x4, offset = 0, fixed_abs, tag = 'sflag constant byte address 0x0 - dummy sync flag']
  #allocation29 [shape = 's32[]', space=sflag, size = 0x4, offset = 0, fixed_abs, tag = 'sflag constant byte address 0x0 - dummy sync flag']
  #allocation30 [shape = 's32[]', space=sflag, size = 0x4, offset = 0, fixed_abs, tag = 'sflag constant byte address 0x0 - dummy sync flag']
  #allocation31 [shape = 's32[]', space=sflag, size = 0x4, offset = 0, fixed_abs, tag = 'sflag constant byte address 0x0 - dummy sync flag']
  #allocation32 [shape = 's32[]', space=sflag, size = 0x4, offset = 0, fixed_abs, tag = 'sflag constant byte address 0x0 - dummy sync flag']
  #allocation33 [shape = 's32[]', space=sflag, size = 0x4, offset = 0, fixed_abs, tag = 'sflag constant byte address 0x0 - dummy sync flag']
  #allocation34 [shape = 's32[]', space=sflag, size = 0x4, offset = 0, fixed_abs, tag = 'sflag constant byte address 0x0 - dummy sync flag']
  #allocation35 [shape = 's32[]', space=sflag, size = 0x4, offset = 0, fixed_abs, tag = 'sflag constant byte address 0x0 - dummy sync flag']
  #allocation36 [shape = 's32[]', space=sflag, size = 0x4, offset = 0, fixed_abs, tag = 'sflag constant byte address 0x0 - dummy sync flag']
  #allocation37 [shape = 's32[]', space=sflag, size = 0x4, offset = 0, fixed_abs, tag = 'sflag constant byte address 0x0 - dummy sync flag']
  #allocation38 [shape = 's32[]', space=sflag, size = 0x4, offset = 0, fixed_abs, tag = 'sflag constant byte address 0x0 - dummy sync flag']
  #allocation39 [shape = 's32[]', space=sflag, size = 0x4, offset = 0, fixed_abs, tag = 'sflag constant byte address 0x0 - dummy sync flag']
  #allocation40 [shape = 's32[]', space=sflag, size = 0x4, offset = 0, fixed_abs, tag = 'sflag constant byte address 0x0 - dummy sync flag']
  #allocation41 [shape = 's32[]', space=sflag, size = 0x4, offset = 0, fixed_abs, tag = 'sflag constant byte address 0x0 - dummy sync flag']
  #allocation42 [shape = 's32[]', space=sflag, size = 0x4, offset = 0, fixed_abs, tag = 'sflag constant byte address 0x0 - dummy sync flag']
  #allocation43 [shape = 's32[]', space=sflag, size = 0x4, offset = 0, fixed_abs, tag = 'sflag constant byte address 0x0 - dummy sync flag']
  #allocation44 [shape = 's32[]', space=sflag, size = 0x4, offset = 0, fixed_abs, tag = 'sflag constant byte address 0x0 - dummy sync flag']
  #allocation45 [shape = 's32[]', space=sflag, size = 0x4, offset = 0, fixed_abs, tag = 'sflag constant byte address 0x0 - dummy sync flag']
  #allocation46 [shape = 's32[]', space=sflag, size = 0x4, offset = 0, fixed_abs, tag = 'sflag constant byte address 0x0 - dummy sync flag']
  #allocation47 [shape = 's32[]', space=sflag, size = 0x4, offset = 0, fixed_abs, tag = 'sflag constant byte address 0x0 - dummy sync flag']
  #allocation48 [shape = 's32[]', space=sflag, size = 0x4, offset = 0, fixed_abs, tag = 'sflag constant byte address 0x0 - dummy sync flag']
  #allocation49 [shape = 's32[]', space=sflag, size = 0x4, offset = 0, fixed_abs, tag = 'sflag constant byte address 0x0 - dummy sync flag']
  #allocation50 [shape = 's32[]', space=sflag, size = 0x4, offset = 0, fixed_abs, tag = 'sflag constant byte address 0x0 - dummy sync flag']
  #allocation51 [shape = 's32[]', space=sflag, size = 0x4, offset = 0, fixed_abs, tag = 'sflag constant byte address 0x0 - dummy sync flag']
  #allocation52 [shape = 's32[]', space=sflag, size = 0x4, offset = 0, fixed_abs, tag = 'sflag constant byte address 0x0 - dummy sync flag']
  #allocation53 [shape = 's32[]', space=sflag, size = 0x4, offset = 0, fixed_abs, tag = 'sflag constant byte address 0x0 - dummy sync flag']
  #allocation54 [shape = 's32[]', space=sflag, size = 0x4, offset = 0, fixed_abs, tag = 'sflag constant byte address 0x0 - dummy sync flag']
  #allocation55 [shape = 's32[]', space=sflag, size = 0x4, offset = 0, fixed_abs, tag = 'sflag constant byte address 0x0 - dummy sync flag']
  #allocation56 [shape = 's32[]', space=sflag, size = 0x4, offset = 0, fixed_abs, tag = 'sflag constant byte address 0x0 - dummy sync flag']
  #allocation57 [shape = 's32[]', space=sflag, size = 0x4, offset = 0, fixed_abs, tag = 'sflag constant byte address 0x0 - dummy sync flag']
  #allocation58 [shape = 's32[]', space=sflag, size = 0x4, offset = 0, fixed_abs, tag = 'sflag constant byte address 0x0 - dummy sync flag']
  #allocation59 [shape = 's32[]', space=sflag, size = 0x4, offset = 0, fixed_abs, tag = 'sflag constant byte address 0x0 - dummy sync flag']
  #allocation60 [shape = 's32[]', space=sflag, size = 0x4, offset = 0, fixed_abs, tag = 'sflag constant byte address 0x0 - dummy sync flag']
  #allocation61 [shape = 's32[]', space=sflag, size = 0x4, offset = 0, fixed_abs, tag = 'sflag constant byte address 0x0 - dummy sync flag']
  #allocation62 [shape = 's32[]', space=sflag, size = 0x4, offset = 0, fixed_abs, tag = 'sflag constant byte address 0x0 - dummy sync flag']
  #allocation63 [shape = 's32[]', space=sflag, size = 0x4, offset = 0, fixed_abs, tag = 'sflag constant byte address 0x0 - dummy sync flag']
  #allocation64 [shape = 's32[]', space=sflag, size = 0x4, offset = 0, fixed_abs, tag = 'sflag constant byte address 0x0 - dummy sync flag']
  #allocation65 [shape = 's32[]', space=sflag, size = 0x4, offset = 0, fixed_abs, tag = 'sflag constant byte address 0x0 - dummy sync flag']
  #allocation66 [shape = 's32[]', space=sflag, size = 0x4, offset = 0, fixed_abs, tag = 'sflag constant byte address 0x0 - dummy sync flag']
  #allocation67 [shape = 's32[]', space=sflag, size = 0x4, offset = 0, fixed_abs, tag = 'sflag constant byte address 0x0 - dummy sync flag']
  #allocation68 [shape = 's32[]', space=sflag, size = 0x4, offset = 0, fixed_abs, tag = 'sflag constant byte address 0x0 - dummy sync flag']
  #allocation69 [shape = 's32[]', space=sflag, size = 0x4, offset = 0, fixed_abs, tag = 'sflag constant byte address 0x0 - dummy sync flag']
  #allocation70 [shape = 's32[]', space=sflag, size = 0x4, offset = 0, fixed_abs, tag = 'sflag constant byte address 0x0 - dummy sync flag']
  #allocation71 [shape = 's32[]', space=sflag, size = 0x4, offset = 0, fixed_abs, tag = 'sflag constant byte address 0x0 - dummy sync flag']
  #allocation72 [shape = 's32[]', space=sflag, size = 0x4, offset = 0, fixed_abs, tag = 'sflag constant byte address 0x0 - dummy sync flag']
  #allocation73 [shape = 's32[]', space=sflag, size = 0x4, offset = 0, fixed_abs, tag = 'sflag constant byte address 0x0 - dummy sync flag']
  #allocation74 [shape = 's32[]', space=sflag, size = 0x4, offset = 0, fixed_abs, tag = 'sflag constant byte address 0x0 - dummy sync flag']
  #allocation75 [shape = 's32[]', space=sflag, size = 0x4, offset = 0, fixed_abs, tag = 'sflag constant byte address 0x0 - dummy sync flag']
  #allocation76 [shape = 's32[]', space=sflag, size = 0x4, offset = 0, fixed_abs, tag = 'sflag constant byte address 0x0 - dummy sync flag']
  #allocation77 [shape = 's32[]', space=sflag, size = 0x4, offset = 0, fixed_abs, tag = 'sflag constant byte address 0x0 - dummy sync flag']
  #allocation78 [shape = 's32[]', space=sflag, size = 0x4, offset = 0, fixed_abs, tag = 'sflag constant byte address 0x0 - dummy sync flag']
  #allocation79 [shape = 's32[]', space=sflag, size = 0x4, offset = 0, fixed_abs, tag = 'sflag constant byte address 0x0 - dummy sync flag']
  #allocation80 [shape = 's32[]', space=sflag, size = 0x4, offset = 0, fixed_abs, tag = 'sflag constant byte address 0x0 - dummy sync flag']
  #allocation81 [shape = 's32[]', space=sflag, size = 0x4, offset = 0, fixed_abs, tag = 'sflag constant byte address 0x0 - dummy sync flag']
  #allocation82 [shape = 's32[]', space=sflag, size = 0x4, offset = 0, fixed_abs, tag = 'sflag constant byte address 0x0 - dummy sync flag']
  #allocation83 [shape = 's32[]', space=sflag, size = 0x4, offset = 0, fixed_abs, tag = 'sflag constant byte address 0x0 - dummy sync flag']
  #allocation84 [shape = 's32[]', space=sflag, size = 0x4, offset = 0, fixed_abs, tag = 'sflag constant byte address 0x0 - dummy sync flag']
  #allocation85 [shape = 's32[]', space=sflag, size = 0x4, offset = 0, fixed_abs, tag = 'sflag constant byte address 0x0 - dummy sync flag']
  #allocation86 [shape = 's32[]', space=sflag, size = 0x4, offset = 0, fixed_abs, tag = 'sflag constant byte address 0x0 - dummy sync flag']
  #allocation87 [shape = 's32[]', space=sflag, size = 0x4, offset = 0, fixed_abs, tag = 'sflag constant byte address 0x0 - dummy sync flag']
  #allocation88 [shape = 's32[]', space=sflag, size = 0x4, offset = 0, fixed_abs, tag = 'sflag constant byte address 0x0 - dummy sync flag']
  #allocation89 [shape = 's32[]', space=sflag, size = 0x4, offset = 0, fixed_abs, tag = 'sflag constant byte address 0x0 - dummy sync flag']
  #allocation90 [shape = 's32[]', space=sflag, size = 0x4, offset = 0, fixed_abs, tag = 'sflag constant byte address 0x0 - dummy sync flag']
  #allocation91 [shape = 's32[]', space=sflag, size = 0x4, offset = 0, fixed_abs, tag = 'sflag constant byte address 0x0 - dummy sync flag']
  #allocation92 [shape = 's32[]', space=sflag, size = 0x4, offset = 0, fixed_abs, tag = 'sflag constant byte address 0x0 - dummy sync flag']
  #allocation93 [shape = 's32[]', space=sflag, size = 0x4, offset = 0, fixed_abs, tag = 'sflag constant byte address 0x0 - dummy sync flag']
  #allocation94 [shape = 's32[]', space=sflag, size = 0x4, offset = 0, fixed_abs, tag = 'sflag constant byte address 0x0 - dummy sync flag']
  #allocation95 [shape = 's32[]', space=sflag, size = 0x4, offset = 0, fixed_abs, tag = 'sflag constant byte address 0x0 - dummy sync flag']
  #allocation96 [shape = 's32[]', space=sflag, size = 0x4, offset = 0, fixed_abs, tag = 'sflag constant byte address 0x0 - dummy sync flag']
  #allocation97 [shape = 's32[]', space=sflag, size = 0x4, offset = 0, fixed_abs, tag = 'sflag constant byte address 0x0 - dummy sync flag']
  #allocation98 [shape = 's32[]', space=sflag, size = 0x4, offset = 0, fixed_abs, tag = 'sflag constant byte address 0x0 - dummy sync flag']
  #allocation99 [shape = 's32[]', space=sflag, size = 0x4, offset = 0, fixed_abs, tag = 'sflag constant byte address 0x0 - dummy sync flag']
  #allocation100 [shape = 's32[]', space=sflag, size = 0x4, offset = 0, fixed_abs, tag = 'sflag constant byte address 0x0 - dummy sync flag']
  #allocation101 [shape = 's32[]', space=sflag, size = 0x4, offset = 0, fixed_abs, tag = 'sflag constant byte address 0x0 - dummy sync flag']
  #allocation102 [shape = 's32[]', space=sflag, size = 0x4, offset = 0, fixed_abs, tag = 'sflag constant byte address 0x0 - dummy sync flag']
  #allocation103 [shape = 's32[]', space=sflag, size = 0x4, offset = 0, fixed_abs, tag = 'sflag constant byte address 0x0 - dummy sync flag']
  #allocation104 [shape = 's32[]', space=sflag, size = 0x4, offset = 0, fixed_abs, tag = 'sflag constant byte address 0x0 - dummy sync flag']
  #allocation105 [shape = 's32[]', space=sflag, size = 0x4, offset = 0, fixed_abs, tag = 'sflag constant byte address 0x0 - dummy sync flag']
  #allocation106 [shape = 's32[]', space=sflag, size = 0x4, offset = 0, fixed_abs, tag = 'sflag constant byte address 0x0 - dummy sync flag']
  #allocation107 [shape = 's32[]', space=sflag, size = 0x4, offset = 0, fixed_abs, tag = 'sflag constant byte address 0x0 - dummy sync flag']
  #allocation108 [shape = 's32[]', space=sflag, size = 0x4, offset = 0, fixed_abs, tag = 'sflag constant byte address 0x0 - dummy sync flag']
  #allocation109 [shape = 's32[]', space=sflag, size = 0x4, offset = 0, fixed_abs, tag = 'sflag constant byte address 0x0 - dummy sync flag']
  #allocation110 [shape = 's32[]', space=sflag, size = 0x4, offset = 0, fixed_abs, tag = 'sflag constant byte address 0x0 - dummy sync flag']
  #allocation111 [shape = 's32[]', space=sflag, size = 0x4, offset = 0, fixed_abs, tag = 'sflag constant byte address 0x0 - dummy sync flag']
  #allocation112 [shape = 's32[]', space=sflag, size = 0x4, offset = 0, fixed_abs, tag = 'sflag constant byte address 0x0 - dummy sync flag']
  #allocation113 [shape = 's32[]', space=sflag, size = 0x4, offset = 0, fixed_abs, tag = 'sflag constant byte address 0x0 - dummy sync flag']
  #allocation114 [shape = 's32[]', space=sflag, size = 0x4, offset = 0, fixed_abs, tag = 'sflag constant byte address 0x0 - dummy sync flag']
  #allocation115 [shape = 's32[]', space=sflag, size = 0x4, offset = 0, fixed_abs, tag = 'sflag constant byte address 0x0 - dummy sync flag']
  #allocation116 [shape = 's32[]', space=sflag, size = 0x4, offset = 0, fixed_abs, tag = 'sflag constant byte address 0x0 - dummy sync flag']
  #allocation117 [shape = 's32[]', space=sflag, size = 0x4, offset = 0, fixed_abs, tag = 'sflag constant byte address 0x0 - dummy sync flag']
  #allocation118 [shape = 's32[]', space=sflag, size = 0x4, offset = 0, fixed_abs, tag = 'sflag constant byte address 0x0 - dummy sync flag']
  #allocation119 [shape = 's32[]', space=sflag, size = 0x4, offset = 0, fixed_abs, tag = 'sflag constant byte address 0x0 - dummy sync flag']
  #allocation120 [shape = 's32[]', space=sflag, size = 0x4, offset = 0, fixed_abs, tag = 'sflag constant byte address 0x0 - dummy sync flag']
  #allocation121 [shape = 's32[]', space=sflag, size = 0x4, offset = 0, fixed_abs, tag = 'sflag constant byte address 0x0 - dummy sync flag']
  #allocation122 [shape = 's32[]', space=sflag, size = 0x4, offset = 0, fixed_abs, tag = 'sflag constant byte address 0x0 - dummy sync flag']
  #allocation123 [shape = 's32[]', space=sflag, size = 0x4, offset = 0, fixed_abs, tag = 'sflag constant byte address 0x0 - dummy sync flag']
  #allocation124 [shape = 's32[]', space=sflag, size = 0x4, offset = 0, fixed_abs, tag = 'sflag constant byte address 0x0 - dummy sync flag']
  #allocation125 [shape = 's32[]', space=sflag, size = 0x4, offset = 0, fixed_abs, tag = 'sflag constant byte address 0x0 - dummy sync flag']
  #allocation126 [shape = 's32[]', space=sflag, size = 0x4, offset = 0, fixed_abs, tag = 'sflag constant byte address 0x0 - dummy sync flag']
  #allocation127 [shape = 's32[]', space=sflag, size = 0x4, offset = 0, fixed_abs, tag = 'sflag constant byte address 0x0 - dummy sync flag']
  #allocation128 [shape = 's32[]', space=sflag, size = 0x4, offset = 0, fixed_abs, tag = 'sflag constant byte address 0x0 - dummy sync flag']
  #allocation129 [shape = 's32[]', space=sflag, size = 0x4, offset = 0, fixed_abs, tag = 'sflag constant byte address 0x0 - dummy sync flag']
  #allocation130 [shape = 's32[]', space=sflag, size = 0x4, offset = 0, fixed_abs, tag = 'sflag constant byte address 0x0 - dummy sync flag']
  #allocation131 [shape = 's32[]', space=sflag, size = 0x4, offset = 0, fixed_abs, tag = 'sflag constant byte address 0x0 - dummy sync flag']
  #allocation132 [shape = 's32[]', space=sflag, size = 0x4, offset = 0, fixed_abs, tag = 'sflag constant byte address 0x0 - dummy sync flag']
  #allocation133 [shape = 's32[]', space=sflag, size = 0x4, offset = 0, fixed_abs, tag = 'sflag constant byte address 0x0 - dummy sync flag']
  #allocation134 [shape = 's32[]', space=sflag, size = 0x4, offset = 0, fixed_abs, tag = 'sflag constant byte address 0x0 - dummy sync flag']
  #allocation135 [shape = 's32[]', space=sflag, size = 0x4, offset = 0, fixed_abs, tag = 'sflag constant byte address 0x0 - dummy sync flag']
  #allocation136 [shape = 's32[]', space=sflag, size = 0x4, offset = 0, fixed_abs, tag = 'sflag constant byte address 0x0 - dummy sync flag']
  #allocation137 [shape = 's32[]', space=sflag, size = 0x4, offset = 0, fixed_abs, tag = 'sflag constant byte address 0x0 - dummy sync flag']
  %s0 = inlined_call_operand.hbm [shape: s32[64], index: 0, kind: input, shape index: {}]
  %s1 = inlined_call_operand.hbm [shape: f32[32,128], index: 1, kind: input, shape index: {}]
  %s2 = inlined_call_operand.hbm [shape: f32[16,128], index: 2, kind: output, shape index: {}]
  %s3 = sld [smem:[#allocation0]]
  $region289: #{tpu_custom_call.1} parent=0
    _
  %s5 = ssub.s32 1, %s3
  %s6 = scalar_select 0, %s5, %s3
  %s8 = sshll.u32 %s0, 4
  %s9 = int_to_ptr.hbm [resolvable:$true] %s8
  %11 = dma.hbm_to_smem %s9, 16, [#allocation5], [#allocation4]
  %13 = dma.done [#allocation4], 16
  %14 = sfence
  $region1: #{tpu_custom_call.1} parent=0
    #allocation6 [shape = 'u8[8192]{0}', space=vmem, size = 0x2000, scoped, tag = 'output window, operand 0']
    #allocation7 [shape = 's32[2]{0}', space=sflag, size = 0x8, scoped, tag = 'scoped memory for tpu_custom_call.1']
    %15 = vsyncpa [#allocation7], 0
    %s16 = scalar_lea.sflag [#allocation7], 1
    %17 = vsyncpa %s16, 0
    loop: start=0, step=1, limit=3
    $region2: #{tpu_custom_call.1} parent=1 // loop_pre_header
      _
    $region3: #{tpu_custom_call.1} parent=1 // loop_header
      %s19 = sphi 0, %s23
      %p20 = scmp.ge.s32.totalorder %s19, 3
      %s28 = sphi 0, %s30
      %s31 = sphi 0, %s28
      %s41 = sphi 0, %s31
    $region4: #{tpu_custom_call.1} parent=1 // loop_header_branch
      %22 = sbr.rel (%p20) target = $region8
    $region5: #{tpu_custom_call.1} parent=1 // loop_body
      %s24 = ssub.s32 %s19, 1
      %s25 = sadd.s32 %s19, 1
      %s26 = ssub.s32 %s19, %s25
      %p27 = scmp.eq.s32.totalorder %s26, 0
      %s29 = sadd.s32 %s28, 1
      %s30 = scalar_select %p27, %s28, %s29
      %p32 = pneg %p27
      %p33 = scmp.eq.s32.totalorder %s19, 1
      %p34 = por %p32, %p33
      %p35 = scmp.ne.s32.totalorder %s28, %s31
      %p36 = scmp.eq.s32.totalorder %s19, 0
      %p37 = por %p35, %p36
      %p38 = scmp.ne.s32.totalorder %s28, %s31
      %p39 = scmp.eq.s32.totalorder %s24, 1
      %p40 = por %p38, %p39
      %p42 = scmp.ne.s32.totalorder %s31, %s41
      %p43 = scmp.eq.s32.totalorder %s24, 0
      %p44 = por %p42, %p43
      %p45 = scmp.lt.s32.totalorder %s19, 2
      // Predicated region
      $region9: #{tpu_custom_call.1} parent=5 // pred_check
        %p46 = pneg %p45
      $region10: #{tpu_custom_call.1} parent=5 // pred_check_branch
        %48 = sbr.rel (%p46) target = $region12
      $region11: #{tpu_custom_call.1} parent=5 // pred_region
        %p49 = pneg %p37
        %p50 = pneg %p34
        %s51 = sand.u32 %s28, 1
        %s52 = scalar_lea.sflag [#allocation7], %s51
        %s53 = sand.u32 %s28, 1
        %s54 = smul.addr %s53, 8
        %s55 = scalar_lea.vmem [#allocation6], %s54
        %p56 = scmp.eq.s32.totalorder %s19, 0
        // Predicated region
        $region13: #{tpu_custom_call.1} parent=11 // pred_check
          %p57 = pneg %p56
        $region14: #{tpu_custom_call.1} parent=11 // pred_check_branch
          %59 = sbr.rel (%p57) target = $region16
        $region15: #{tpu_custom_call.1} parent=11 // pred_region
          %s60 = sld [smem:[#allocation5]]
          %s61 = scalar_lea.hbm %s1, %s60
          // Predicated region
          $region17: #{tpu_custom_call.1} parent=15 // pred_check
            _
          $region18: #{tpu_custom_call.1} parent=15 // pred_check_branch
            %63 = sbr.rel target = $region20
          $region19: #{tpu_custom_call.1} parent=15 // pred_region
            %64 = sst [smem:[#allocation10]] [#allocation9]
            %65 = sst [smem:[#allocation11]] [#allocation8]
          $region20: #{tpu_custom_call.1} parent=15 // pred_fallthru
            _
          %67 = shalt.err (0)
          %s69 = sshll.u32 %s61, 4
          %s70 = int_to_ptr.hbm [resolvable:$true] %s69
          %s71 = sshll.u32 [#allocation2], 4
          %s72 = int_to_ptr.vmem [resolvable:$true] %s71
          %74 = dma.hbm_to_vmem [thread:$0]  %s70, 16, %s72, [#allocation3]
          %s75 = sld [smem:[#allocation5 + $0x1]]
          %s76 = scalar_lea.hbm %s1, %s75
          %s77 = scalar_lea.vmem [#allocation2], 8
          // Predicated region
          $region21: #{tpu_custom_call.1} parent=15 // pred_check
            _
          $region22: #{tpu_custom_call.1} parent=15 // pred_check_branch
            %79 = sbr.rel target = $region24
          $region23: #{tpu_custom_call.1} parent=15 // pred_region
            %80 = sst [smem:[#allocation10]] [#allocation13]
            %81 = sst [smem:[#allocation11]] [#allocation12]
          $region24: #{tpu_custom_call.1} parent=15 // pred_fallthru
            _
          %83 = shalt.err (0)
          %s85 = sshll.u32 %s76, 4
          %s86 = int_to_ptr.hbm [resolvable:$true] %s85
          %s87 = sshll.u32 %s77, 4
          %s88 = int_to_ptr.vmem [resolvable:$true] %s87
          %90 = dma.hbm_to_vmem [thread:$0]  %s86, 16, %s88, [#allocation3]
          %s91 = sld [smem:[#allocation5 + $0x2]]
          %s92 = scalar_lea.hbm %s1, %s91
          %s93 = scalar_lea.vmem [#allocation2], 16
          // Predicated region
          $region25: #{tpu_custom_call.1} parent=15 // pred_check
            _
          $region26: #{tpu_custom_call.1} parent=15 // pred_check_branch
            %95 = sbr.rel target = $region28
          $region27: #{tpu_custom_call.1} parent=15 // pred_region
            %96 = sst [smem:[#allocation10]] [#allocation15]
            %97 = sst [smem:[#allocation11]] [#allocation14]
          $region28: #{tpu_custom_call.1} parent=15 // pred_fallthru
            _
          %99 = shalt.err (0)
          %s101 = sshll.u32 %s92, 4
          %s102 = int_to_ptr.hbm [resolvable:$true] %s101
          %s103 = sshll.u32 %s93, 4
          %s104 = int_to_ptr.vmem [resolvable:$true] %s103
          %106 = dma.hbm_to_vmem [thread:$0]  %s102, 16, %s104, [#allocation3]
          %s107 = sld [smem:[#allocation5 + $0x3]]
          %s108 = scalar_lea.hbm %s1, %s107
          %s109 = scalar_lea.vmem [#allocation2], 24
          // Predicated region
          $region29: #{tpu_custom_call.1} parent=15 // pred_check
            _
          $region30: #{tpu_custom_call.1} parent=15 // pred_check_branch
            %111 = sbr.rel target = $region32
          $region31: #{tpu_custom_call.1} parent=15 // pred_region
            %112 = sst [smem:[#allocation10]] [#allocation17]
            %113 = sst [smem:[#allocation11]] [#allocation16]
          $region32: #{tpu_custom_call.1} parent=15 // pred_fallthru
            _
          %115 = shalt.err (0)
          %s117 = sshll.u32 %s108, 4
          %s118 = int_to_ptr.hbm [resolvable:$true] %s117
          %s119 = sshll.u32 %s109, 4
          %s120 = int_to_ptr.vmem [resolvable:$true] %s119
          %122 = dma.hbm_to_vmem [thread:$0]  %s118, 16, %s120, [#allocation3]
          %s123 = sld [smem:[#allocation5 + $0x4]]
          %s124 = scalar_lea.hbm %s1, %s123
          %s125 = scalar_lea.vmem [#allocation2], 1
          // Predicated region
          $region33: #{tpu_custom_call.1} parent=15 // pred_check
            _
          $region34: #{tpu_custom_call.1} parent=15 // pred_check_branch
            %127 = sbr.rel target = $region36
          $region35: #{tpu_custom_call.1} parent=15 // pred_region
            %128 = sst [smem:[#allocation10]] [#allocation19]
            %129 = sst [smem:[#allocation11]] [#allocation18]
          $region36: #{tpu_custom_call.1} parent=15 // pred_fallthru
            _
          %131 = shalt.err (0)
          %s133 = sshll.u32 %s124, 4
          %s134 = int_to_ptr.hbm [resolvable:$true] %s133
          %s135 = sshll.u32 %s125, 4
          %s136 = int_to_ptr.vmem [resolvable:$true] %s135
          %138 = dma.hbm_to_vmem [thread:$0]  %s134, 16, %s136, [#allocation3]
          %s139 = sld [smem:[#allocation5 + $0x5]]
          %s140 = scalar_lea.hbm %s1, %s139
          %s141 = scalar_lea.vmem [#allocation2], 9
          // Predicated region
          $region37: #{tpu_custom_call.1} parent=15 // pred_check
            _
          $region38: #{tpu_custom_call.1} parent=15 // pred_check_branch
            %143 = sbr.rel target = $region40
          $region39: #{tpu_custom_call.1} parent=15 // pred_region
            %144 = sst [smem:[#allocation10]] [#allocation21]
            %145 = sst [smem:[#allocation11]] [#allocation20]
          $region40: #{tpu_custom_call.1} parent=15 // pred_fallthru
            _
          %147 = shalt.err (0)
          %s149 = sshll.u32 %s140, 4
          %s150 = int_to_ptr.hbm [resolvable:$true] %s149
          %s151 = sshll.u32 %s141, 4
          %s152 = int_to_ptr.vmem [resolvable:$true] %s151
          %154 = dma.hbm_to_vmem [thread:$0]  %s150, 16, %s152, [#allocation3]
          %s155 = sld [smem:[#allocation5 + $0x6]]
          %s156 = scalar_lea.hbm %s1, %s155
          %s157 = scalar_lea.vmem [#allocation2], 17
          // Predicated region
          $region41: #{tpu_custom_call.1} parent=15 // pred_check
            _
          $region42: #{tpu_custom_call.1} parent=15 // pred_check_branch
            %159 = sbr.rel target = $region44
          $region43: #{tpu_custom_call.1} parent=15 // pred_region
            %160 = sst [smem:[#allocation10]] [#allocation23]
            %161 = sst [smem:[#allocation11]] [#allocation22]
          $region44: #{tpu_custom_call.1} parent=15 // pred_fallthru
            _
          %163 = shalt.err (0)
          %s165 = sshll.u32 %s156, 4
          %s166 = int_to_ptr.hbm [resolvable:$true] %s165
          %s167 = sshll.u32 %s157, 4
          %s168 = int_to_ptr.vmem [resolvable:$true] %s167
          %170 = dma.hbm_to_vmem [thread:$0]  %s166, 16, %s168, [#allocation3]
          %s171 = sld [smem:[#allocation5 + $0x7]]
          %s172 = scalar_lea.hbm %s1, %s171
          %s173 = scalar_lea.vmem [#allocation2], 25
          // Predicated region
          $region45: #{tpu_custom_call.1} parent=15 // pred_check
            _
          $region46: #{tpu_custom_call.1} parent=15 // pred_check_branch
            %175 = sbr.rel target = $region48
          $region47: #{tpu_custom_call.1} parent=15 // pred_region
            %176 = sst [smem:[#allocation10]] [#allocation25]
            %177 = sst [smem:[#allocation11]] [#allocation24]
          $region48: #{tpu_custom_call.1} parent=15 // pred_fallthru
            _
          %179 = shalt.err (0)
          %s181 = sshll.u32 %s172, 4
          %s182 = int_to_ptr.hbm [resolvable:$true] %s181
          %s183 = sshll.u32 %s173, 4
          %s184 = int_to_ptr.vmem [resolvable:$true] %s183
          %186 = dma.hbm_to_vmem [thread:$0]  %s182, 16, %s184, [#allocation3]
          %s187 = sld [smem:[#allocation5 + $0x8]]
          %s188 = scalar_lea.hbm %s1, %s187
          %s189 = scalar_lea.vmem [#allocation2], 2
          // Predicated region
          $region49: #{tpu_custom_call.1} parent=15 // pred_check
            _
          $region50: #{tpu_custom_call.1} parent=15 // pred_check_branch
            %191 = sbr.rel target = $region52
          $region51: #{tpu_custom_call.1} parent=15 // pred_region
            %192 = sst [smem:[#allocation10]] [#allocation27]
            %193 = sst [smem:[#allocation11]] [#allocation26]
          $region52: #{tpu_custom_call.1} parent=15 // pred_fallthru
            _
          %195 = shalt.err (0)
          %s197 = sshll.u32 %s188, 4
          %s198 = int_to_ptr.hbm [resolvable:$true] %s197
          %s199 = sshll.u32 %s189, 4
          %s200 = int_to_ptr.vmem [resolvable:$true] %s199
          %202 = dma.hbm_to_vmem [thread:$0]  %s198, 16, %s200, [#allocation3]
          %s203 = sld [smem:[#allocation5 + $0x9]]
          %s204 = scalar_lea.hbm %s1, %s203
          %s205 = scalar_lea.vmem [#allocation2], 10
          // Predicated region
          $region53: #{tpu_custom_call.1} parent=15 // pred_check
            _
          $region54: #{tpu_custom_call.1} parent=15 // pred_check_branch
            %207 = sbr.rel target = $region56
          $region55: #{tpu_custom_call.1} parent=15 // pred_region
            %208 = sst [smem:[#allocation10]] [#allocation29]
            %209 = sst [smem:[#allocation11]] [#allocation28]
          $region56: #{tpu_custom_call.1} parent=15 // pred_fallthru
            _
          %211 = shalt.err (0)
          %s213 = sshll.u32 %s204, 4
          %s214 = int_to_ptr.hbm [resolvable:$true] %s213
          %s215 = sshll.u32 %s205, 4
          %s216 = int_to_ptr.vmem [resolvable:$true] %s215
          %218 = dma.hbm_to_vmem [thread:$0]  %s214, 16, %s216, [#allocation3]
          %s219 = sld [smem:[#allocation5 + $0xa]]
          %s220 = scalar_lea.hbm %s1, %s219
          %s221 = scalar_lea.vmem [#allocation2], 18
          // Predicated region
          $region57: #{tpu_custom_call.1} parent=15 // pred_check
            _
          $region58: #{tpu_custom_call.1} parent=15 // pred_check_branch
            %223 = sbr.rel target = $region60
          $region59: #{tpu_custom_call.1} parent=15 // pred_region
            %224 = sst [smem:[#allocation10]] [#allocation31]
            %225 = sst [smem:[#allocation11]] [#allocation30]
          $region60: #{tpu_custom_call.1} parent=15 // pred_fallthru
            _
          %227 = shalt.err (0)
          %s229 = sshll.u32 %s220, 4
          %s230 = int_to_ptr.hbm [resolvable:$true] %s229
          %s231 = sshll.u32 %s221, 4
          %s232 = int_to_ptr.vmem [resolvable:$true] %s231
          %234 = dma.hbm_to_vmem [thread:$0]  %s230, 16, %s232, [#allocation3]
          %s235 = sld [smem:[#allocation5 + $0xb]]
          %s236 = scalar_lea.hbm %s1, %s235
          %s237 = scalar_lea.vmem [#allocation2], 26
          // Predicated region
          $region61: #{tpu_custom_call.1} parent=15 // pred_check
            _
          $region62: #{tpu_custom_call.1} parent=15 // pred_check_branch
            %239 = sbr.rel target = $region64
          $region63: #{tpu_custom_call.1} parent=15 // pred_region
            %240 = sst [smem:[#allocation10]] [#allocation33]
            %241 = sst [smem:[#allocation11]] [#allocation32]
          $region64: #{tpu_custom_call.1} parent=15 // pred_fallthru
            _
          %243 = shalt.err (0)
          %s245 = sshll.u32 %s236, 4
          %s246 = int_to_ptr.hbm [resolvable:$true] %s245
          %s247 = sshll.u32 %s237, 4
          %s248 = int_to_ptr.vmem [resolvable:$true] %s247
          %250 = dma.hbm_to_vmem [thread:$0]  %s246, 16, %s248, [#allocation3]
          %s251 = sld [smem:[#allocation5 + $0xc]]
          %s252 = scalar_lea.hbm %s1, %s251
          %s253 = scalar_lea.vmem [#allocation2], 3
          // Predicated region
          $region65: #{tpu_custom_call.1} parent=15 // pred_check
            _
          $region66: #{tpu_custom_call.1} parent=15 // pred_check_branch
            %255 = sbr.rel target = $region68
          $region67: #{tpu_custom_call.1} parent=15 // pred_region
            %256 = sst [smem:[#allocation10]] [#allocation35]
            %257 = sst [smem:[#allocation11]] [#allocation34]
          $region68: #{tpu_custom_call.1} parent=15 // pred_fallthru
            _
          %259 = shalt.err (0)
          %s261 = sshll.u32 %s252, 4
          %s262 = int_to_ptr.hbm [resolvable:$true] %s261
          %s263 = sshll.u32 %s253, 4
          %s264 = int_to_ptr.vmem [resolvable:$true] %s263
          %266 = dma.hbm_to_vmem [thread:$0]  %s262, 16, %s264, [#allocation3]
          %s267 = sld [smem:[#allocation5 + $0xd]]
          %s268 = scalar_lea.hbm %s1, %s267
          %s269 = scalar_lea.vmem [#allocation2], 11
          // Predicated region
          $region69: #{tpu_custom_call.1} parent=15 // pred_check
            _
          $region70: #{tpu_custom_call.1} parent=15 // pred_check_branch
            %271 = sbr.rel target = $region72
          $region71: #{tpu_custom_call.1} parent=15 // pred_region
            %272 = sst [smem:[#allocation10]] [#allocation37]
            %273 = sst [smem:[#allocation11]] [#allocation36]
          $region72: #{tpu_custom_call.1} parent=15 // pred_fallthru
            _
          %275 = shalt.err (0)
          %s277 = sshll.u32 %s268, 4
          %s278 = int_to_ptr.hbm [resolvable:$true] %s277
          %s279 = sshll.u32 %s269, 4
          %s280 = int_to_ptr.vmem [resolvable:$true] %s279
          %282 = dma.hbm_to_vmem [thread:$0]  %s278, 16, %s280, [#allocation3]
          %s283 = sld [smem:[#allocation5 + $0xe]]
          %s284 = scalar_lea.hbm %s1, %s283
          %s285 = scalar_lea.vmem [#allocation2], 19
          // Predicated region
          $region73: #{tpu_custom_call.1} parent=15 // pred_check
            _
          $region74: #{tpu_custom_call.1} parent=15 // pred_check_branch
            %287 = sbr.rel target = $region76
          $region75: #{tpu_custom_call.1} parent=15 // pred_region
            %288 = sst [smem:[#allocation10]] [#allocation39]
            %289 = sst [smem:[#allocation11]] [#allocation38]
          $region76: #{tpu_custom_call.1} parent=15 // pred_fallthru
            _
          %291 = shalt.err (0)
          %s293 = sshll.u32 %s284, 4
          %s294 = int_to_ptr.hbm [resolvable:$true] %s293
          %s295 = sshll.u32 %s285, 4
          %s296 = int_to_ptr.vmem [resolvable:$true] %s295
          %298 = dma.hbm_to_vmem [thread:$0]  %s294, 16, %s296, [#allocation3]
          %s299 = sld [smem:[#allocation5 + $0xf]]
          %s300 = scalar_lea.hbm %s1, %s299
          %s301 = scalar_lea.vmem [#allocation2], 27
          // Predicated region
          $region77: #{tpu_custom_call.1} parent=15 // pred_check
            _
          $region78: #{tpu_custom_call.1} parent=15 // pred_check_branch
            %303 = sbr.rel target = $region80
          $region79: #{tpu_custom_call.1} parent=15 // pred_region
            %304 = sst [smem:[#allocation10]] [#allocation41]
            %305 = sst [smem:[#allocation11]] [#allocation40]
          $region80: #{tpu_custom_call.1} parent=15 // pred_fallthru
            _
          %307 = shalt.err (0)
          %s309 = sshll.u32 %s300, 4
          %s310 = int_to_ptr.hbm [resolvable:$true] %s309
          %s311 = sshll.u32 %s301, 4
          %s312 = int_to_ptr.vmem [resolvable:$true] %s311
          %314 = dma.hbm_to_vmem [thread:$0]  %s310, 16, %s312, [#allocation3]
          %s315 = sld [smem:[#allocation5 + $0x10]]
          %s316 = scalar_lea.hbm %s1, %s315
          %s317 = scalar_lea.vmem [#allocation2], 4
          // Predicated region
          $region81: #{tpu_custom_call.1} parent=15 // pred_check
            _
          $region82: #{tpu_custom_call.1} parent=15 // pred_check_branch
            %319 = sbr.rel target = $region84
          $region83: #{tpu_custom_call.1} parent=15 // pred_region
            %320 = sst [smem:[#allocation10]] [#allocation43]
            %321 = sst [smem:[#allocation11]] [#allocation42]
          $region84: #{tpu_custom_call.1} parent=15 // pred_fallthru
            _
          %323 = shalt.err (0)
          %s325 = sshll.u32 %s316, 4
          %s326 = int_to_ptr.hbm [resolvable:$true] %s325
          %s327 = sshll.u32 %s317, 4
          %s328 = int_to_ptr.vmem [resolvable:$true] %s327
          %330 = dma.hbm_to_vmem [thread:$0]  %s326, 16, %s328, [#allocation3]
          %s331 = sld [smem:[#allocation5 + $0x11]]
          %s332 = scalar_lea.hbm %s1, %s331
          %s333 = scalar_lea.vmem [#allocation2], 12
          // Predicated region
          $region85: #{tpu_custom_call.1} parent=15 // pred_check
            _
          $region86: #{tpu_custom_call.1} parent=15 // pred_check_branch
            %335 = sbr.rel target = $region88
          $region87: #{tpu_custom_call.1} parent=15 // pred_region
            %336 = sst [smem:[#allocation10]] [#allocation45]
            %337 = sst [smem:[#allocation11]] [#allocation44]
          $region88: #{tpu_custom_call.1} parent=15 // pred_fallthru
            _
          %339 = shalt.err (0)
          %s341 = sshll.u32 %s332, 4
          %s342 = int_to_ptr.hbm [resolvable:$true] %s341
          %s343 = sshll.u32 %s333, 4
          %s344 = int_to_ptr.vmem [resolvable:$true] %s343
          %346 = dma.hbm_to_vmem [thread:$0]  %s342, 16, %s344, [#allocation3]
          %s347 = sld [smem:[#allocation5 + $0x12]]
          %s348 = scalar_lea.hbm %s1, %s347
          %s349 = scalar_lea.vmem [#allocation2], 20
          // Predicated region
          $region89: #{tpu_custom_call.1} parent=15 // pred_check
            _
          $region90: #{tpu_custom_call.1} parent=15 // pred_check_branch
            %351 = sbr.rel target = $region92
          $region91: #{tpu_custom_call.1} parent=15 // pred_region
            %352 = sst [smem:[#allocation10]] [#allocation47]
            %353 = sst [smem:[#allocation11]] [#allocation46]
          $region92: #{tpu_custom_call.1} parent=15 // pred_fallthru
            _
          %355 = shalt.err (0)
          %s357 = sshll.u32 %s348, 4
          %s358 = int_to_ptr.hbm [resolvable:$true] %s357
          %s359 = sshll.u32 %s349, 4
          %s360 = int_to_ptr.vmem [resolvable:$true] %s359
          %362 = dma.hbm_to_vmem [thread:$0]  %s358, 16, %s360, [#allocation3]
          %s363 = sld [smem:[#allocation5 + $0x13]]
          %s364 = scalar_lea.hbm %s1, %s363
          %s365 = scalar_lea.vmem [#allocation2], 28
          // Predicated region
          $region93: #{tpu_custom_call.1} parent=15 // pred_check
            _
          $region94: #{tpu_custom_call.1} parent=15 // pred_check_branch
            %367 = sbr.rel target = $region96
          $region95: #{tpu_custom_call.1} parent=15 // pred_region
            %368 = sst [smem:[#allocation10]] [#allocation49]
            %369 = sst [smem:[#allocation11]] [#allocation48]
          $region96: #{tpu_custom_call.1} parent=15 // pred_fallthru
            _
          %371 = shalt.err (0)
          %s373 = sshll.u32 %s364, 4
          %s374 = int_to_ptr.hbm [resolvable:$true] %s373
          %s375 = sshll.u32 %s365, 4
          %s376 = int_to_ptr.vmem [resolvable:$true] %s375
          %378 = dma.hbm_to_vmem [thread:$0]  %s374, 16, %s376, [#allocation3]
          %s379 = sld [smem:[#allocation5 + $0x14]]
          %s380 = scalar_lea.hbm %s1, %s379
          %s381 = scalar_lea.vmem [#allocation2], 5
          // Predicated region
          $region97: #{tpu_custom_call.1} parent=15 // pred_check
            _
          $region98: #{tpu_custom_call.1} parent=15 // pred_check_branch
            %383 = sbr.rel target = $region100
          $region99: #{tpu_custom_call.1} parent=15 // pred_region
            %384 = sst [smem:[#allocation10]] [#allocation51]
            %385 = sst [smem:[#allocation11]] [#allocation50]
          $region100: #{tpu_custom_call.1} parent=15 // pred_fallthru
            _
          %387 = shalt.err (0)
          %s389 = sshll.u32 %s380, 4
          %s390 = int_to_ptr.hbm [resolvable:$true] %s389
          %s391 = sshll.u32 %s381, 4
          %s392 = int_to_ptr.vmem [resolvable:$true] %s391
          %394 = dma.hbm_to_vmem [thread:$0]  %s390, 16, %s392, [#allocation3]
          %s395 = sld [smem:[#allocation5 + $0x15]]
          %s396 = scalar_lea.hbm %s1, %s395
          %s397 = scalar_lea.vmem [#allocation2], 13
          // Predicated region
          $region101: #{tpu_custom_call.1} parent=15 // pred_check
            _
          $region102: #{tpu_custom_call.1} parent=15 // pred_check_branch
            %399 = sbr.rel target = $region104
          $region103: #{tpu_custom_call.1} parent=15 // pred_region
            %400 = sst [smem:[#allocation10]] [#allocation53]
            %401 = sst [smem:[#allocation11]] [#allocation52]
          $region104: #{tpu_custom_call.1} parent=15 // pred_fallthru
            _
          %403 = shalt.err (0)
          %s405 = sshll.u32 %s396, 4
          %s406 = int_to_ptr.hbm [resolvable:$true] %s405
          %s407 = sshll.u32 %s397, 4
          %s408 = int_to_ptr.vmem [resolvable:$true] %s407
          %410 = dma.hbm_to_vmem [thread:$0]  %s406, 16, %s408, [#allocation3]
          %s411 = sld [smem:[#allocation5 + $0x16]]
          %s412 = scalar_lea.hbm %s1, %s411
          %s413 = scalar_lea.vmem [#allocation2], 21
          // Predicated region
          $region105: #{tpu_custom_call.1} parent=15 // pred_check
            _
          $region106: #{tpu_custom_call.1} parent=15 // pred_check_branch
            %415 = sbr.rel target = $region108
          $region107: #{tpu_custom_call.1} parent=15 // pred_region
            %416 = sst [smem:[#allocation10]] [#allocation55]
            %417 = sst [smem:[#allocation11]] [#allocation54]
          $region108: #{tpu_custom_call.1} parent=15 // pred_fallthru
            _
          %419 = shalt.err (0)
          %s421 = sshll.u32 %s412, 4
          %s422 = int_to_ptr.hbm [resolvable:$true] %s421
          %s423 = sshll.u32 %s413, 4
          %s424 = int_to_ptr.vmem [resolvable:$true] %s423
          %426 = dma.hbm_to_vmem [thread:$0]  %s422, 16, %s424, [#allocation3]
          %s427 = sld [smem:[#allocation5 + $0x17]]
          %s428 = scalar_lea.hbm %s1, %s427
          %s429 = scalar_lea.vmem [#allocation2], 29
          // Predicated region
          $region109: #{tpu_custom_call.1} parent=15 // pred_check
            _
          $region110: #{tpu_custom_call.1} parent=15 // pred_check_branch
            %431 = sbr.rel target = $region112
          $region111: #{tpu_custom_call.1} parent=15 // pred_region
            %432 = sst [smem:[#allocation10]] [#allocation57]
            %433 = sst [smem:[#allocation11]] [#allocation56]
          $region112: #{tpu_custom_call.1} parent=15 // pred_fallthru
            _
          %435 = shalt.err (0)
          %s437 = sshll.u32 %s428, 4
          %s438 = int_to_ptr.hbm [resolvable:$true] %s437
          %s439 = sshll.u32 %s429, 4
          %s440 = int_to_ptr.vmem [resolvable:$true] %s439
          %442 = dma.hbm_to_vmem [thread:$0]  %s438, 16, %s440, [#allocation3]
          %s443 = sld [smem:[#allocation5 + $0x18]]
          %s444 = scalar_lea.hbm %s1, %s443
          %s445 = scalar_lea.vmem [#allocation2], 6
          // Predicated region
          $region113: #{tpu_custom_call.1} parent=15 // pred_check
            _
          $region114: #{tpu_custom_call.1} parent=15 // pred_check_branch
            %447 = sbr.rel target = $region116
          $region115: #{tpu_custom_call.1} parent=15 // pred_region
            %448 = sst [smem:[#allocation10]] [#allocation59]
            %449 = sst [smem:[#allocation11]] [#allocation58]
          $region116: #{tpu_custom_call.1} parent=15 // pred_fallthru
            _
          %451 = shalt.err (0)
          %s453 = sshll.u32 %s444, 4
          %s454 = int_to_ptr.hbm [resolvable:$true] %s453
          %s455 = sshll.u32 %s445, 4
          %s456 = int_to_ptr.vmem [resolvable:$true] %s455
          %458 = dma.hbm_to_vmem [thread:$0]  %s454, 16, %s456, [#allocation3]
          %s459 = sld [smem:[#allocation5 + $0x19]]
          %s460 = scalar_lea.hbm %s1, %s459
          %s461 = scalar_lea.vmem [#allocation2], 14
          // Predicated region
          $region117: #{tpu_custom_call.1} parent=15 // pred_check
            _
          $region118: #{tpu_custom_call.1} parent=15 // pred_check_branch
            %463 = sbr.rel target = $region120
          $region119: #{tpu_custom_call.1} parent=15 // pred_region
            %464 = sst [smem:[#allocation10]] [#allocation61]
            %465 = sst [smem:[#allocation11]] [#allocation60]
          $region120: #{tpu_custom_call.1} parent=15 // pred_fallthru
            _
          %467 = shalt.err (0)
          %s469 = sshll.u32 %s460, 4
          %s470 = int_to_ptr.hbm [resolvable:$true] %s469
          %s471 = sshll.u32 %s461, 4
          %s472 = int_to_ptr.vmem [resolvable:$true] %s471
          %474 = dma.hbm_to_vmem [thread:$0]  %s470, 16, %s472, [#allocation3]
          %s475 = sld [smem:[#allocation5 + $0x1a]]
          %s476 = scalar_lea.hbm %s1, %s475
          %s477 = scalar_lea.vmem [#allocation2], 22
          // Predicated region
          $region121: #{tpu_custom_call.1} parent=15 // pred_check
            _
          $region122: #{tpu_custom_call.1} parent=15 // pred_check_branch
            %479 = sbr.rel target = $region124
          $region123: #{tpu_custom_call.1} parent=15 // pred_region
            %480 = sst [smem:[#allocation10]] [#allocation63]
            %481 = sst [smem:[#allocation11]] [#allocation62]
          $region124: #{tpu_custom_call.1} parent=15 // pred_fallthru
            _
          %483 = shalt.err (0)
          %s485 = sshll.u32 %s476, 4
          %s486 = int_to_ptr.hbm [resolvable:$true] %s485
          %s487 = sshll.u32 %s477, 4
          %s488 = int_to_ptr.vmem [resolvable:$true] %s487
          %490 = dma.hbm_to_vmem [thread:$0]  %s486, 16, %s488, [#allocation3]
          %s491 = sld [smem:[#allocation5 + $0x1b]]
          %s492 = scalar_lea.hbm %s1, %s491
          %s493 = scalar_lea.vmem [#allocation2], 30
          // Predicated region
          $region125: #{tpu_custom_call.1} parent=15 // pred_check
            _
          $region126: #{tpu_custom_call.1} parent=15 // pred_check_branch
            %495 = sbr.rel target = $region128
          $region127: #{tpu_custom_call.1} parent=15 // pred_region
            %496 = sst [smem:[#allocation10]] [#allocation65]
            %497 = sst [smem:[#allocation11]] [#allocation64]
          $region128: #{tpu_custom_call.1} parent=15 // pred_fallthru
            _
          %499 = shalt.err (0)
          %s501 = sshll.u32 %s492, 4
          %s502 = int_to_ptr.hbm [resolvable:$true] %s501
          %s503 = sshll.u32 %s493, 4
          %s504 = int_to_ptr.vmem [resolvable:$true] %s503
          %506 = dma.hbm_to_vmem [thread:$0]  %s502, 16, %s504, [#allocation3]
          %s507 = sld [smem:[#allocation5 + $0x1c]]
          %s508 = scalar_lea.hbm %s1, %s507
          %s509 = scalar_lea.vmem [#allocation2], 7
          // Predicated region
          $region129: #{tpu_custom_call.1} parent=15 // pred_check
            _
          $region130: #{tpu_custom_call.1} parent=15 // pred_check_branch
            %511 = sbr.rel target = $region132
          $region131: #{tpu_custom_call.1} parent=15 // pred_region
            %512 = sst [smem:[#allocation10]] [#allocation67]
            %513 = sst [smem:[#allocation11]] [#allocation66]
          $region132: #{tpu_custom_call.1} parent=15 // pred_fallthru
            _
          %515 = shalt.err (0)
          %s517 = sshll.u32 %s508, 4
          %s518 = int_to_ptr.hbm [resolvable:$true] %s517
          %s519 = sshll.u32 %s509, 4
          %s520 = int_to_ptr.vmem [resolvable:$true] %s519
          %522 = dma.hbm_to_vmem [thread:$0]  %s518, 16, %s520, [#allocation3]
          %s523 = sld [smem:[#allocation5 + $0x1d]]
          %s524 = scalar_lea.hbm %s1, %s523
          %s525 = scalar_lea.vmem [#allocation2], 15
          // Predicated region
          $region133: #{tpu_custom_call.1} parent=15 // pred_check
            _
          $region134: #{tpu_custom_call.1} parent=15 // pred_check_branch
            %527 = sbr.rel target = $region136
          $region135: #{tpu_custom_call.1} parent=15 // pred_region
            %528 = sst [smem:[#allocation10]] [#allocation69]
            %529 = sst [smem:[#allocation11]] [#allocation68]
          $region136: #{tpu_custom_call.1} parent=15 // pred_fallthru
            _
          %531 = shalt.err (0)
          %s533 = sshll.u32 %s524, 4
          %s534 = int_to_ptr.hbm [resolvable:$true] %s533
          %s535 = sshll.u32 %s525, 4
          %s536 = int_to_ptr.vmem [resolvable:$true] %s535
          %538 = dma.hbm_to_vmem [thread:$0]  %s534, 16, %s536, [#allocation3]
          %s539 = sld [smem:[#allocation5 + $0x1e]]
          %s540 = scalar_lea.hbm %s1, %s539
          %s541 = scalar_lea.vmem [#allocation2], 23
          // Predicated region
          $region137: #{tpu_custom_call.1} parent=15 // pred_check
            _
          $region138: #{tpu_custom_call.1} parent=15 // pred_check_branch
            %543 = sbr.rel target = $region140
          $region139: #{tpu_custom_call.1} parent=15 // pred_region
            %544 = sst [smem:[#allocation10]] [#allocation71]
            %545 = sst [smem:[#allocation11]] [#allocation70]
          $region140: #{tpu_custom_call.1} parent=15 // pred_fallthru
            _
          %547 = shalt.err (0)
          %s549 = sshll.u32 %s540, 4
          %s550 = int_to_ptr.hbm [resolvable:$true] %s549
          %s551 = sshll.u32 %s541, 4
          %s552 = int_to_ptr.vmem [resolvable:$true] %s551
          %554 = dma.hbm_to_vmem [thread:$0]  %s550, 16, %s552, [#allocation3]
          %s555 = sld [smem:[#allocation5 + $0x1f]]
          %s556 = scalar_lea.hbm %s1, %s555
          %s557 = scalar_lea.vmem [#allocation2], 31
          // Predicated region
          $region141: #{tpu_custom_call.1} parent=15 // pred_check
            _
          $region142: #{tpu_custom_call.1} parent=15 // pred_check_branch
            %559 = sbr.rel target = $region144
          $region143: #{tpu_custom_call.1} parent=15 // pred_region
            %560 = sst [smem:[#allocation10]] [#allocation73]
            %561 = sst [smem:[#allocation11]] [#allocation72]
          $region144: #{tpu_custom_call.1} parent=15 // pred_fallthru
            _
          %563 = shalt.err (0)
          %s565 = sshll.u32 %s556, 4
          %s566 = int_to_ptr.hbm [resolvable:$true] %s565
          %s567 = sshll.u32 %s557, 4
          %s568 = int_to_ptr.vmem [resolvable:$true] %s567
          %570 = dma.hbm_to_vmem [thread:$0]  %s566, 16, %s568, [#allocation3]
        $region16: #{tpu_custom_call.1} parent=11 // pred_fallthru
          _
        %s571 = sadd.s32 %s19, 1
        %p572 = scmp.lt.s32.totalorder %s571, 2
        // Predicated region
        $region145: #{tpu_custom_call.1} parent=11 // pred_check
          %p573 = pneg %p572
        $region146: #{tpu_custom_call.1} parent=11 // pred_check_branch
          %575 = sbr.rel (%p573) target = $region148
        $region147: #{tpu_custom_call.1} parent=11 // pred_region
          %p576 = scmp.lt.s32.totalorder %s571, 0
          %s577 = ssub.s32 0, %s571
          %s578 = scalar_select %p576, %s577, %s571
          %s579 = sand.u32 %s578, 1
          %s580 = ssub.s32 0, %s579
          %s581 = scalar_select %p576, %s580, %s579
          %p582 = scmp.ne.s32.totalorder %s581, 0
          %p583 = scmp.lt.s32.totalorder %s581, 0
          %p584 = pnand %p583, %p582
          %p585 = pneg %p584
          %s586 = sadd.s32 %s581, 2
          %s587 = scalar_select %p585, %s586, %s581
          %s588 = smul.u32 %s571, 32
          %s589 = sld [smem:[#allocation5 + %s588]]
          %s590 = scalar_lea.hbm %s1, %s589
          %s591 = smul.u32 %s587, 32
          %s592 = scalar_lea.vmem [#allocation2], %s591
          %s593 = scalar_lea.sflag [#allocation3], %s587
          // Predicated region
          $region149: #{tpu_custom_call.1} parent=147 // pred_check
            _
          $region150: #{tpu_custom_call.1} parent=147 // pred_check_branch
            %595 = sbr.rel target = $region152
          $region151: #{tpu_custom_call.1} parent=147 // pred_region
            %596 = sst [smem:[#allocation10]] [#allocation75]
            %597 = sst [smem:[#allocation11]] [#allocation74]
          $region152: #{tpu_custom_call.1} parent=147 // pred_fallthru
            _
          %599 = shalt.err (0)
          %s601 = sshll.u32 %s590, 4
          %s602 = int_to_ptr.hbm [resolvable:$true] %s601
          %s603 = sshll.u32 %s592, 4
          %s604 = int_to_ptr.vmem [resolvable:$true] %s603
          %606 = dma.hbm_to_vmem [thread:$0]  %s602, 16, %s604, %s593
          %s607 = sadd.s32 %s588, 1
          %s608 = sld [smem:[#allocation5 + %s607]]
          %s609 = scalar_lea.hbm %s1, %s608
          %s610 = sadd.s32 8, %s591
          %s611 = scalar_lea.vmem [#allocation2], %s610
          // Predicated region
          $region153: #{tpu_custom_call.1} parent=147 // pred_check
            _
          $region154: #{tpu_custom_call.1} parent=147 // pred_check_branch
            %613 = sbr.rel target = $region156
          $region155: #{tpu_custom_call.1} parent=147 // pred_region
            %614 = sst [smem:[#allocation10]] [#allocation77]
            %615 = sst [smem:[#allocation11]] [#allocation76]
          $region156: #{tpu_custom_call.1} parent=147 // pred_fallthru
            _
          %617 = shalt.err (0)
          %s619 = sshll.u32 %s609, 4
          %s620 = int_to_ptr.hbm [resolvable:$true] %s619
          %s621 = sshll.u32 %s611, 4
          %s622 = int_to_ptr.vmem [resolvable:$true] %s621
          %624 = dma.hbm_to_vmem [thread:$0]  %s620, 16, %s622, %s593
          %s625 = sadd.s32 %s588, 2
          %s626 = sld [smem:[#allocation5 + %s625]]
          %s627 = scalar_lea.hbm %s1, %s626
          %s628 = sadd.s32 16, %s591
          %s629 = scalar_lea.vmem [#allocation2], %s628
          // Predicated region
          $region157: #{tpu_custom_call.1} parent=147 // pred_check
            _
          $region158: #{tpu_custom_call.1} parent=147 // pred_check_branch
            %631 = sbr.rel target = $region160
          $region159: #{tpu_custom_call.1} parent=147 // pred_region
            %632 = sst [smem:[#allocation10]] [#allocation79]
            %633 = sst [smem:[#allocation11]] [#allocation78]
          $region160: #{tpu_custom_call.1} parent=147 // pred_fallthru
            _
          %635 = shalt.err (0)
          %s637 = sshll.u32 %s627, 4
          %s638 = int_to_ptr.hbm [resolvable:$true] %s637
          %s639 = sshll.u32 %s629, 4
          %s640 = int_to_ptr.vmem [resolvable:$true] %s639
          %642 = dma.hbm_to_vmem [thread:$0]  %s638, 16, %s640, %s593
          %s643 = sadd.s32 %s588, 3
          %s644 = sld [smem:[#allocation5 + %s643]]
          %s645 = scalar_lea.hbm %s1, %s644
          %s646 = sadd.s32 24, %s591
          %s647 = scalar_lea.vmem [#allocation2], %s646
          // Predicated region
          $region161: #{tpu_custom_call.1} parent=147 // pred_check
            _
          $region162: #{tpu_custom_call.1} parent=147 // pred_check_branch
            %649 = sbr.rel target = $region164
          $region163: #{tpu_custom_call.1} parent=147 // pred_region
            %650 = sst [smem:[#allocation10]] [#allocation81]
            %651 = sst [smem:[#allocation11]] [#allocation80]
          $region164: #{tpu_custom_call.1} parent=147 // pred_fallthru
            _
          %653 = shalt.err (0)
          %s655 = sshll.u32 %s645, 4
          %s656 = int_to_ptr.hbm [resolvable:$true] %s655
          %s657 = sshll.u32 %s647, 4
          %s658 = int_to_ptr.vmem [resolvable:$true] %s657
          %660 = dma.hbm_to_vmem [thread:$0]  %s656, 16, %s658, %s593
          %s661 = sadd.s32 %s588, 4
          %s662 = sld [smem:[#allocation5 + %s661]]
          %s663 = scalar_lea.hbm %s1, %s662
          %s664 = sadd.s32 1, %s591
          %s665 = scalar_lea.vmem [#allocation2], %s664
          // Predicated region
          $region165: #{tpu_custom_call.1} parent=147 // pred_check
            _
          $region166: #{tpu_custom_call.1} parent=147 // pred_check_branch
            %667 = sbr.rel target = $region168
          $region167: #{tpu_custom_call.1} parent=147 // pred_region
            %668 = sst [smem:[#allocation10]] [#allocation83]
            %669 = sst [smem:[#allocation11]] [#allocation82]
          $region168: #{tpu_custom_call.1} parent=147 // pred_fallthru
            _
          %671 = shalt.err (0)
          %s673 = sshll.u32 %s663, 4
          %s674 = int_to_ptr.hbm [resolvable:$true] %s673
          %s675 = sshll.u32 %s665, 4
          %s676 = int_to_ptr.vmem [resolvable:$true] %s675
          %678 = dma.hbm_to_vmem [thread:$0]  %s674, 16, %s676, %s593
          %s679 = sadd.s32 %s588, 5
          %s680 = sld [smem:[#allocation5 + %s679]]
          %s681 = scalar_lea.hbm %s1, %s680
          %s682 = sadd.s32 9, %s591
          %s683 = scalar_lea.vmem [#allocation2], %s682
          // Predicated region
          $region169: #{tpu_custom_call.1} parent=147 // pred_check
            _
          $region170: #{tpu_custom_call.1} parent=147 // pred_check_branch
            %685 = sbr.rel target = $region172
          $region171: #{tpu_custom_call.1} parent=147 // pred_region
            %686 = sst [smem:[#allocation10]] [#allocation85]
            %687 = sst [smem:[#allocation11]] [#allocation84]
          $region172: #{tpu_custom_call.1} parent=147 // pred_fallthru
            _
          %689 = shalt.err (0)
          %s691 = sshll.u32 %s681, 4
          %s692 = int_to_ptr.hbm [resolvable:$true] %s691
          %s693 = sshll.u32 %s683, 4
          %s694 = int_to_ptr.vmem [resolvable:$true] %s693
          %696 = dma.hbm_to_vmem [thread:$0]  %s692, 16, %s694, %s593
          %s697 = sadd.s32 %s588, 6
          %s698 = sld [smem:[#allocation5 + %s697]]
          %s699 = scalar_lea.hbm %s1, %s698
          %s700 = sadd.s32 17, %s591
          %s701 = scalar_lea.vmem [#allocation2], %s700
          // Predicated region
          $region173: #{tpu_custom_call.1} parent=147 // pred_check
            _
          $region174: #{tpu_custom_call.1} parent=147 // pred_check_branch
            %703 = sbr.rel target = $region176
          $region175: #{tpu_custom_call.1} parent=147 // pred_region
            %704 = sst [smem:[#allocation10]] [#allocation87]
            %705 = sst [smem:[#allocation11]] [#allocation86]
          $region176: #{tpu_custom_call.1} parent=147 // pred_fallthru
            _
          %707 = shalt.err (0)
          %s709 = sshll.u32 %s699, 4
          %s710 = int_to_ptr.hbm [resolvable:$true] %s709
          %s711 = sshll.u32 %s701, 4
          %s712 = int_to_ptr.vmem [resolvable:$true] %s711
          %714 = dma.hbm_to_vmem [thread:$0]  %s710, 16, %s712, %s593
          %s715 = sadd.s32 %s588, 7
          %s716 = sld [smem:[#allocation5 + %s715]]
          %s717 = scalar_lea.hbm %s1, %s716
          %s718 = sadd.s32 25, %s591
          %s719 = scalar_lea.vmem [#allocation2], %s718
          // Predicated region
          $region177: #{tpu_custom_call.1} parent=147 // pred_check
            _
          $region178: #{tpu_custom_call.1} parent=147 // pred_check_branch
            %721 = sbr.rel target = $region180
          $region179: #{tpu_custom_call.1} parent=147 // pred_region
            %722 = sst [smem:[#allocation10]] [#allocation89]
            %723 = sst [smem:[#allocation11]] [#allocation88]
          $region180: #{tpu_custom_call.1} parent=147 // pred_fallthru
            _
          %725 = shalt.err (0)
          %s727 = sshll.u32 %s717, 4
          %s728 = int_to_ptr.hbm [resolvable:$true] %s727
          %s729 = sshll.u32 %s719, 4
          %s730 = int_to_ptr.vmem [resolvable:$true] %s729
          %732 = dma.hbm_to_vmem [thread:$0]  %s728, 16, %s730, %s593
          %s733 = sadd.s32 %s588, 8
          %s734 = sld [smem:[#allocation5 + %s733]]
          %s735 = scalar_lea.hbm %s1, %s734
          %s736 = sadd.s32 2, %s591
          %s737 = scalar_lea.vmem [#allocation2], %s736
          // Predicated region
          $region181: #{tpu_custom_call.1} parent=147 // pred_check
            _
          $region182: #{tpu_custom_call.1} parent=147 // pred_check_branch
            %739 = sbr.rel target = $region184
          $region183: #{tpu_custom_call.1} parent=147 // pred_region
            %740 = sst [smem:[#allocation10]] [#allocation91]
            %741 = sst [smem:[#allocation11]] [#allocation90]
          $region184: #{tpu_custom_call.1} parent=147 // pred_fallthru
            _
          %743 = shalt.err (0)
          %s745 = sshll.u32 %s735, 4
          %s746 = int_to_ptr.hbm [resolvable:$true] %s745
          %s747 = sshll.u32 %s737, 4
          %s748 = int_to_ptr.vmem [resolvable:$true] %s747
          %750 = dma.hbm_to_vmem [thread:$0]  %s746, 16, %s748, %s593
          %s751 = sadd.s32 %s588, 9
          %s752 = sld [smem:[#allocation5 + %s751]]
          %s753 = scalar_lea.hbm %s1, %s752
          %s754 = sadd.s32 10, %s591
          %s755 = scalar_lea.vmem [#allocation2], %s754
          // Predicated region
          $region185: #{tpu_custom_call.1} parent=147 // pred_check
            _
          $region186: #{tpu_custom_call.1} parent=147 // pred_check_branch
            %757 = sbr.rel target = $region188
          $region187: #{tpu_custom_call.1} parent=147 // pred_region
            %758 = sst [smem:[#allocation10]] [#allocation93]
            %759 = sst [smem:[#allocation11]] [#allocation92]
          $region188: #{tpu_custom_call.1} parent=147 // pred_fallthru
            _
          %761 = shalt.err (0)
          %s763 = sshll.u32 %s753, 4
          %s764 = int_to_ptr.hbm [resolvable:$true] %s763
          %s765 = sshll.u32 %s755, 4
          %s766 = int_to_ptr.vmem [resolvable:$true] %s765
          %768 = dma.hbm_to_vmem [thread:$0]  %s764, 16, %s766, %s593
          %s769 = sadd.s32 %s588, 10
          %s770 = sld [smem:[#allocation5 + %s769]]
          %s771 = scalar_lea.hbm %s1, %s770
          %s772 = sadd.s32 18, %s591
          %s773 = scalar_lea.vmem [#allocation2], %s772
          // Predicated region
          $region189: #{tpu_custom_call.1} parent=147 // pred_check
            _
          $region190: #{tpu_custom_call.1} parent=147 // pred_check_branch
            %775 = sbr.rel target = $region192
          $region191: #{tpu_custom_call.1} parent=147 // pred_region
            %776 = sst [smem:[#allocation10]] [#allocation95]
            %777 = sst [smem:[#allocation11]] [#allocation94]
          $region192: #{tpu_custom_call.1} parent=147 // pred_fallthru
            _
          %779 = shalt.err (0)
          %s781 = sshll.u32 %s771, 4
          %s782 = int_to_ptr.hbm [resolvable:$true] %s781
          %s783 = sshll.u32 %s773, 4
          %s784 = int_to_ptr.vmem [resolvable:$true] %s783
          %786 = dma.hbm_to_vmem [thread:$0]  %s782, 16, %s784, %s593
          %s787 = sadd.s32 %s588, 11
          %s788 = sld [smem:[#allocation5 + %s787]]
          %s789 = scalar_lea.hbm %s1, %s788
          %s790 = sadd.s32 26, %s591
          %s791 = scalar_lea.vmem [#allocation2], %s790
          // Predicated region
          $region193: #{tpu_custom_call.1} parent=147 // pred_check
            _
          $region194: #{tpu_custom_call.1} parent=147 // pred_check_branch
            %793 = sbr.rel target = $region196
          $region195: #{tpu_custom_call.1} parent=147 // pred_region
            %794 = sst [smem:[#allocation10]] [#allocation97]
            %795 = sst [smem:[#allocation11]] [#allocation96]
          $region196: #{tpu_custom_call.1} parent=147 // pred_fallthru
            _
          %797 = shalt.err (0)
          %s799 = sshll.u32 %s789, 4
          %s800 = int_to_ptr.hbm [resolvable:$true] %s799
          %s801 = sshll.u32 %s791, 4
          %s802 = int_to_ptr.vmem [resolvable:$true] %s801
          %804 = dma.hbm_to_vmem [thread:$0]  %s800, 16, %s802, %s593
          %s805 = sadd.s32 %s588, 12
          %s806 = sld [smem:[#allocation5 + %s805]]
          %s807 = scalar_lea.hbm %s1, %s806
          %s808 = sadd.s32 3, %s591
          %s809 = scalar_lea.vmem [#allocation2], %s808
          // Predicated region
          $region197: #{tpu_custom_call.1} parent=147 // pred_check
            _
          $region198: #{tpu_custom_call.1} parent=147 // pred_check_branch
            %811 = sbr.rel target = $region200
          $region199: #{tpu_custom_call.1} parent=147 // pred_region
            %812 = sst [smem:[#allocation10]] [#allocation99]
            %813 = sst [smem:[#allocation11]] [#allocation98]
          $region200: #{tpu_custom_call.1} parent=147 // pred_fallthru
            _
          %815 = shalt.err (0)
          %s817 = sshll.u32 %s807, 4
          %s818 = int_to_ptr.hbm [resolvable:$true] %s817
          %s819 = sshll.u32 %s809, 4
          %s820 = int_to_ptr.vmem [resolvable:$true] %s819
          %822 = dma.hbm_to_vmem [thread:$0]  %s818, 16, %s820, %s593
          %s823 = sadd.s32 %s588, 13
          %s824 = sld [smem:[#allocation5 + %s823]]
          %s825 = scalar_lea.hbm %s1, %s824
          %s826 = sadd.s32 11, %s591
          %s827 = scalar_lea.vmem [#allocation2], %s826
          // Predicated region
          $region201: #{tpu_custom_call.1} parent=147 // pred_check
            _
          $region202: #{tpu_custom_call.1} parent=147 // pred_check_branch
            %829 = sbr.rel target = $region204
          $region203: #{tpu_custom_call.1} parent=147 // pred_region
            %830 = sst [smem:[#allocation10]] [#allocation101]
            %831 = sst [smem:[#allocation11]] [#allocation100]
          $region204: #{tpu_custom_call.1} parent=147 // pred_fallthru
            _
          %833 = shalt.err (0)
          %s835 = sshll.u32 %s825, 4
          %s836 = int_to_ptr.hbm [resolvable:$true] %s835
          %s837 = sshll.u32 %s827, 4
          %s838 = int_to_ptr.vmem [resolvable:$true] %s837
          %840 = dma.hbm_to_vmem [thread:$0]  %s836, 16, %s838, %s593
          %s841 = sadd.s32 %s588, 14
          %s842 = sld [smem:[#allocation5 + %s841]]
          %s843 = scalar_lea.hbm %s1, %s842
          %s844 = sadd.s32 19, %s591
          %s845 = scalar_lea.vmem [#allocation2], %s844
          // Predicated region
          $region205: #{tpu_custom_call.1} parent=147 // pred_check
            _
          $region206: #{tpu_custom_call.1} parent=147 // pred_check_branch
            %847 = sbr.rel target = $region208
          $region207: #{tpu_custom_call.1} parent=147 // pred_region
            %848 = sst [smem:[#allocation10]] [#allocation103]
            %849 = sst [smem:[#allocation11]] [#allocation102]
          $region208: #{tpu_custom_call.1} parent=147 // pred_fallthru
            _
          %851 = shalt.err (0)
          %s853 = sshll.u32 %s843, 4
          %s854 = int_to_ptr.hbm [resolvable:$true] %s853
          %s855 = sshll.u32 %s845, 4
          %s856 = int_to_ptr.vmem [resolvable:$true] %s855
          %858 = dma.hbm_to_vmem [thread:$0]  %s854, 16, %s856, %s593
          %s859 = sadd.s32 %s588, 15
          %s860 = sld [smem:[#allocation5 + %s859]]
          %s861 = scalar_lea.hbm %s1, %s860
          %s862 = sadd.s32 27, %s591
          %s863 = scalar_lea.vmem [#allocation2], %s862
          // Predicated region
          $region209: #{tpu_custom_call.1} parent=147 // pred_check
            _
          $region210: #{tpu_custom_call.1} parent=147 // pred_check_branch
            %865 = sbr.rel target = $region212
          $region211: #{tpu_custom_call.1} parent=147 // pred_region
            %866 = sst [smem:[#allocation10]] [#allocation105]
            %867 = sst [smem:[#allocation11]] [#allocation104]
          $region212: #{tpu_custom_call.1} parent=147 // pred_fallthru
            _
          %869 = shalt.err (0)
          %s871 = sshll.u32 %s861, 4
          %s872 = int_to_ptr.hbm [resolvable:$true] %s871
          %s873 = sshll.u32 %s863, 4
          %s874 = int_to_ptr.vmem [resolvable:$true] %s873
          %876 = dma.hbm_to_vmem [thread:$0]  %s872, 16, %s874, %s593
          %s877 = sadd.s32 %s588, 16
          %s878 = sld [smem:[#allocation5 + %s877]]
          %s879 = scalar_lea.hbm %s1, %s878
          %s880 = sadd.s32 4, %s591
          %s881 = scalar_lea.vmem [#allocation2], %s880
          // Predicated region
          $region213: #{tpu_custom_call.1} parent=147 // pred_check
            _
          $region214: #{tpu_custom_call.1} parent=147 // pred_check_branch
            %883 = sbr.rel target = $region216
          $region215: #{tpu_custom_call.1} parent=147 // pred_region
            %884 = sst [smem:[#allocation10]] [#allocation107]
            %885 = sst [smem:[#allocation11]] [#allocation106]
          $region216: #{tpu_custom_call.1} parent=147 // pred_fallthru
            _
          %887 = shalt.err (0)
          %s889 = sshll.u32 %s879, 4
          %s890 = int_to_ptr.hbm [resolvable:$true] %s889
          %s891 = sshll.u32 %s881, 4
          %s892 = int_to_ptr.vmem [resolvable:$true] %s891
          %894 = dma.hbm_to_vmem [thread:$0]  %s890, 16, %s892, %s593
          %s895 = sadd.s32 %s588, 17
          %s896 = sld [smem:[#allocation5 + %s895]]
          %s897 = scalar_lea.hbm %s1, %s896
          %s898 = sadd.s32 12, %s591
          %s899 = scalar_lea.vmem [#allocation2], %s898
          // Predicated region
          $region217: #{tpu_custom_call.1} parent=147 // pred_check
            _
          $region218: #{tpu_custom_call.1} parent=147 // pred_check_branch
            %901 = sbr.rel target = $region220
          $region219: #{tpu_custom_call.1} parent=147 // pred_region
            %902 = sst [smem:[#allocation10]] [#allocation109]
            %903 = sst [smem:[#allocation11]] [#allocation108]
          $region220: #{tpu_custom_call.1} parent=147 // pred_fallthru
            _
          %905 = shalt.err (0)
          %s907 = sshll.u32 %s897, 4
          %s908 = int_to_ptr.hbm [resolvable:$true] %s907
          %s909 = sshll.u32 %s899, 4
          %s910 = int_to_ptr.vmem [resolvable:$true] %s909
          %912 = dma.hbm_to_vmem [thread:$0]  %s908, 16, %s910, %s593
          %s913 = sadd.s32 %s588, 18
          %s914 = sld [smem:[#allocation5 + %s913]]
          %s915 = scalar_lea.hbm %s1, %s914
          %s916 = sadd.s32 20, %s591
          %s917 = scalar_lea.vmem [#allocation2], %s916
          // Predicated region
          $region221: #{tpu_custom_call.1} parent=147 // pred_check
            _
          $region222: #{tpu_custom_call.1} parent=147 // pred_check_branch
            %919 = sbr.rel target = $region224
          $region223: #{tpu_custom_call.1} parent=147 // pred_region
            %920 = sst [smem:[#allocation10]] [#allocation111]
            %921 = sst [smem:[#allocation11]] [#allocation110]
          $region224: #{tpu_custom_call.1} parent=147 // pred_fallthru
            _
          %923 = shalt.err (0)
          %s925 = sshll.u32 %s915, 4
          %s926 = int_to_ptr.hbm [resolvable:$true] %s925
          %s927 = sshll.u32 %s917, 4
          %s928 = int_to_ptr.vmem [resolvable:$true] %s927
          %930 = dma.hbm_to_vmem [thread:$0]  %s926, 16, %s928, %s593
          %s931 = sadd.s32 %s588, 19
          %s932 = sld [smem:[#allocation5 + %s931]]
          %s933 = scalar_lea.hbm %s1, %s932
          %s934 = sadd.s32 28, %s591
          %s935 = scalar_lea.vmem [#allocation2], %s934
          // Predicated region
          $region225: #{tpu_custom_call.1} parent=147 // pred_check
            _
          $region226: #{tpu_custom_call.1} parent=147 // pred_check_branch
            %937 = sbr.rel target = $region228
          $region227: #{tpu_custom_call.1} parent=147 // pred_region
            %938 = sst [smem:[#allocation10]] [#allocation113]
            %939 = sst [smem:[#allocation11]] [#allocation112]
          $region228: #{tpu_custom_call.1} parent=147 // pred_fallthru
            _
          %941 = shalt.err (0)
          %s943 = sshll.u32 %s933, 4
          %s944 = int_to_ptr.hbm [resolvable:$true] %s943
          %s945 = sshll.u32 %s935, 4
          %s946 = int_to_ptr.vmem [resolvable:$true] %s945
          %948 = dma.hbm_to_vmem [thread:$0]  %s944, 16, %s946, %s593
          %s949 = sadd.s32 %s588, 20
          %s950 = sld [smem:[#allocation5 + %s949]]
          %s951 = scalar_lea.hbm %s1, %s950
          %s952 = sadd.s32 5, %s591
          %s953 = scalar_lea.vmem [#allocation2], %s952
          // Predicated region
          $region229: #{tpu_custom_call.1} parent=147 // pred_check
            _
          $region230: #{tpu_custom_call.1} parent=147 // pred_check_branch
            %955 = sbr.rel target = $region232
          $region231: #{tpu_custom_call.1} parent=147 // pred_region
            %956 = sst [smem:[#allocation10]] [#allocation115]
            %957 = sst [smem:[#allocation11]] [#allocation114]
          $region232: #{tpu_custom_call.1} parent=147 // pred_fallthru
            _
          %959 = shalt.err (0)
          %s961 = sshll.u32 %s951, 4
          %s962 = int_to_ptr.hbm [resolvable:$true] %s961
          %s963 = sshll.u32 %s953, 4
          %s964 = int_to_ptr.vmem [resolvable:$true] %s963
          %966 = dma.hbm_to_vmem [thread:$0]  %s962, 16, %s964, %s593
          %s967 = sadd.s32 %s588, 21
          %s968 = sld [smem:[#allocation5 + %s967]]
          %s969 = scalar_lea.hbm %s1, %s968
          %s970 = sadd.s32 13, %s591
          %s971 = scalar_lea.vmem [#allocation2], %s970
          // Predicated region
          $region233: #{tpu_custom_call.1} parent=147 // pred_check
            _
          $region234: #{tpu_custom_call.1} parent=147 // pred_check_branch
            %973 = sbr.rel target = $region236
          $region235: #{tpu_custom_call.1} parent=147 // pred_region
            %974 = sst [smem:[#allocation10]] [#allocation117]
            %975 = sst [smem:[#allocation11]] [#allocation116]
          $region236: #{tpu_custom_call.1} parent=147 // pred_fallthru
            _
          %977 = shalt.err (0)
          %s979 = sshll.u32 %s969, 4
          %s980 = int_to_ptr.hbm [resolvable:$true] %s979
          %s981 = sshll.u32 %s971, 4
          %s982 = int_to_ptr.vmem [resolvable:$true] %s981
          %984 = dma.hbm_to_vmem [thread:$0]  %s980, 16, %s982, %s593
          %s985 = sadd.s32 %s588, 22
          %s986 = sld [smem:[#allocation5 + %s985]]
          %s987 = scalar_lea.hbm %s1, %s986
          %s988 = sadd.s32 21, %s591
          %s989 = scalar_lea.vmem [#allocation2], %s988
          // Predicated region
          $region237: #{tpu_custom_call.1} parent=147 // pred_check
            _
          $region238: #{tpu_custom_call.1} parent=147 // pred_check_branch
            %991 = sbr.rel target = $region240
          $region239: #{tpu_custom_call.1} parent=147 // pred_region
            %992 = sst [smem:[#allocation10]] [#allocation119]
            %993 = sst [smem:[#allocation11]] [#allocation118]
          $region240: #{tpu_custom_call.1} parent=147 // pred_fallthru
            _
          %995 = shalt.err (0)
          %s997 = sshll.u32 %s987, 4
          %s998 = int_to_ptr.hbm [resolvable:$true] %s997
          %s999 = sshll.u32 %s989, 4
          %s1000 = int_to_ptr.vmem [resolvable:$true] %s999
          %1002 = dma.hbm_to_vmem [thread:$0]  %s998, 16, %s1000, %s593
          %s1003 = sadd.s32 %s588, 23
          %s1004 = sld [smem:[#allocation5 + %s1003]]
          %s1005 = scalar_lea.hbm %s1, %s1004
          %s1006 = sadd.s32 29, %s591
          %s1007 = scalar_lea.vmem [#allocation2], %s1006
          // Predicated region
          $region241: #{tpu_custom_call.1} parent=147 // pred_check
            _
          $region242: #{tpu_custom_call.1} parent=147 // pred_check_branch
            %1009 = sbr.rel target = $region244
          $region243: #{tpu_custom_call.1} parent=147 // pred_region
            %1010 = sst [smem:[#allocation10]] [#allocation121]
            %1011 = sst [smem:[#allocation11]] [#allocation120]
          $region244: #{tpu_custom_call.1} parent=147 // pred_fallthru
            _
          %1013 = shalt.err (0)
          %s1015 = sshll.u32 %s1005, 4
          %s1016 = int_to_ptr.hbm [resolvable:$true] %s1015
          %s1017 = sshll.u32 %s1007, 4
          %s1018 = int_to_ptr.vmem [resolvable:$true] %s1017
          %1020 = dma.hbm_to_vmem [thread:$0]  %s1016, 16, %s1018, %s593
          %s1021 = sadd.s32 %s588, 24
          %s1022 = sld [smem:[#allocation5 + %s1021]]
          %s1023 = scalar_lea.hbm %s1, %s1022
          %s1024 = sadd.s32 6, %s591
          %s1025 = scalar_lea.vmem [#allocation2], %s1024
          // Predicated region
          $region245: #{tpu_custom_call.1} parent=147 // pred_check
            _
          $region246: #{tpu_custom_call.1} parent=147 // pred_check_branch
            %1027 = sbr.rel target = $region248
          $region247: #{tpu_custom_call.1} parent=147 // pred_region
            %1028 = sst [smem:[#allocation10]] [#allocation123]
            %1029 = sst [smem:[#allocation11]] [#allocation122]
          $region248: #{tpu_custom_call.1} parent=147 // pred_fallthru
            _
          %1031 = shalt.err (0)
          %s1033 = sshll.u32 %s1023, 4
          %s1034 = int_to_ptr.hbm [resolvable:$true] %s1033
          %s1035 = sshll.u32 %s1025, 4
          %s1036 = int_to_ptr.vmem [resolvable:$true] %s1035
          %1038 = dma.hbm_to_vmem [thread:$0]  %s1034, 16, %s1036, %s593
          %s1039 = sadd.s32 %s588, 25
          %s1040 = sld [smem:[#allocation5 + %s1039]]
          %s1041 = scalar_lea.hbm %s1, %s1040
          %s1042 = sadd.s32 14, %s591
          %s1043 = scalar_lea.vmem [#allocation2], %s1042
          // Predicated region
          $region249: #{tpu_custom_call.1} parent=147 // pred_check
            _
          $region250: #{tpu_custom_call.1} parent=147 // pred_check_branch
            %1045 = sbr.rel target = $region252
          $region251: #{tpu_custom_call.1} parent=147 // pred_region
            %1046 = sst [smem:[#allocation10]] [#allocation125]
            %1047 = sst [smem:[#allocation11]] [#allocation124]
          $region252: #{tpu_custom_call.1} parent=147 // pred_fallthru
            _
          %1049 = shalt.err (0)
          %s1051 = sshll.u32 %s1041, 4
          %s1052 = int_to_ptr.hbm [resolvable:$true] %s1051
          %s1053 = sshll.u32 %s1043, 4
          %s1054 = int_to_ptr.vmem [resolvable:$true] %s1053
          %1056 = dma.hbm_to_vmem [thread:$0]  %s1052, 16, %s1054, %s593
          %s1057 = sadd.s32 %s588, 26
          %s1058 = sld [smem:[#allocation5 + %s1057]]
          %s1059 = scalar_lea.hbm %s1, %s1058
          %s1060 = sadd.s32 22, %s591
          %s1061 = scalar_lea.vmem [#allocation2], %s1060
          // Predicated region
          $region253: #{tpu_custom_call.1} parent=147 // pred_check
            _
          $region254: #{tpu_custom_call.1} parent=147 // pred_check_branch
            %1063 = sbr.rel target = $region256
          $region255: #{tpu_custom_call.1} parent=147 // pred_region
            %1064 = sst [smem:[#allocation10]] [#allocation127]
            %1065 = sst [smem:[#allocation11]] [#allocation126]
          $region256: #{tpu_custom_call.1} parent=147 // pred_fallthru
            _
          %1067 = shalt.err (0)
          %s1069 = sshll.u32 %s1059, 4
          %s1070 = int_to_ptr.hbm [resolvable:$true] %s1069
          %s1071 = sshll.u32 %s1061, 4
          %s1072 = int_to_ptr.vmem [resolvable:$true] %s1071
          %1074 = dma.hbm_to_vmem [thread:$0]  %s1070, 16, %s1072, %s593
          %s1075 = sadd.s32 %s588, 27
          %s1076 = sld [smem:[#allocation5 + %s1075]]
          %s1077 = scalar_lea.hbm %s1, %s1076
          %s1078 = sadd.s32 30, %s591
          %s1079 = scalar_lea.vmem [#allocation2], %s1078
          // Predicated region
          $region257: #{tpu_custom_call.1} parent=147 // pred_check
            _
          $region258: #{tpu_custom_call.1} parent=147 // pred_check_branch
            %1081 = sbr.rel target = $region260
          $region259: #{tpu_custom_call.1} parent=147 // pred_region
            %1082 = sst [smem:[#allocation10]] [#allocation129]
            %1083 = sst [smem:[#allocation11]] [#allocation128]
          $region260: #{tpu_custom_call.1} parent=147 // pred_fallthru
            _
          %1085 = shalt.err (0)
          %s1087 = sshll.u32 %s1077, 4
          %s1088 = int_to_ptr.hbm [resolvable:$true] %s1087
          %s1089 = sshll.u32 %s1079, 4
          %s1090 = int_to_ptr.vmem [resolvable:$true] %s1089
          %1092 = dma.hbm_to_vmem [thread:$0]  %s1088, 16, %s1090, %s593
          %s1093 = sadd.s32 %s588, 28
          %s1094 = sld [smem:[#allocation5 + %s1093]]
          %s1095 = scalar_lea.hbm %s1, %s1094
          %s1096 = sadd.s32 7, %s591
          %s1097 = scalar_lea.vmem [#allocation2], %s1096
          // Predicated region
          $region261: #{tpu_custom_call.1} parent=147 // pred_check
            _
          $region262: #{tpu_custom_call.1} parent=147 // pred_check_branch
            %1099 = sbr.rel target = $region264
          $region263: #{tpu_custom_call.1} parent=147 // pred_region
            %1100 = sst [smem:[#allocation10]] [#allocation131]
            %1101 = sst [smem:[#allocation11]] [#allocation130]
          $region264: #{tpu_custom_call.1} parent=147 // pred_fallthru
            _
          %1103 = shalt.err (0)
          %s1105 = sshll.u32 %s1095, 4
          %s1106 = int_to_ptr.hbm [resolvable:$true] %s1105
          %s1107 = sshll.u32 %s1097, 4
          %s1108 = int_to_ptr.vmem [resolvable:$true] %s1107
          %1110 = dma.hbm_to_vmem [thread:$0]  %s1106, 16, %s1108, %s593
          %s1111 = sadd.s32 %s588, 29
          %s1112 = sld [smem:[#allocation5 + %s1111]]
          %s1113 = scalar_lea.hbm %s1, %s1112
          %s1114 = sadd.s32 15, %s591
          %s1115 = scalar_lea.vmem [#allocation2], %s1114
          // Predicated region
          $region265: #{tpu_custom_call.1} parent=147 // pred_check
            _
          $region266: #{tpu_custom_call.1} parent=147 // pred_check_branch
            %1117 = sbr.rel target = $region268
          $region267: #{tpu_custom_call.1} parent=147 // pred_region
            %1118 = sst [smem:[#allocation10]] [#allocation133]
            %1119 = sst [smem:[#allocation11]] [#allocation132]
          $region268: #{tpu_custom_call.1} parent=147 // pred_fallthru
            _
          %1121 = shalt.err (0)
          %s1123 = sshll.u32 %s1113, 4
          %s1124 = int_to_ptr.hbm [resolvable:$true] %s1123
          %s1125 = sshll.u32 %s1115, 4
          %s1126 = int_to_ptr.vmem [resolvable:$true] %s1125
          %1128 = dma.hbm_to_vmem [thread:$0]  %s1124, 16, %s1126, %s593
          %s1129 = sadd.s32 %s588, 30
          %s1130 = sld [smem:[#allocation5 + %s1129]]
          %s1131 = scalar_lea.hbm %s1, %s1130
          %s1132 = sadd.s32 23, %s591
          %s1133 = scalar_lea.vmem [#allocation2], %s1132
          // Predicated region
          $region269: #{tpu_custom_call.1} parent=147 // pred_check
            _
          $region270: #{tpu_custom_call.1} parent=147 // pred_check_branch
            %1135 = sbr.rel target = $region272
          $region271: #{tpu_custom_call.1} parent=147 // pred_region
            %1136 = sst [smem:[#allocation10]] [#allocation135]
            %1137 = sst [smem:[#allocation11]] [#allocation134]
          $region272: #{tpu_custom_call.1} parent=147 // pred_fallthru
            _
          %1139 = shalt.err (0)
          %s1141 = sshll.u32 %s1131, 4
          %s1142 = int_to_ptr.hbm [resolvable:$true] %s1141
          %s1143 = sshll.u32 %s1133, 4
          %s1144 = int_to_ptr.vmem [resolvable:$true] %s1143
          %1146 = dma.hbm_to_vmem [thread:$0]  %s1142, 16, %s1144, %s593
          %s1147 = sadd.s32 %s588, 31
          %s1148 = sld [smem:[#allocation5 + %s1147]]
          %s1149 = scalar_lea.hbm %s1, %s1148
          %s1150 = sadd.s32 31, %s591
          %s1151 = scalar_lea.vmem [#allocation2], %s1150
          // Predicated region
          $region273: #{tpu_custom_call.1} parent=147 // pred_check
            _
          $region274: #{tpu_custom_call.1} parent=147 // pred_check_branch
            %1153 = sbr.rel target = $region276
          $region275: #{tpu_custom_call.1} parent=147 // pred_region
            %1154 = sst [smem:[#allocation10]] [#allocation137]
            %1155 = sst [smem:[#allocation11]] [#allocation136]
          $region276: #{tpu_custom_call.1} parent=147 // pred_fallthru
            _
          %1157 = shalt.err (0)
          %s1159 = sshll.u32 %s1149, 4
          %s1160 = int_to_ptr.hbm [resolvable:$true] %s1159
          %s1161 = sshll.u32 %s1151, 4
          %s1162 = int_to_ptr.vmem [resolvable:$true] %s1161
          %1164 = dma.hbm_to_vmem [thread:$0]  %s1160, 16, %s1162, %s593
        $region148: #{tpu_custom_call.1} parent=11 // pred_fallthru
          _
        %p1165 = scmp.lt.s32.totalorder %s19, 0
        %s1166 = ssub.s32 0, %s19
        %s1167 = scalar_select %p1165, %s1166, %s19
        %s1168 = sand.u32 %s1167, 1
        %s1169 = ssub.s32 0, %s1168
        %s1170 = scalar_select %p1165, %s1169, %s1168
        %p1171 = scmp.ne.s32.totalorder %s1170, 0
        %p1172 = scmp.lt.s32.totalorder %s1170, 0
        %p1173 = pnand %p1172, %p1171
        %p1174 = pneg %p1173
        %s1175 = sadd.s32 %s1170, 2
        %s1176 = scalar_select %p1174, %s1175, %s1170
        %s1177 = scalar_lea.sflag [#allocation3], %s1176
        %1179 = dma.done %s1177, 16
        %1181 = dma.done %s1177, 16
        %1183 = dma.done %s1177, 16
        %1185 = dma.done %s1177, 16
        %1187 = dma.done %s1177, 16
        %1189 = dma.done %s1177, 16
        %1191 = dma.done %s1177, 16
        %1193 = dma.done %s1177, 16
        %1195 = dma.done %s1177, 16
        %1197 = dma.done %s1177, 16
        %1199 = dma.done %s1177, 16
        %1201 = dma.done %s1177, 16
        %1203 = dma.done %s1177, 16
        %1205 = dma.done %s1177, 16
        %1207 = dma.done %s1177, 16
        %1209 = dma.done %s1177, 16
        %1211 = dma.done %s1177, 16
        %1213 = dma.done %s1177, 16
        %1215 = dma.done %s1177, 16
        %1217 = dma.done %s1177, 16
        %1219 = dma.done %s1177, 16
        %1221 = dma.done %s1177, 16
        %1223 = dma.done %s1177, 16
        %1225 = dma.done %s1177, 16
        %1227 = dma.done %s1177, 16
        %1229 = dma.done %s1177, 16
        %1231 = dma.done %s1177, 16
        %1233 = dma.done %s1177, 16
        %1235 = dma.done %s1177, 16
        %1237 = dma.done %s1177, 16
        %1239 = dma.done %s1177, 16
        %1241 = dma.done %s1177, 16
        %s1242 = smul.u32 %s1176, 32
        %s1243 = scalar_lea.vmem [#allocation2], %s1242
        %v1244 = vld [vmem:[%s1243] sm:$0xff]
        %s1245 = scalar_lea.vmem %s1243, 8 [#allocation2]
        %v1246 = vld [vmem:[%s1245] sm:$0xff]
        %v1247 = vadd.f32 %v1244, %v1246
        %s1248 = scalar_lea.vmem %s1243, 16 [#allocation2]
        %v1249 = vld [vmem:[%s1248] sm:$0xff]
        %v1250 = vadd.f32 %v1247, %v1249
        %s1251 = scalar_lea.vmem %s1243, 24 [#allocation2]
        %v1252 = vld [vmem:[%s1251] sm:$0xff]
        %v1253 = vadd.f32 %v1250, %v1252
        %v1254 = vmul.f32 %v1253, 0.25
        %1255 = vst [vmem:[%s55] sm:$0xff] %v1254
        %s1256 = sand.u32 %s28, 1
        %s1257 = scalar_lea.sflag [#allocation7], %s1256
        %s1258 = sand.u32 %s28, 1
        %s1259 = smul.addr %s1258, 8
        %s1260 = scalar_lea.vmem [#allocation6], %s1259
        // Predicated region
        $region277: #{tpu_custom_call.1} parent=11 // pred_check
          %p1261 = pneg %p34
        $region278: #{tpu_custom_call.1} parent=11 // pred_check_branch
          %1263 = sbr.rel (%p1261) target = $region280
        $region279: #{tpu_custom_call.1} parent=11 // pred_region
          %1265 = vsyncadd %s1257, 0
          %s1266 = smul.addr %s19, 8
          %s1267 = scalar_lea.hbm %s2, %s1266
          %s1269 = sshll.u32 %s1260, 4
          %s1270 = int_to_ptr.vmem [resolvable:$true] %s1269
          %s1271 = sshll.u32 %s1267, 4
          %s1272 = int_to_ptr.hbm [resolvable:$true] %s1271
          %1274 = dma.vmem_to_hbm [thread:$0]  %s1270, 128, %s1272, %s1257
        $region280: #{tpu_custom_call.1} parent=11 // pred_fallthru
          _
      $region12: #{tpu_custom_call.1} parent=5 // pred_fallthru
        _
      %p1275 = scmp.le.s32.totalorder 1, %s19
      // Predicated region
      $region281: #{tpu_custom_call.1} parent=5 // pred_check
        %p1276 = pneg %p1275
      $region282: #{tpu_custom_call.1} parent=5 // pred_check_branch
        %1278 = sbr.rel (%p1276) target = $region284
      $region283: #{tpu_custom_call.1} parent=5 // pred_region
        %s1279 = ssub.s32 %s19, 1
        // Predicated region
        $region285: #{tpu_custom_call.1} parent=283 // pred_check
          %p1280 = pneg %p40
        $region286: #{tpu_custom_call.1} parent=283 // pred_check_branch
          %1282 = sbr.rel (%p1280) target = $region288
        $region287: #{tpu_custom_call.1} parent=283 // pred_region
          %s1283 = sand.u32 %s31, 1
          %s1284 = scalar_lea.sflag [#allocation7], %s1283
          %s1285 = sand.u32 %s31, 1
          %s1286 = smul.addr %s1285, 8
          %s1287 = scalar_lea.vmem [#allocation6], %s1286
          %1289 = dma.done %s1284, 128
        $region288: #{tpu_custom_call.1} parent=283 // pred_fallthru
          _
      $region284: #{tpu_custom_call.1} parent=5 // pred_fallthru
        _
    $region6: #{tpu_custom_call.1} parent=1 // loop_footer
      %s23 = sadd.s32 1, %s19
    $region7: #{tpu_custom_call.1} parent=1 // loop_footer_branch
      %18 = sbr.rel target = $region3
    $region8: #{tpu_custom_call.1} parent=1 // loop_exit
      _
    %1290 = vsyncpa [#allocation7], 1
    %s1291 = scalar_lea.sflag [#allocation7], 1
    %1292 = vsyncpa %s1291, 1
  %1293 = vsyncmov [#allocation3]
  %s1294 = vpop.sfrf %1293
  %p1295 = scmp.eq.s32.totalorder %s1294, 0
  %p1296 = pneg %p1295
  %1298 = shalt.err (%p1296)
  %s1299 = scalar_lea.sflag [#allocation3], 1
  %1300 = vsyncmov %s1299
  %s1301 = vpop.sfrf %1300
  %p1302 = scmp.eq.s32.totalorder %s1301, 0
  %p1303 = pneg %p1302
  %1305 = shalt.err (%p1303)

</llo_original>
